<compile_context>
chip_gen: v7x
topology: tpu7x:2x2x1
jax: 0.10.0
libtpu: 0.0.40
codegen_flags: <defaults>
</compile_context>

<pallas_src>
import math
import functools

import jax
import jax.numpy as jnp
from jax import lax
from jax.experimental import pallas as pl
from jax.experimental.pallas import tpu as pltpu


def _round_up(x, m):
    return ((x + m - 1) // m) * m


def _layernorm(x, g, b, eps=1e-5):
    """f32 layernorm over the last axis.  g/b broadcast as (1, E)."""
    mu = jnp.mean(x, axis=-1, keepdims=True)
    var = jnp.mean(jnp.square(x - mu), axis=-1, keepdims=True)
    return (x - mu) * lax.rsqrt(var + eps) * g + b


# ----------------------------------------------------------------------------
# Fused kernel: embedding -> n_layer GPT-2 blocks -> final LN -> read-out
# grid = (batch_blocks, layers); layer axis is "arbitrary", batch "parallel".
# ----------------------------------------------------------------------------

def _fused_icd_kernel(
    zs_ref, w_in_ref, b_in_ref, wpe_ref,
    ln1_g_ref, ln1_b_ref, w_attn_ref, b_attn_ref, w_aproj_ref, b_aproj_ref,
    ln2_g_ref, ln2_b_ref, w_fc_ref, b_fc_ref, w_mproj_ref, b_mproj_ref,
    lnf_g_ref, lnf_b_ref, w_out_ref, b_out_ref,
    out_ref,
    h_ref, mask_ref,
    *, n_head):
    l = pl.program_id(1)
    n_layers = pl.num_programs(1)
    Bb, T, Dpad = zs_ref.shape
    BT, E = h_ref.shape                     # BT = Bb * T
    H = n_head
    Dh = E // H

    # ---- layer step 0: read-in + positional embeddings + causal bias
    @pl.when(l == 0)
    def _():
        z = zs_ref[...].reshape(BT, Dpad).astype(jnp.bfloat16)
        emb = jnp.dot(z, w_in_ref[...], preferred_element_type=jnp.float32)
        emb = emb + b_in_ref[...]
        emb = emb.reshape(Bb, T, E) + wpe_ref[...]        # broadcast over batch
        h_ref[...] = emb.reshape(BT, E)
        row = lax.broadcasted_iota(jnp.int32, (T, T), 0)
        col = lax.broadcasted_iota(jnp.int32, (T, T), 1)
        mask_ref[...] = jnp.where(col <= row, 0.0, -1e30).astype(jnp.float32)

    h = h_ref[...]                          # (BT, E) f32 residual stream
    bias = mask_ref[...]                    # (T, T) additive causal bias

    # ---- attention block: ln1 -> qkv -> causal MHA -> out proj -> +residual
    x = _layernorm(h, ln1_g_ref[0], ln1_b_ref[0])
    qkv = jnp.dot(x.astype(jnp.bfloat16), w_attn_ref[0],
                  preferred_element_type=jnp.float32) + b_attn_ref[0]
    scale = 1.0 / math.sqrt(Dh)             # GPT-2 scale_attn_weights
    q = (qkv[:, :E] * scale).astype(jnp.bfloat16).reshape(Bb, T, E)
    k = qkv[:, E:2 * E].astype(jnp.bfloat16).reshape(Bb, T, E)
    v = qkv[:, 2 * E:].astype(jnp.bfloat16).reshape(Bb, T, E)
    w_aproj = w_aproj_ref[0]                # (E, E) bf16

    # Per-head loop (H small, static unroll).  Scores / softmax stay f32.
    # The head concat is folded into the out-projection via per-head row
    # slices of w_aproj (sublane-aligned), accumulated on the MXU.
    # TODO(synk): for long sequences use a flash-style KV-tiled online-softmax
    # loop instead of materializing the (Bb, T, T) score tensor.
    attn_acc = jnp.zeros((BT, E), jnp.float32)
    for hh in range(H):
        sl = slice(hh * Dh, (hh + 1) * Dh)
        s = jnp.einsum('bqd,bkd->bqk', q[:, :, sl], k[:, :, sl],
                       preferred_element_type=jnp.float32)       # (Bb, T, T)
        s = s + bias
        s = s - jnp.max(s, axis=-1, keepdims=True)
        p = jnp.exp(s)
        p = p * pl.reciprocal(jnp.sum(p, axis=-1, keepdims=True), approx=True)
        o = jnp.einsum('bqk,bkd->bqd', p.astype(jnp.bfloat16), v[:, :, sl],
                       preferred_element_type=jnp.float32)       # (Bb, T, Dh)
        attn_acc = attn_acc + jnp.dot(
            o.reshape(BT, Dh).astype(jnp.bfloat16), w_aproj[sl, :],
            preferred_element_type=jnp.float32)
    h = h + attn_acc + b_aproj_ref[0]

    # ---- MLP block: ln2 -> fc -> gelu_new -> proj -> +residual
    x = _layernorm(h, ln2_g_ref[0], ln2_b_ref[0])
    ff = jnp.dot(x.astype(jnp.bfloat16), w_fc_ref[0],
                 preferred_element_type=jnp.float32) + b_fc_ref[0]
    c = math.sqrt(2.0 / math.pi)
    ff = 0.5 * ff * (1.0 + jnp.tanh(c * (ff + 0.044715 * ff * ff * ff)))  # gelu_new
    mlp_out = jnp.dot(ff.astype(jnp.bfloat16), w_mproj_ref[0],
                      preferred_element_type=jnp.float32) + b_mproj_ref[0]
    h = h + mlp_out
    h_ref[...] = h                          # residual stays in VMEM

    # ---- final LN + read-out over all T rows (lane-dense); ::2 selection of
    #      the y-positions happens in JAX on the already-dense output.
    # NOTE: out block is only written at the last layer step; its block index
    # only changes with the batch-block axis, so Pallas writes it back after
    # the last layer step (standard accumulator/revisit invariant).
    @pl.when(l == n_layers - 1)
    def _():
        hn = _layernorm(h, lnf_g_ref[...], lnf_b_ref[...])
        out = jnp.dot(hn.astype(jnp.bfloat16), w_out_ref[...],
                      preferred_element_type=jnp.float32) + b_out_ref[...]
        out_ref[...] = out.reshape(Bb, T, out_ref.shape[-1]).astype(out_ref.dtype)


# ----------------------------------------------------------------------------
# Parameter construction (deterministic, GPT-2-style init: N(0, 0.02))
# Weights used on the MXU are stored bf16; LN params / biases / wpe are f32.
# ----------------------------------------------------------------------------

def init_params(key, *, n_dims, n_dims_out, n_positions, n_embd, n_layer, n_head):
    assert n_embd % n_head == 0
    std = 0.02
    E, L = n_embd, n_layer
    d_pad = _round_up(n_dims, 128)        # lane-dense read-in width
    out_pad = _round_up(n_dims_out, 128)  # lane-dense read-out width
    ks = jax.random.split(key, 7)

    def nrm(k, shape):
        return jax.random.normal(k, shape, jnp.float32) * std

    w_in = jnp.zeros((d_pad, E), jnp.float32).at[:n_dims, :].set(
        nrm(ks[0], (n_dims, E)))
    w_out = jnp.zeros((E, out_pad), jnp.float32).at[:, :n_dims_out].set(
        nrm(ks[1], (E, n_dims_out)))

    return {
        "w_in":    w_in.astype(jnp.bfloat16),
        "b_in":    jnp.zeros((1, E), jnp.float32),
        "wpe":     nrm(ks[2], (2 * n_positions, E)),
        "ln1_g":   jnp.ones((L, 1, E), jnp.float32),
        "ln1_b":   jnp.zeros((L, 1, E), jnp.float32),
        "w_attn":  nrm(ks[3], (L, E, 3 * E)).astype(jnp.bfloat16),
        "b_attn":  jnp.zeros((L, 1, 3 * E), jnp.float32),
        "w_aproj": nrm(ks[4], (L, E, E)).astype(jnp.bfloat16),
        "b_aproj": jnp.zeros((L, 1, E), jnp.float32),
        "ln2_g":   jnp.ones((L, 1, E), jnp.float32),
        "ln2_b":   jnp.zeros((L, 1, E), jnp.float32),
        "w_fc":    nrm(ks[5], (L, E, 4 * E)).astype(jnp.bfloat16),
        "b_fc":    jnp.zeros((L, 1, 4 * E), jnp.float32),
        "w_mproj": nrm(ks[6], (L, 4 * E, E)).astype(jnp.bfloat16),
        "b_mproj": jnp.zeros((L, 1, E), jnp.float32),
        "lnf_g":   jnp.ones((1, E), jnp.float32),
        "lnf_b":   jnp.zeros((1, E), jnp.float32),
        "w_out":   w_out.astype(jnp.bfloat16),
        "b_out":   jnp.zeros((1, out_pad), jnp.float32),
    }


# ----------------------------------------------------------------------------
# Forward pass: _combine in JAX (pure layout), everything else in one kernel.
# ----------------------------------------------------------------------------

def transformer_for_icd_forward(params, xs, ys, *, n_head, inds=None,
                                batch_block=None):
    """Mirrors TransformerForICD.forward (output_hidden_states=False).

    xs: (B, P, n_dims_out)   -- the quantities being predicted
    ys: (B, P, n_dims)       -- the quantities used to predict the xs
    returns: (B, len(inds) or P, n_dims_out)
    """
    B, P, x_size = xs.shape
    _, _, D = ys.shape
    E = params["w_in"].shape[1]
    d_pad = params["w_in"].shape[0]
    out_pad = params["w_out"].shape[1]
    L = params["w_attn"].shape[0]
    T = 2 * P
    n_dims_out = x_size

    if batch_block is None:
        batch_block = B          # fold the whole batch into each layer step
    assert B % batch_block == 0
    num_bb = B // batch_block    # on v7x keep >= 2 blocks to use both TCs

    # _combine: interleave (y_0, x_0, y_1, x_1, ...); xs zero-padded to dim D.
    if D > x_size:
        xs_wide = jnp.concatenate(
            [xs, jnp.zeros((B, P, D - x_size), xs.dtype)], axis=2)
    else:
        xs_wide = xs
    zs = jnp.stack([ys, xs_wide], axis=2).reshape(B, T, D)
    if d_pad > D:   # zero-pad features to the lane-dense read-in width
        zs = jnp.concatenate([zs, jnp.zeros((B, T, d_pad - D), zs.dtype)], axis=2)
    wpe = params["wpe"][:T]

    per_bb = lambda b, l: (b, 0, 0)
    per_l = lambda b, l: (l, 0, 0)
    const2 = lambda b, l: (0, 0)

    kernel = functools.partial(_fused_icd_kernel, n_head=n_head)
    # TODO(synk): if layer steps stay DMA-exposed at larger E/T, add
    # pipeline_mode=pl.Buffered(3) on w_attn/w_fc/w_mproj and set
    # vmem_limit_bytes explicitly (re-derive against v7x's 64 MiB VMEM).
    logits = pl.pallas_call(
        kernel,
        out_shape=jax.ShapeDtypeStruct((B, T, out_pad), jnp.float32),
        grid=(num_bb, L),
        in_specs=[
            pl.BlockSpec((batch_block, T, d_pad), per_bb),   # zs
            pl.BlockSpec((d_pad, E), const2),                # w_in
            pl.BlockSpec((1, E), const2),                    # b_in
            pl.BlockSpec((T, E), const2),                    # wpe
            pl.BlockSpec((1, 1, E), per_l),                  # ln1_g
            pl.BlockSpec((1, 1, E), per_l),                  # ln1_b
            pl.BlockSpec((1, E, 3 * E), per_l),              # w_attn
            pl.BlockSpec((1, 1, 3 * E), per_l),              # b_attn
            pl.BlockSpec((1, E, E), per_l),                  # w_aproj
            pl.BlockSpec((1, 1, E), per_l),                  # b_aproj
            pl.BlockSpec((1, 1, E), per_l),                  # ln2_g
            pl.BlockSpec((1, 1, E), per_l),                  # ln2_b
            pl.BlockSpec((1, E, 4 * E), per_l),              # w_fc
            pl.BlockSpec((1, 1, 4 * E), per_l),              # b_fc
            pl.BlockSpec((1, 4 * E, E), per_l),              # w_mproj
            pl.BlockSpec((1, 1, E), per_l),                  # b_mproj
            pl.BlockSpec((1, E), const2),                    # lnf_g
            pl.BlockSpec((1, E), const2),                    # lnf_b
            pl.BlockSpec((E, out_pad), const2),              # w_out
            pl.BlockSpec((1, out_pad), const2),              # b_out
        ],
        out_specs=pl.BlockSpec((batch_block, T, out_pad), per_bb),
        scratch_shapes=[pltpu.VMEM((batch_block * T, E), jnp.float32),  # residual
                        pltpu.VMEM((T, T), jnp.float32)],               # causal bias
        compiler_params=pltpu.CompilerParams(
            dimension_semantics=("parallel", "arbitrary")),
    )(zs, params["w_in"], params["b_in"], wpe,
      params["ln1_g"], params["ln1_b"], params["w_attn"], params["b_attn"],
      params["w_aproj"], params["b_aproj"], params["ln2_g"], params["ln2_b"],
      params["w_fc"], params["b_fc"], params["w_mproj"], params["b_mproj"],
      params["lnf_g"], params["lnf_b"], params["w_out"], params["b_out"])

    # y-position (::2) predictions; drop lane padding; optionally select inds.
    preds = logits[:, ::2, :n_dims_out]
    if inds is None:
        return preds
    return preds[:, jnp.asarray(inds), :]


# ----------------------------------------------------------------------------
# Main
# ----------------------------------------------------------------------------

if __name__ == "__main__":
    # Small shapes consistent with the module:
    #   n_dims=4 (ys feature dim), n_dims_out=1 (xs feature dim),
    #   n_positions=8 points -> interleaved sequence length 16,
    #   n_embd=128, n_layer=2, n_head=4, batch=2.
    B, P = 2, 8
    n_dims, n_dims_out = 4, 1
    n_embd, n_layer, n_head = 128, 2, 4

    key = jax.random.PRNGKey(0)
    kp, kx, ky = jax.random.split(key, 3)

    params = init_params(kp, n_dims=n_dims, n_dims_out=n_dims_out,
                         n_positions=P, n_embd=n_embd,
                         n_layer=n_layer, n_head=n_head)

    xs = jax.random.normal(kx, (B, P, n_dims_out), jnp.float32)
    ys = jax.random.normal(ky, (B, P, n_dims), jnp.float32)

    fwd = jax.jit(functools.partial(transformer_for_icd_forward, n_head=n_head))
    out = jax.block_until_ready(fwd(params, xs, ys))

    assert out.shape == (B, P, n_dims_out), out.shape
    assert bool(jnp.all(jnp.isfinite(out)))
    print("KERNEL_OK")
</pallas_src>

<mosaic_0001>
module attributes {stable_mosaic.version = 11 : i64} {
  func.func @_fused_icd_kernel(%arg0: i32, %arg1: i32, %arg2: memref<2x16x128xf32, #tpu.memory_space<vmem>>, %arg3: memref<128x128xbf16, #tpu.memory_space<vmem>>, %arg4: memref<1x128xf32, #tpu.memory_space<vmem>>, %arg5: memref<16x128xf32, #tpu.memory_space<vmem>>, %arg6: memref<1x1x128xf32, #tpu.memory_space<vmem>>, %arg7: memref<1x1x128xf32, #tpu.memory_space<vmem>>, %arg8: memref<1x128x384xbf16, #tpu.memory_space<vmem>>, %arg9: memref<1x1x384xf32, #tpu.memory_space<vmem>>, %arg10: memref<1x128x128xbf16, #tpu.memory_space<vmem>>, %arg11: memref<1x1x128xf32, #tpu.memory_space<vmem>>, %arg12: memref<1x1x128xf32, #tpu.memory_space<vmem>>, %arg13: memref<1x1x128xf32, #tpu.memory_space<vmem>>, %arg14: memref<1x128x512xbf16, #tpu.memory_space<vmem>>, %arg15: memref<1x1x512xf32, #tpu.memory_space<vmem>>, %arg16: memref<1x512x128xbf16, #tpu.memory_space<vmem>>, %arg17: memref<1x1x128xf32, #tpu.memory_space<vmem>>, %arg18: memref<1x128xf32, #tpu.memory_space<vmem>>, %arg19: memref<1x128xf32, #tpu.memory_space<vmem>>, %arg20: memref<128x128xbf16, #tpu.memory_space<vmem>>, %arg21: memref<1x128xf32, #tpu.memory_space<vmem>>, %arg22: memref<2x16x128xf32, #tpu.memory_space<vmem>>, %arg23: memref<32x128xf32, #tpu.memory_space<vmem>>, %arg24: memref<16x16xf32, #tpu.memory_space<vmem>>) attributes {dimension_semantics = [#tpu.dimension_semantics<parallel>, #tpu.dimension_semantics<arbitrary>], iteration_bounds = array<i64: 1, 2>, scalar_prefetch = 0 : i64, scratch_operands = 2 : i64, tpu.core_type = #tpu.core_type<tc>, window_params = [{transform_indices = @transform_0, window_bounds = array<i64: 2, 16, 128>}, {pipeline_mode = #tpu.pipeline_mode<synchronous>, transform_indices = @transform_1, window_bounds = array<i64: 128, 128>}, {pipeline_mode = #tpu.pipeline_mode<synchronous>, transform_indices = @transform_2, window_bounds = array<i64: 1, 128>}, {pipeline_mode = #tpu.pipeline_mode<synchronous>, transform_indices = @transform_3, window_bounds = array<i64: 16, 128>}, {transform_indices = @transform_4, window_bounds = array<i64: 1, 1, 128>}, {transform_indices = @transform_5, window_bounds = array<i64: 1, 1, 128>}, {transform_indices = @transform_6, window_bounds = array<i64: 1, 128, 384>}, {transform_indices = @transform_7, window_bounds = array<i64: 1, 1, 384>}, {transform_indices = @transform_8, window_bounds = array<i64: 1, 128, 128>}, {transform_indices = @transform_9, window_bounds = array<i64: 1, 1, 128>}, {transform_indices = @transform_10, window_bounds = array<i64: 1, 1, 128>}, {transform_indices = @transform_11, window_bounds = array<i64: 1, 1, 128>}, {transform_indices = @transform_12, window_bounds = array<i64: 1, 128, 512>}, {transform_indices = @transform_13, window_bounds = array<i64: 1, 1, 512>}, {transform_indices = @transform_14, window_bounds = array<i64: 1, 512, 128>}, {transform_indices = @transform_15, window_bounds = array<i64: 1, 1, 128>}, {pipeline_mode = #tpu.pipeline_mode<synchronous>, transform_indices = @transform_16, window_bounds = array<i64: 1, 128>}, {pipeline_mode = #tpu.pipeline_mode<synchronous>, transform_indices = @transform_17, window_bounds = array<i64: 1, 128>}, {pipeline_mode = #tpu.pipeline_mode<synchronous>, transform_indices = @transform_18, window_bounds = array<i64: 128, 128>}, {pipeline_mode = #tpu.pipeline_mode<synchronous>, transform_indices = @transform_19, window_bounds = array<i64: 1, 128>}, {transform_indices = @transform_20, window_bounds = array<i64: 2, 16, 128>}]} {
    %c0_i32 = arith.constant 0 : i32
    %0 = arith.cmpi eq, %arg1, %c0_i32 : i32
    %1 = arith.extui %0 : i1 to i32
    %c0_i32_0 = arith.constant 0 : i32
    %2 = arith.cmpi ne, %1, %c0_i32_0 : i32
    scf.if %2 {
      %c0_81 = arith.constant 0 : index
      %c0_82 = arith.constant 0 : index
      %c0_83 = arith.constant 0 : index
      %214 = vector.load %arg2[%c0_81, %c0_82, %c0_83] : memref<2x16x128xf32, #tpu.memory_space<vmem>>, vector<2x16x128xf32>
      %215 = vector.shape_cast %214 : vector<2x16x128xf32> to vector<32x128xf32>
      %216 = arith.truncf %215 : vector<32x128xf32> to vector<32x128xbf16>
      %c0_84 = arith.constant 0 : index
      %c0_85 = arith.constant 0 : index
      %217 = vector.load %arg3[%c0_84, %c0_85] : memref<128x128xbf16, #tpu.memory_space<vmem>>, vector<128x128xbf16>
      %cst_86 = arith.constant dense<0.000000e+00> : vector<32x128xf32>
      %218 = tpu.matmul %216, %217, %cst_86 {dimension_numbers = #tpu.dot_dimension_numbers<[1], [0], [0], [1], [0, 0, 1, 1], [], []>} : vector<32x128xbf16>, vector<128x128xbf16>, vector<32x128xf32> -> vector<32x128xf32>
      %c0_87 = arith.constant 0 : index
      %c0_88 = arith.constant 0 : index
      %219 = vector.load %arg4[%c0_87, %c0_88] : memref<1x128xf32, #tpu.memory_space<vmem>>, vector<1x128xf32>
      %220 = vector.broadcast %219 : vector<1x128xf32> to vector<32x128xf32>
      %221 = arith.addf %218, %220 : vector<32x128xf32>
      %222 = vector.shape_cast %221 : vector<32x128xf32> to vector<2x16x128xf32>
      %c0_89 = arith.constant 0 : index
      %c0_90 = arith.constant 0 : index
      %223 = vector.load %arg5[%c0_89, %c0_90] : memref<16x128xf32, #tpu.memory_space<vmem>>, vector<16x128xf32>
      %224 = vector.shape_cast %223 : vector<16x128xf32> to vector<1x16x128xf32>
      %225 = vector.broadcast %224 : vector<1x16x128xf32> to vector<2x16x128xf32>
      %226 = arith.addf %222, %225 : vector<2x16x128xf32>
      %227 = vector.shape_cast %226 : vector<2x16x128xf32> to vector<32x128xf32>
      %c0_91 = arith.constant 0 : index
      %c0_92 = arith.constant 0 : index
      %228 = vector.load %arg23[%c0_91, %c0_92] : memref<32x128xf32, #tpu.memory_space<vmem>>, vector<32x128xf32>
      tpu.vector_store %arg23[%c0_91, %c0_92], %227 {strides = array<i32>} : memref<32x128xf32, #tpu.memory_space<vmem>>, vector<32x128xf32>,
      %229 = tpu.iota {dimensions = array<i32: 0>} : vector<16x16xi32>
      %230 = tpu.iota {dimensions = array<i32: 1>} : vector<16x16xi32>
      %231 = arith.cmpi sle, %230, %229 : vector<16x16xi32>
      %cst_93 = arith.constant 0.000000e+00 : f32
      %cst_94 = arith.constant -1.000000e+30 : f32
      %232 = vector.broadcast %cst_93 : f32 to vector<16x16xf32>
      %233 = vector.broadcast %cst_94 : f32 to vector<16x16xf32>
      %234 = arith.select %231, %232, %233 : vector<16x16xi1>, vector<16x16xf32>
      %c0_95 = arith.constant 0 : index
      %c0_96 = arith.constant 0 : index
      %235 = vector.load %arg24[%c0_95, %c0_96] : memref<16x16xf32, #tpu.memory_space<vmem>>, vector<16x16xf32>
      tpu.vector_store %arg24[%c0_95, %c0_96], %234 {strides = array<i32>} : memref<16x16xf32, #tpu.memory_space<vmem>>, vector<16x16xf32>,
    } else {
    }
    %c0 = arith.constant 0 : index
    %c0_1 = arith.constant 0 : index
    %3 = vector.load %arg23[%c0, %c0_1] : memref<32x128xf32, #tpu.memory_space<vmem>>, vector<32x128xf32>
    %c0_2 = arith.constant 0 : index
    %c0_3 = arith.constant 0 : index
    %4 = vector.load %arg24[%c0_2, %c0_3] : memref<16x16xf32, #tpu.memory_space<vmem>>, vector<16x16xf32>
    %c0_4 = arith.constant 0 : index
    %c0_5 = arith.constant 0 : index
    %c0_6 = arith.constant 0 : index
    %5 = vector.load %arg6[%c0_4, %c0_5, %c0_6] : memref<1x1x128xf32, #tpu.memory_space<vmem>>, vector<1x1x128xf32>
    %6 = vector.shape_cast %5 : vector<1x1x128xf32> to vector<1x128xf32>
    %c0_7 = arith.constant 0 : index
    %c0_8 = arith.constant 0 : index
    %c0_9 = arith.constant 0 : index
    %7 = vector.load %arg7[%c0_7, %c0_8, %c0_9] : memref<1x1x128xf32, #tpu.memory_space<vmem>>, vector<1x1x128xf32>
    %8 = vector.shape_cast %7 : vector<1x1x128xf32> to vector<1x128xf32>
    %cst = arith.constant dense<0.000000e+00> : vector<32xf32>
    %9 = vector.multi_reduction <add>, %3, %cst [1] : vector<32x128xf32> to vector<32xf32>
    %10 = vector.shape_cast %9 : vector<32xf32> to vector<32x1xf32>
    %cst_10 = arith.constant 1.280000e+02 : f32
    %11 = vector.broadcast %cst_10 : f32 to vector<32x1xf32>
    %12 = arith.divf %10, %11 : vector<32x1xf32>
    %13 = vector.broadcast %12 : vector<32x1xf32> to vector<32x128xf32>
    %14 = arith.subf %3, %13 : vector<32x128xf32>
    %15 = arith.mulf %14, %14 : vector<32x128xf32>
    %cst_11 = arith.constant dense<0.000000e+00> : vector<32xf32>
    %16 = vector.multi_reduction <add>, %15, %cst_11 [1] : vector<32x128xf32> to vector<32xf32>
    %17 = vector.shape_cast %16 : vector<32xf32> to vector<32x1xf32>
    %cst_12 = arith.constant 1.280000e+02 : f32
    %18 = vector.broadcast %cst_12 : f32 to vector<32x1xf32>
    %19 = arith.divf %17, %18 : vector<32x1xf32>
    %20 = vector.broadcast %12 : vector<32x1xf32> to vector<32x128xf32>
    %21 = arith.subf %3, %20 : vector<32x128xf32>
    %cst_13 = arith.constant 9.99999974E-6 : f32
    %22 = vector.broadcast %cst_13 : f32 to vector<32x1xf32>
    %23 = arith.addf %19, %22 : vector<32x1xf32>
    %24 = math.rsqrt %23 : vector<32x1xf32>
    %25 = vector.broadcast %24 : vector<32x1xf32> to vector<32x128xf32>
    %26 = arith.mulf %21, %25 : vector<32x128xf32>
    %27 = vector.broadcast %6 : vector<1x128xf32> to vector<32x128xf32>
    %28 = arith.mulf %26, %27 : vector<32x128xf32>
    %29 = vector.broadcast %8 : vector<1x128xf32> to vector<32x128xf32>
    %30 = arith.addf %28, %29 : vector<32x128xf32>
    %31 = arith.truncf %30 : vector<32x128xf32> to vector<32x128xbf16>
    %c0_14 = arith.constant 0 : index
    %c0_15 = arith.constant 0 : index
    %c0_16 = arith.constant 0 : index
    %32 = vector.load %arg8[%c0_14, %c0_15, %c0_16] : memref<1x128x384xbf16, #tpu.memory_space<vmem>>, vector<1x128x384xbf16>
    %33 = vector.shape_cast %32 : vector<1x128x384xbf16> to vector<128x384xbf16>
    %cst_17 = arith.constant dense<0.000000e+00> : vector<32x384xf32>
    %34 = tpu.matmul %31, %33, %cst_17 {dimension_numbers = #tpu.dot_dimension_numbers<[1], [0], [0], [1], [0, 0, 1, 1], [], []>} : vector<32x128xbf16>, vector<128x384xbf16>, vector<32x384xf32> -> vector<32x384xf32>
    %c0_18 = arith.constant 0 : index
    %c0_19 = arith.constant 0 : index
    %c0_20 = arith.constant 0 : index
    %35 = vector.load %arg9[%c0_18, %c0_19, %c0_20] : memref<1x1x384xf32, #tpu.memory_space<vmem>>, vector<1x1x384xf32>
    %36 = vector.shape_cast %35 : vector<1x1x384xf32> to vector<1x384xf32>
    %37 = vector.broadcast %36 : vector<1x384xf32> to vector<32x384xf32>
    %38 = arith.addf %34, %37 : vector<32x384xf32>
    %39 = vector.extract_strided_slice %38 {offsets = [0, 0], sizes = [32, 128], strides = [1, 1]} : vector<32x384xf32> to vector<32x128xf32>
    %cst_21 = arith.constant 0.176776692 : f32
    %40 = vector.broadcast %cst_21 : f32 to vector<32x128xf32>
    %41 = arith.mulf %39, %40 : vector<32x128xf32>
    %42 = arith.truncf %41 : vector<32x128xf32> to vector<32x128xbf16>
    %43 = vector.shape_cast %42 : vector<32x128xbf16> to vector<2x16x128xbf16>
    %44 = vector.extract_strided_slice %38 {offsets = [0, 128], sizes = [32, 128], strides = [1, 1]} : vector<32x384xf32> to vector<32x128xf32>
    %45 = arith.truncf %44 : vector<32x128xf32> to vector<32x128xbf16>
    %46 = vector.shape_cast %45 : vector<32x128xbf16> to vector<2x16x128xbf16>
    %47 = vector.extract_strided_slice %38 {offsets = [0, 256], sizes = [32, 128], strides = [1, 1]} : vector<32x384xf32> to vector<32x128xf32>
    %48 = arith.truncf %47 : vector<32x128xf32> to vector<32x128xbf16>
    %49 = vector.shape_cast %48 : vector<32x128xbf16> to vector<2x16x128xbf16>
    %c0_22 = arith.constant 0 : index
    %c0_23 = arith.constant 0 : index
    %c0_24 = arith.constant 0 : index
    %50 = vector.load %arg10[%c0_22, %c0_23, %c0_24] : memref<1x128x128xbf16, #tpu.memory_space<vmem>>, vector<1x128x128xbf16>
    %51 = vector.shape_cast %50 : vector<1x128x128xbf16> to vector<128x128xbf16>
    %cst_25 = arith.constant 0.000000e+00 : f32
    %52 = vector.broadcast %cst_25 : f32 to vector<32x128xf32>
    %53 = vector.extract_strided_slice %43 {offsets = [0, 0, 0], sizes = [2, 16, 32], strides = [1, 1, 1]} : vector<2x16x128xbf16> to vector<2x16x32xbf16>
    %54 = vector.extract_strided_slice %46 {offsets = [0, 0, 0], sizes = [2, 16, 32], strides = [1, 1, 1]} : vector<2x16x128xbf16> to vector<2x16x32xbf16>
    "tpu.trace_start"() <{level = 10 : i32, message = "bqd,bkd->bqk"}> : () -> ()
    %cst_26 = arith.constant dense<0.000000e+00> : vector<2x16x16xf32>
    %55 = tpu.matmul %53, %54, %cst_26 {dimension_numbers = #tpu.dot_dimension_numbers<[2], [2], [1], [1], [0, 0, 0, 1, 1, 1], [0], [0]>} : vector<2x16x32xbf16>, vector<2x16x32xbf16>, vector<2x16x16xf32> -> vector<2x16x16xf32>
    "tpu.trace_stop"() : () -> ()
    %56 = vector.shape_cast %4 : vector<16x16xf32> to vector<1x16x16xf32>
    %57 = vector.broadcast %56 : vector<1x16x16xf32> to vector<2x16x16xf32>
    %58 = arith.addf %55, %57 : vector<2x16x16xf32>
    %cst_27 = arith.constant dense<0xFF800000> : vector<2x16xf32>
    %59 = vector.multi_reduction <maximumf>, %58, %cst_27 [2] : vector<2x16x16xf32> to vector<2x16xf32>
    %60 = vector.shape_cast %59 : vector<2x16xf32> to vector<2x16x1xf32>
    %61 = vector.broadcast %60 : vector<2x16x1xf32> to vector<2x16x16xf32>
    %62 = arith.subf %58, %61 : vector<2x16x16xf32>
    %63 = math.exp %62 : vector<2x16x16xf32>
    %cst_28 = arith.constant dense<0.000000e+00> : vector<2x16xf32>
    %64 = vector.multi_reduction <add>, %63, %cst_28 [2] : vector<2x16x16xf32> to vector<2x16xf32>
    %65 = vector.shape_cast %64 : vector<2x16xf32> to vector<2x16x1xf32>
    %66 = tpu.reciprocal %65 {approx = true} : vector<2x16x1xf32> -> vector<2x16x1xf32>
    %67 = vector.broadcast %66 : vector<2x16x1xf32> to vector<2x16x16xf32>
    %68 = arith.mulf %63, %67 : vector<2x16x16xf32>
    %69 = arith.truncf %68 : vector<2x16x16xf32> to vector<2x16x16xbf16>
    %70 = vector.extract_strided_slice %49 {offsets = [0, 0, 0], sizes = [2, 16, 32], strides = [1, 1, 1]} : vector<2x16x128xbf16> to vector<2x16x32xbf16>
    "tpu.trace_start"() <{level = 10 : i32, message = "bqk,bkd->bqd"}> : () -> ()
    %cst_29 = arith.constant dense<0.000000e+00> : vector<2x16x32xf32>
    %71 = tpu.matmul %69, %70, %cst_29 {dimension_numbers = #tpu.dot_dimension_numbers<[2], [1], [1], [2], [0, 0, 0, 1, 1, 2], [0], [0]>} : vector<2x16x16xbf16>, vector<2x16x32xbf16>, vector<2x16x32xf32> -> vector<2x16x32xf32>
    "tpu.trace_stop"() : () -> ()
    %72 = vector.shape_cast %71 : vector<2x16x32xf32> to vector<32x32xf32>
    %73 = arith.truncf %72 : vector<32x32xf32> to vector<32x32xbf16>
    %74 = vector.extract_strided_slice %51 {offsets = [0, 0], sizes = [32, 128], strides = [1, 1]} : vector<128x128xbf16> to vector<32x128xbf16>
    %cst_30 = arith.constant dense<0.000000e+00> : vector<32x128xf32>
    %75 = tpu.matmul %73, %74, %cst_30 {dimension_numbers = #tpu.dot_dimension_numbers<[1], [0], [0], [1], [0, 0, 1, 1], [], []>} : vector<32x32xbf16>, vector<32x128xbf16>, vector<32x128xf32> -> vector<32x128xf32>
    %76 = arith.addf %52, %75 : vector<32x128xf32>
    %77 = vector.extract_strided_slice %43 {offsets = [0, 0, 32], sizes = [2, 16, 32], strides = [1, 1, 1]} : vector<2x16x128xbf16> to vector<2x16x32xbf16>
    %78 = vector.extract_strided_slice %46 {offsets = [0, 0, 32], sizes = [2, 16, 32], strides = [1, 1, 1]} : vector<2x16x128xbf16> to vector<2x16x32xbf16>
    "tpu.trace_start"() <{level = 10 : i32, message = "bqd,bkd->bqk"}> : () -> ()
    %cst_31 = arith.constant dense<0.000000e+00> : vector<2x16x16xf32>
    %79 = tpu.matmul %77, %78, %cst_31 {dimension_numbers = #tpu.dot_dimension_numbers<[2], [2], [1], [1], [0, 0, 0, 1, 1, 1], [0], [0]>} : vector<2x16x32xbf16>, vector<2x16x32xbf16>, vector<2x16x16xf32> -> vector<2x16x16xf32>
    "tpu.trace_stop"() : () -> ()
    %80 = vector.shape_cast %4 : vector<16x16xf32> to vector<1x16x16xf32>
    %81 = vector.broadcast %80 : vector<1x16x16xf32> to vector<2x16x16xf32>
    %82 = arith.addf %79, %81 : vector<2x16x16xf32>
    %cst_32 = arith.constant dense<0xFF800000> : vector<2x16xf32>
    %83 = vector.multi_reduction <maximumf>, %82, %cst_32 [2] : vector<2x16x16xf32> to vector<2x16xf32>
    %84 = vector.shape_cast %83 : vector<2x16xf32> to vector<2x16x1xf32>
    %85 = vector.broadcast %84 : vector<2x16x1xf32> to vector<2x16x16xf32>
    %86 = arith.subf %82, %85 : vector<2x16x16xf32>
    %87 = math.exp %86 : vector<2x16x16xf32>
    %cst_33 = arith.constant dense<0.000000e+00> : vector<2x16xf32>
    %88 = vector.multi_reduction <add>, %87, %cst_33 [2] : vector<2x16x16xf32> to vector<2x16xf32>
    %89 = vector.shape_cast %88 : vector<2x16xf32> to vector<2x16x1xf32>
    %90 = tpu.reciprocal %89 {approx = true} : vector<2x16x1xf32> -> vector<2x16x1xf32>
    %91 = vector.broadcast %90 : vector<2x16x1xf32> to vector<2x16x16xf32>
    %92 = arith.mulf %87, %91 : vector<2x16x16xf32>
    %93 = arith.truncf %92 : vector<2x16x16xf32> to vector<2x16x16xbf16>
    %94 = vector.extract_strided_slice %49 {offsets = [0, 0, 32], sizes = [2, 16, 32], strides = [1, 1, 1]} : vector<2x16x128xbf16> to vector<2x16x32xbf16>
    "tpu.trace_start"() <{level = 10 : i32, message = "bqk,bkd->bqd"}> : () -> ()
    %cst_34 = arith.constant dense<0.000000e+00> : vector<2x16x32xf32>
    %95 = tpu.matmul %93, %94, %cst_34 {dimension_numbers = #tpu.dot_dimension_numbers<[2], [1], [1], [2], [0, 0, 0, 1, 1, 2], [0], [0]>} : vector<2x16x16xbf16>, vector<2x16x32xbf16>, vector<2x16x32xf32> -> vector<2x16x32xf32>
    "tpu.trace_stop"() : () -> ()
    %96 = vector.shape_cast %95 : vector<2x16x32xf32> to vector<32x32xf32>
    %97 = arith.truncf %96 : vector<32x32xf32> to vector<32x32xbf16>
    %98 = vector.extract_strided_slice %51 {offsets = [32, 0], sizes = [32, 128], strides = [1, 1]} : vector<128x128xbf16> to vector<32x128xbf16>
    %cst_35 = arith.constant dense<0.000000e+00> : vector<32x128xf32>
    %99 = tpu.matmul %97, %98, %cst_35 {dimension_numbers = #tpu.dot_dimension_numbers<[1], [0], [0], [1], [0, 0, 1, 1], [], []>} : vector<32x32xbf16>, vector<32x128xbf16>, vector<32x128xf32> -> vector<32x128xf32>
    %100 = arith.addf %76, %99 : vector<32x128xf32>
    %101 = vector.extract_strided_slice %43 {offsets = [0, 0, 64], sizes = [2, 16, 32], strides = [1, 1, 1]} : vector<2x16x128xbf16> to vector<2x16x32xbf16>
    %102 = vector.extract_strided_slice %46 {offsets = [0, 0, 64], sizes = [2, 16, 32], strides = [1, 1, 1]} : vector<2x16x128xbf16> to vector<2x16x32xbf16>
    "tpu.trace_start"() <{level = 10 : i32, message = "bqd,bkd->bqk"}> : () -> ()
    %cst_36 = arith.constant dense<0.000000e+00> : vector<2x16x16xf32>
    %103 = tpu.matmul %101, %102, %cst_36 {dimension_numbers = #tpu.dot_dimension_numbers<[2], [2], [1], [1], [0, 0, 0, 1, 1, 1], [0], [0]>} : vector<2x16x32xbf16>, vector<2x16x32xbf16>, vector<2x16x16xf32> -> vector<2x16x16xf32>
    "tpu.trace_stop"() : () -> ()
    %104 = vector.shape_cast %4 : vector<16x16xf32> to vector<1x16x16xf32>
    %105 = vector.broadcast %104 : vector<1x16x16xf32> to vector<2x16x16xf32>
    %106 = arith.addf %103, %105 : vector<2x16x16xf32>
    %cst_37 = arith.constant dense<0xFF800000> : vector<2x16xf32>
    %107 = vector.multi_reduction <maximumf>, %106, %cst_37 [2] : vector<2x16x16xf32> to vector<2x16xf32>
    %108 = vector.shape_cast %107 : vector<2x16xf32> to vector<2x16x1xf32>
    %109 = vector.broadcast %108 : vector<2x16x1xf32> to vector<2x16x16xf32>
    %110 = arith.subf %106, %109 : vector<2x16x16xf32>
    %111 = math.exp %110 : vector<2x16x16xf32>
    %cst_38 = arith.constant dense<0.000000e+00> : vector<2x16xf32>
    %112 = vector.multi_reduction <add>, %111, %cst_38 [2] : vector<2x16x16xf32> to vector<2x16xf32>
    %113 = vector.shape_cast %112 : vector<2x16xf32> to vector<2x16x1xf32>
    %114 = tpu.reciprocal %113 {approx = true} : vector<2x16x1xf32> -> vector<2x16x1xf32>
    %115 = vector.broadcast %114 : vector<2x16x1xf32> to vector<2x16x16xf32>
    %116 = arith.mulf %111, %115 : vector<2x16x16xf32>
    %117 = arith.truncf %116 : vector<2x16x16xf32> to vector<2x16x16xbf16>
    %118 = vector.extract_strided_slice %49 {offsets = [0, 0, 64], sizes = [2, 16, 32], strides = [1, 1, 1]} : vector<2x16x128xbf16> to vector<2x16x32xbf16>
    "tpu.trace_start"() <{level = 10 : i32, message = "bqk,bkd->bqd"}> : () -> ()
    %cst_39 = arith.constant dense<0.000000e+00> : vector<2x16x32xf32>
    %119 = tpu.matmul %117, %118, %cst_39 {dimension_numbers = #tpu.dot_dimension_numbers<[2], [1], [1], [2], [0, 0, 0, 1, 1, 2], [0], [0]>} : vector<2x16x16xbf16>, vector<2x16x32xbf16>, vector<2x16x32xf32> -> vector<2x16x32xf32>
    "tpu.trace_stop"() : () -> ()
    %120 = vector.shape_cast %119 : vector<2x16x32xf32> to vector<32x32xf32>
    %121 = arith.truncf %120 : vector<32x32xf32> to vector<32x32xbf16>
    %122 = vector.extract_strided_slice %51 {offsets = [64, 0], sizes = [32, 128], strides = [1, 1]} : vector<128x128xbf16> to vector<32x128xbf16>
    %cst_40 = arith.constant dense<0.000000e+00> : vector<32x128xf32>
    %123 = tpu.matmul %121, %122, %cst_40 {dimension_numbers = #tpu.dot_dimension_numbers<[1], [0], [0], [1], [0, 0, 1, 1], [], []>} : vector<32x32xbf16>, vector<32x128xbf16>, vector<32x128xf32> -> vector<32x128xf32>
    %124 = arith.addf %100, %123 : vector<32x128xf32>
    %125 = vector.extract_strided_slice %43 {offsets = [0, 0, 96], sizes = [2, 16, 32], strides = [1, 1, 1]} : vector<2x16x128xbf16> to vector<2x16x32xbf16>
    %126 = vector.extract_strided_slice %46 {offsets = [0, 0, 96], sizes = [2, 16, 32], strides = [1, 1, 1]} : vector<2x16x128xbf16> to vector<2x16x32xbf16>
    "tpu.trace_start"() <{level = 10 : i32, message = "bqd,bkd->bqk"}> : () -> ()
    %cst_41 = arith.constant dense<0.000000e+00> : vector<2x16x16xf32>
    %127 = tpu.matmul %125, %126, %cst_41 {dimension_numbers = #tpu.dot_dimension_numbers<[2], [2], [1], [1], [0, 0, 0, 1, 1, 1], [0], [0]>} : vector<2x16x32xbf16>, vector<2x16x32xbf16>, vector<2x16x16xf32> -> vector<2x16x16xf32>
    "tpu.trace_stop"() : () -> ()
    %128 = vector.shape_cast %4 : vector<16x16xf32> to vector<1x16x16xf32>
    %129 = vector.broadcast %128 : vector<1x16x16xf32> to vector<2x16x16xf32>
    %130 = arith.addf %127, %129 : vector<2x16x16xf32>
    %cst_42 = arith.constant dense<0xFF800000> : vector<2x16xf32>
    %131 = vector.multi_reduction <maximumf>, %130, %cst_42 [2] : vector<2x16x16xf32> to vector<2x16xf32>
    %132 = vector.shape_cast %131 : vector<2x16xf32> to vector<2x16x1xf32>
    %133 = vector.broadcast %132 : vector<2x16x1xf32> to vector<2x16x16xf32>
    %134 = arith.subf %130, %133 : vector<2x16x16xf32>
    %135 = math.exp %134 : vector<2x16x16xf32>
    %cst_43 = arith.constant dense<0.000000e+00> : vector<2x16xf32>
    %136 = vector.multi_reduction <add>, %135, %cst_43 [2] : vector<2x16x16xf32> to vector<2x16xf32>
    %137 = vector.shape_cast %136 : vector<2x16xf32> to vector<2x16x1xf32>
    %138 = tpu.reciprocal %137 {approx = true} : vector<2x16x1xf32> -> vector<2x16x1xf32>
    %139 = vector.broadcast %138 : vector<2x16x1xf32> to vector<2x16x16xf32>
    %140 = arith.mulf %135, %139 : vector<2x16x16xf32>
    %141 = arith.truncf %140 : vector<2x16x16xf32> to vector<2x16x16xbf16>
    %142 = vector.extract_strided_slice %49 {offsets = [0, 0, 96], sizes = [2, 16, 32], strides = [1, 1, 1]} : vector<2x16x128xbf16> to vector<2x16x32xbf16>
    "tpu.trace_start"() <{level = 10 : i32, message = "bqk,bkd->bqd"}> : () -> ()
    %cst_44 = arith.constant dense<0.000000e+00> : vector<2x16x32xf32>
    %143 = tpu.matmul %141, %142, %cst_44 {dimension_numbers = #tpu.dot_dimension_numbers<[2], [1], [1], [2], [0, 0, 0, 1, 1, 2], [0], [0]>} : vector<2x16x16xbf16>, vector<2x16x32xbf16>, vector<2x16x32xf32> -> vector<2x16x32xf32>
    "tpu.trace_stop"() : () -> ()
    %144 = vector.shape_cast %143 : vector<2x16x32xf32> to vector<32x32xf32>
    %145 = arith.truncf %144 : vector<32x32xf32> to vector<32x32xbf16>
    %146 = vector.extract_strided_slice %51 {offsets = [96, 0], sizes = [32, 128], strides = [1, 1]} : vector<128x128xbf16> to vector<32x128xbf16>
    %cst_45 = arith.constant dense<0.000000e+00> : vector<32x128xf32>
    %147 = tpu.matmul %145, %146, %cst_45 {dimension_numbers = #tpu.dot_dimension_numbers<[1], [0], [0], [1], [0, 0, 1, 1], [], []>} : vector<32x32xbf16>, vector<32x128xbf16>, vector<32x128xf32> -> vector<32x128xf32>
    %148 = arith.addf %124, %147 : vector<32x128xf32>
    %149 = arith.addf %3, %148 : vector<32x128xf32>
    %c0_46 = arith.constant 0 : index
    %c0_47 = arith.constant 0 : index
    %c0_48 = arith.constant 0 : index
    %150 = vector.load %arg11[%c0_46, %c0_47, %c0_48] : memref<1x1x128xf32, #tpu.memory_space<vmem>>, vector<1x1x128xf32>
    %151 = vector.shape_cast %150 : vector<1x1x128xf32> to vector<1x128xf32>
    %152 = vector.broadcast %151 : vector<1x128xf32> to vector<32x128xf32>
    %153 = arith.addf %149, %152 : vector<32x128xf32>
    %c0_49 = arith.constant 0 : index
    %c0_50 = arith.constant 0 : index
    %c0_51 = arith.constant 0 : index
    %154 = vector.load %arg12[%c0_49, %c0_50, %c0_51] : memref<1x1x128xf32, #tpu.memory_space<vmem>>, vector<1x1x128xf32>
    %155 = vector.shape_cast %154 : vector<1x1x128xf32> to vector<1x128xf32>
    %c0_52 = arith.constant 0 : index
    %c0_53 = arith.constant 0 : index
    %c0_54 = arith.constant 0 : index
    %156 = vector.load %arg13[%c0_52, %c0_53, %c0_54] : memref<1x1x128xf32, #tpu.memory_space<vmem>>, vector<1x1x128xf32>
    %157 = vector.shape_cast %156 : vector<1x1x128xf32> to vector<1x128xf32>
    %cst_55 = arith.constant dense<0.000000e+00> : vector<32xf32>
    %158 = vector.multi_reduction <add>, %153, %cst_55 [1] : vector<32x128xf32> to vector<32xf32>
    %159 = vector.shape_cast %158 : vector<32xf32> to vector<32x1xf32>
    %cst_56 = arith.constant 1.280000e+02 : f32
    %160 = vector.broadcast %cst_56 : f32 to vector<32x1xf32>
    %161 = arith.divf %159, %160 : vector<32x1xf32>
    %162 = vector.broadcast %161 : vector<32x1xf32> to vector<32x128xf32>
    %163 = arith.subf %153, %162 : vector<32x128xf32>
    %164 = arith.mulf %163, %163 : vector<32x128xf32>
    %cst_57 = arith.constant dense<0.000000e+00> : vector<32xf32>
    %165 = vector.multi_reduction <add>, %164, %cst_57 [1] : vector<32x128xf32> to vector<32xf32>
    %166 = vector.shape_cast %165 : vector<32xf32> to vector<32x1xf32>
    %cst_58 = arith.constant 1.280000e+02 : f32
    %167 = vector.broadcast %cst_58 : f32 to vector<32x1xf32>
    %168 = arith.divf %166, %167 : vector<32x1xf32>
    %169 = vector.broadcast %161 : vector<32x1xf32> to vector<32x128xf32>
    %170 = arith.subf %153, %169 : vector<32x128xf32>
    %cst_59 = arith.constant 9.99999974E-6 : f32
    %171 = vector.broadcast %cst_59 : f32 to vector<32x1xf32>
    %172 = arith.addf %168, %171 : vector<32x1xf32>
    %173 = math.rsqrt %172 : vector<32x1xf32>
    %174 = vector.broadcast %173 : vector<32x1xf32> to vector<32x128xf32>
    %175 = arith.mulf %170, %174 : vector<32x128xf32>
    %176 = vector.broadcast %155 : vector<1x128xf32> to vector<32x128xf32>
    %177 = arith.mulf %175, %176 : vector<32x128xf32>
    %178 = vector.broadcast %157 : vector<1x128xf32> to vector<32x128xf32>
    %179 = arith.addf %177, %178 : vector<32x128xf32>
    %180 = arith.truncf %179 : vector<32x128xf32> to vector<32x128xbf16>
    %c0_60 = arith.constant 0 : index
    %c0_61 = arith.constant 0 : index
    %c0_62 = arith.constant 0 : index
    %181 = vector.load %arg14[%c0_60, %c0_61, %c0_62] : memref<1x128x512xbf16, #tpu.memory_space<vmem>>, vector<1x128x512xbf16>
    %182 = vector.shape_cast %181 : vector<1x128x512xbf16> to vector<128x512xbf16>
    %cst_63 = arith.constant dense<0.000000e+00> : vector<32x512xf32>
    %183 = tpu.matmul %180, %182, %cst_63 {dimension_numbers = #tpu.dot_dimension_numbers<[1], [0], [0], [1], [0, 0, 1, 1], [], []>} : vector<32x128xbf16>, vector<128x512xbf16>, vector<32x512xf32> -> vector<32x512xf32>
    %c0_64 = arith.constant 0 : index
    %c0_65 = arith.constant 0 : index
    %c0_66 = arith.constant 0 : index
    %184 = vector.load %arg15[%c0_64, %c0_65, %c0_66] : memref<1x1x512xf32, #tpu.memory_space<vmem>>, vector<1x1x512xf32>
    %185 = vector.shape_cast %184 : vector<1x1x512xf32> to vector<1x512xf32>
    %186 = vector.broadcast %185 : vector<1x512xf32> to vector<32x512xf32>
    %187 = arith.addf %183, %186 : vector<32x512xf32>
    %cst_67 = arith.constant 5.000000e-01 : f32
    %188 = vector.broadcast %cst_67 : f32 to vector<32x512xf32>
    %189 = arith.mulf %188, %187 : vector<32x512xf32>
    %cst_68 = arith.constant 4.471500e-02 : f32
    %190 = vector.broadcast %cst_68 : f32 to vector<32x512xf32>
    %191 = arith.mulf %190, %187 : vector<32x512xf32>
    %192 = arith.mulf %191, %187 : vector<32x512xf32>
    %193 = arith.mulf %192, %187 : vector<32x512xf32>
    %194 = arith.addf %187, %193 : vector<32x512xf32>
    %cst_69 = arith.constant 0.797884583 : f32
    %195 = vector.broadcast %cst_69 : f32 to vector<32x512xf32>
    %196 = arith.mulf %195, %194 : vector<32x512xf32>
    %197 = math.tanh %196 : vector<32x512xf32>
    %cst_70 = arith.constant 1.000000e+00 : f32
    %198 = vector.broadcast %cst_70 : f32 to vector<32x512xf32>
    %199 = arith.addf %198, %197 : vector<32x512xf32>
    %200 = arith.mulf %189, %199 : vector<32x512xf32>
    %201 = arith.truncf %200 : vector<32x512xf32> to vector<32x512xbf16>
    %c0_71 = arith.constant 0 : index
    %c0_72 = arith.constant 0 : index
    %c0_73 = arith.constant 0 : index
    %202 = vector.load %arg16[%c0_71, %c0_72, %c0_73] : memref<1x512x128xbf16, #tpu.memory_space<vmem>>, vector<1x512x128xbf16>
    %203 = vector.shape_cast %202 : vector<1x512x128xbf16> to vector<512x128xbf16>
    %cst_74 = arith.constant dense<0.000000e+00> : vector<32x128xf32>
    %204 = tpu.matmul %201, %203, %cst_74 {dimension_numbers = #tpu.dot_dimension_numbers<[1], [0], [0], [1], [0, 0, 1, 1], [], []>} : vector<32x512xbf16>, vector<512x128xbf16>, vector<32x128xf32> -> vector<32x128xf32>
    %c0_75 = arith.constant 0 : index
    %c0_76 = arith.constant 0 : index
    %c0_77 = arith.constant 0 : index
    %205 = vector.load %arg17[%c0_75, %c0_76, %c0_77] : memref<1x1x128xf32, #tpu.memory_space<vmem>>, vector<1x1x128xf32>
    %206 = vector.shape_cast %205 : vector<1x1x128xf32> to vector<1x128xf32>
    %207 = vector.broadcast %206 : vector<1x128xf32> to vector<32x128xf32>
    %208 = arith.addf %204, %207 : vector<32x128xf32>
    %209 = arith.addf %153, %208 : vector<32x128xf32>
    %c0_78 = arith.constant 0 : index
    %c0_79 = arith.constant 0 : index
    %210 = vector.load %arg23[%c0_78, %c0_79] : memref<32x128xf32, #tpu.memory_space<vmem>>, vector<32x128xf32>
    tpu.vector_store %arg23[%c0_78, %c0_79], %209 {strides = array<i32>} : memref<32x128xf32, #tpu.memory_space<vmem>>, vector<32x128xf32>,
    %c1_i32 = arith.constant 1 : i32
    %211 = arith.cmpi eq, %arg1, %c1_i32 : i32
    %212 = arith.extui %211 : i1 to i32
    %c0_i32_80 = arith.constant 0 : i32
    %213 = arith.cmpi ne, %212, %c0_i32_80 : i32
    scf.if %213 {
      %c0_81 = arith.constant 0 : index
      %c0_82 = arith.constant 0 : index
      %214 = vector.load %arg18[%c0_81, %c0_82] : memref<1x128xf32, #tpu.memory_space<vmem>>, vector<1x128xf32>
      %c0_83 = arith.constant 0 : index
      %c0_84 = arith.constant 0 : index
      %215 = vector.load %arg19[%c0_83, %c0_84] : memref<1x128xf32, #tpu.memory_space<vmem>>, vector<1x128xf32>
      %cst_85 = arith.constant dense<0.000000e+00> : vector<32xf32>
      %216 = vector.multi_reduction <add>, %209, %cst_85 [1] : vector<32x128xf32> to vector<32xf32>
      %217 = vector.shape_cast %216 : vector<32xf32> to vector<32x1xf32>
      %cst_86 = arith.constant 1.280000e+02 : f32
      %218 = vector.broadcast %cst_86 : f32 to vector<32x1xf32>
      %219 = arith.divf %217, %218 : vector<32x1xf32>
      %220 = vector.broadcast %219 : vector<32x1xf32> to vector<32x128xf32>
      %221 = arith.subf %209, %220 : vector<32x128xf32>
      %222 = arith.mulf %221, %221 : vector<32x128xf32>
      %cst_87 = arith.constant dense<0.000000e+00> : vector<32xf32>
      %223 = vector.multi_reduction <add>, %222, %cst_87 [1] : vector<32x128xf32> to vector<32xf32>
      %224 = vector.shape_cast %223 : vector<32xf32> to vector<32x1xf32>
      %cst_88 = arith.constant 1.280000e+02 : f32
      %225 = vector.broadcast %cst_88 : f32 to vector<32x1xf32>
      %226 = arith.divf %224, %225 : vector<32x1xf32>
      %227 = vector.broadcast %219 : vector<32x1xf32> to vector<32x128xf32>
      %228 = arith.subf %209, %227 : vector<32x128xf32>
      %cst_89 = arith.constant 9.99999974E-6 : f32
      %229 = vector.broadcast %cst_89 : f32 to vector<32x1xf32>
      %230 = arith.addf %226, %229 : vector<32x1xf32>
      %231 = math.rsqrt %230 : vector<32x1xf32>
      %232 = vector.broadcast %231 : vector<32x1xf32> to vector<32x128xf32>
      %233 = arith.mulf %228, %232 : vector<32x128xf32>
      %234 = vector.broadcast %214 : vector<1x128xf32> to vector<32x128xf32>
      %235 = arith.mulf %233, %234 : vector<32x128xf32>
      %236 = vector.broadcast %215 : vector<1x128xf32> to vector<32x128xf32>
      %237 = arith.addf %235, %236 : vector<32x128xf32>
      %238 = arith.truncf %237 : vector<32x128xf32> to vector<32x128xbf16>
      %c0_90 = arith.constant 0 : index
      %c0_91 = arith.constant 0 : index
      %239 = vector.load %arg20[%c0_90, %c0_91] : memref<128x128xbf16, #tpu.memory_space<vmem>>, vector<128x128xbf16>
      %cst_92 = arith.constant dense<0.000000e+00> : vector<32x128xf32>
      %240 = tpu.matmul %238, %239, %cst_92 {dimension_numbers = #tpu.dot_dimension_numbers<[1], [0], [0], [1], [0, 0, 1, 1], [], []>} : vector<32x128xbf16>, vector<128x128xbf16>, vector<32x128xf32> -> vector<32x128xf32>
      %c0_93 = arith.constant 0 : index
      %c0_94 = arith.constant 0 : index
      %241 = vector.load %arg21[%c0_93, %c0_94] : memref<1x128xf32, #tpu.memory_space<vmem>>, vector<1x128xf32>
      %242 = vector.broadcast %241 : vector<1x128xf32> to vector<32x128xf32>
      %243 = arith.addf %240, %242 : vector<32x128xf32>
      %244 = vector.shape_cast %243 : vector<32x128xf32> to vector<2x16x128xf32>
      %c0_95 = arith.constant 0 : index
      %c0_96 = arith.constant 0 : index
      %c0_97 = arith.constant 0 : index
      %245 = vector.load %arg22[%c0_95, %c0_96, %c0_97] : memref<2x16x128xf32, #tpu.memory_space<vmem>>, vector<2x16x128xf32>
      tpu.vector_store %arg22[%c0_95, %c0_96, %c0_97], %244 {strides = array<i32>} : memref<2x16x128xf32, #tpu.memory_space<vmem>>, vector<2x16x128xf32>,
    } else {
    }
    return
  }
  func.func @transform_0(%arg0: i32, %arg1: i32) -> (i32, i32, i32) {
    %c0_i32 = arith.constant 0 : i32
    %c0_i32_0 = arith.constant 0 : i32
    %c0_i32_1 = arith.constant 0 : i32
    return %arg0, %c0_i32, %c0_i32_0 : i32, i32, i32
  }
  func.func @transform_1(%arg0: i32, %arg1: i32) -> (i32, i32) {
    %c0_i32 = arith.constant 0 : i32
    %c0_i32_0 = arith.constant 0 : i32
    %c0_i32_1 = arith.constant 0 : i32
    return %c0_i32, %c0_i32_0 : i32, i32
  }
  func.func @transform_2(%arg0: i32, %arg1: i32) -> (i32, i32) {
    %c0_i32 = arith.constant 0 : i32
    %c0_i32_0 = arith.constant 0 : i32
    %c0_i32_1 = arith.constant 0 : i32
    return %c0_i32, %c0_i32_0 : i32, i32
  }
  func.func @transform_3(%arg0: i32, %arg1: i32) -> (i32, i32) {
    %c0_i32 = arith.constant 0 : i32
    %c0_i32_0 = arith.constant 0 : i32
    %c0_i32_1 = arith.constant 0 : i32
    return %c0_i32, %c0_i32_0 : i32, i32
  }
  func.func @transform_4(%arg0: i32, %arg1: i32) -> (i32, i32, i32) {
    %c0_i32 = arith.constant 0 : i32
    %c0_i32_0 = arith.constant 0 : i32
    %c0_i32_1 = arith.constant 0 : i32
    return %arg1, %c0_i32, %c0_i32_0 : i32, i32, i32
  }
  func.func @transform_5(%arg0: i32, %arg1: i32) -> (i32, i32, i32) {
    %c0_i32 = arith.constant 0 : i32
    %c0_i32_0 = arith.constant 0 : i32
    %c0_i32_1 = arith.constant 0 : i32
    return %arg1, %c0_i32, %c0_i32_0 : i32, i32, i32
  }
  func.func @transform_6(%arg0: i32, %arg1: i32) -> (i32, i32, i32) {
    %c0_i32 = arith.constant 0 : i32
    %c0_i32_0 = arith.constant 0 : i32
    %c0_i32_1 = arith.constant 0 : i32
    return %arg1, %c0_i32, %c0_i32_0 : i32, i32, i32
  }
  func.func @transform_7(%arg0: i32, %arg1: i32) -> (i32, i32, i32) {
    %c0_i32 = arith.constant 0 : i32
    %c0_i32_0 = arith.constant 0 : i32
    %c0_i32_1 = arith.constant 0 : i32
    return %arg1, %c0_i32, %c0_i32_0 : i32, i32, i32
  }
  func.func @transform_8(%arg0: i32, %arg1: i32) -> (i32, i32, i32) {
    %c0_i32 = arith.constant 0 : i32
    %c0_i32_0 = arith.constant 0 : i32
    %c0_i32_1 = arith.constant 0 : i32
    return %arg1, %c0_i32, %c0_i32_0 : i32, i32, i32
  }
  func.func @transform_9(%arg0: i32, %arg1: i32) -> (i32, i32, i32) {
    %c0_i32 = arith.constant 0 : i32
    %c0_i32_0 = arith.constant 0 : i32
    %c0_i32_1 = arith.constant 0 : i32
    return %arg1, %c0_i32, %c0_i32_0 : i32, i32, i32
  }
  func.func @transform_10(%arg0: i32, %arg1: i32) -> (i32, i32, i32) {
    %c0_i32 = arith.constant 0 : i32
    %c0_i32_0 = arith.constant 0 : i32
    %c0_i32_1 = arith.constant 0 : i32
    return %arg1, %c0_i32, %c0_i32_0 : i32, i32, i32
  }
  func.func @transform_11(%arg0: i32, %arg1: i32) -> (i32, i32, i32) {
    %c0_i32 = arith.constant 0 : i32
    %c0_i32_0 = arith.constant 0 : i32
    %c0_i32_1 = arith.constant 0 : i32
    return %arg1, %c0_i32, %c0_i32_0 : i32, i32, i32
  }
  func.func @transform_12(%arg0: i32, %arg1: i32) -> (i32, i32, i32) {
    %c0_i32 = arith.constant 0 : i32
    %c0_i32_0 = arith.constant 0 : i32
    %c0_i32_1 = arith.constant 0 : i32
    return %arg1, %c0_i32, %c0_i32_0 : i32, i32, i32
  }
  func.func @transform_13(%arg0: i32, %arg1: i32) -> (i32, i32, i32) {
    %c0_i32 = arith.constant 0 : i32
    %c0_i32_0 = arith.constant 0 : i32
    %c0_i32_1 = arith.constant 0 : i32
    return %arg1, %c0_i32, %c0_i32_0 : i32, i32, i32
  }
  func.func @transform_14(%arg0: i32, %arg1: i32) -> (i32, i32, i32) {
    %c0_i32 = arith.constant 0 : i32
    %c0_i32_0 = arith.constant 0 : i32
    %c0_i32_1 = arith.constant 0 : i32
    return %arg1, %c0_i32, %c0_i32_0 : i32, i32, i32
  }
  func.func @transform_15(%arg0: i32, %arg1: i32) -> (i32, i32, i32) {
    %c0_i32 = arith.constant 0 : i32
    %c0_i32_0 = arith.constant 0 : i32
    %c0_i32_1 = arith.constant 0 : i32
    return %arg1, %c0_i32, %c0_i32_0 : i32, i32, i32
  }
  func.func @transform_16(%arg0: i32, %arg1: i32) -> (i32, i32) {
    %c0_i32 = arith.constant 0 : i32
    %c0_i32_0 = arith.constant 0 : i32
    %c0_i32_1 = arith.constant 0 : i32
    return %c0_i32, %c0_i32_0 : i32, i32
  }
  func.func @transform_17(%arg0: i32, %arg1: i32) -> (i32, i32) {
    %c0_i32 = arith.constant 0 : i32
    %c0_i32_0 = arith.constant 0 : i32
    %c0_i32_1 = arith.constant 0 : i32
    return %c0_i32, %c0_i32_0 : i32, i32
  }
  func.func @transform_18(%arg0: i32, %arg1: i32) -> (i32, i32) {
    %c0_i32 = arith.constant 0 : i32
    %c0_i32_0 = arith.constant 0 : i32
    %c0_i32_1 = arith.constant 0 : i32
    return %c0_i32, %c0_i32_0 : i32, i32
  }
  func.func @transform_19(%arg0: i32, %arg1: i32) -> (i32, i32) {
    %c0_i32 = arith.constant 0 : i32
    %c0_i32_0 = arith.constant 0 : i32
    %c0_i32_1 = arith.constant 0 : i32
    return %c0_i32, %c0_i32_0 : i32, i32
  }
  func.func @transform_20(%arg0: i32, %arg1: i32) -> (i32, i32, i32) {
    %c0_i32 = arith.constant 0 : i32
    %c0_i32_0 = arith.constant 0 : i32
    %c0_i32_1 = arith.constant 0 : i32
    return %arg0, %c0_i32, %c0_i32_0 : i32, i32, i32
  }
}

</mosaic_0001>

<llo_original>
// kernel: transformer_for_icd_forward.1
$region0: #{transformer_for_icd_forward.1}
  #allocation0 [shape = 'u32[]', space=smem, size = 0x4, offset = 0x4, fixed_abs, tag = 'smem constant byte address 0x4 - core index']
  #allocation1 [shape = 'u32[144,128]{1,0:T(1,128)}', space=vmem, size = 0x12000, scoped, tag = 'internal scratch']
  #allocation2 [shape = 'f32[32,128]{1,0:T(8,128)}', space=vmem, size = 0x4000, scoped, tag = 'scratch operand']
  #allocation3 [shape = 'f32[16,16]{1,0:T(8,128)}', space=vmem, size = 0x2000, scoped, tag = 'scratch operand']
  %s0 = inlined_call_operand.vmem [shape: f32[2,16,128], index: 0, kind: input, shape index: {}]
  %s1 = inlined_call_operand.vmem [shape: bf16[128,128], index: 1, kind: input, shape index: {}]
  %s2 = inlined_call_operand.vmem [shape: f32[1,128], index: 2, kind: input, shape index: {}]
  %s3 = inlined_call_operand.vmem [shape: f32[16,128], index: 3, kind: input, shape index: {}]
  %s4 = inlined_call_operand.hbm [shape: f32[2,1,128], index: 4, kind: input, shape index: {}]
  %s5 = inlined_call_operand.hbm [shape: f32[2,1,128], index: 5, kind: input, shape index: {}]
  %s6 = inlined_call_operand.hbm [shape: bf16[2,128,384], index: 6, kind: input, shape index: {}]
  %s7 = inlined_call_operand.hbm [shape: f32[2,1,384], index: 7, kind: input, shape index: {}]
  %s8 = inlined_call_operand.vmem [shape: bf16[2,128,128], index: 8, kind: input, shape index: {}]
  %s9 = inlined_call_operand.hbm [shape: f32[2,1,128], index: 9, kind: input, shape index: {}]
  %s10 = inlined_call_operand.hbm [shape: f32[2,1,128], index: 10, kind: input, shape index: {}]
  %s11 = inlined_call_operand.hbm [shape: f32[2,1,128], index: 11, kind: input, shape index: {}]
  %s12 = inlined_call_operand.hbm [shape: bf16[2,128,512], index: 12, kind: input, shape index: {}]
  %s13 = inlined_call_operand.hbm [shape: f32[2,1,512], index: 13, kind: input, shape index: {}]
  %s14 = inlined_call_operand.hbm [shape: bf16[2,512,128], index: 14, kind: input, shape index: {}]
  %s15 = inlined_call_operand.hbm [shape: f32[2,1,128], index: 15, kind: input, shape index: {}]
  %s16 = inlined_call_operand.hbm [shape: f32[1,128], index: 16, kind: input, shape index: {}]
  %s17 = inlined_call_operand.hbm [shape: f32[1,128], index: 17, kind: input, shape index: {}]
  %s18 = inlined_call_operand.hbm [shape: bf16[128,128], index: 18, kind: input, shape index: {}]
  %s19 = inlined_call_operand.hbm [shape: f32[1,128], index: 19, kind: input, shape index: {}]
  %s20 = inlined_call_operand.vmem [shape: f32[2,16,128], index: 20, kind: output, shape index: {}]
  %s21 = sld [smem:[#allocation0]]
  $region181: #{transformer_for_icd_forward.1} parent=0
    _
  %s23 = ssub.s32 1, %s21
  %s24 = scalar_select 0, %s23, %s21
  $region1: #{transformer_for_icd_forward.1} parent=0
    #allocation4 [shape = 'u8[1024]{0}', space=vmem, size = 0x400, scoped, tag = 'input window, operand 4']
    #allocation5 [shape = 's32[2]{0}', space=sflag, size = 0x8, scoped, tag = 'scoped memory for transformer_for_icd_forward.1']
    #allocation6 [shape = 'u8[1024]{0}', space=vmem, size = 0x400, scoped, tag = 'input window, operand 5']
    #allocation7 [shape = 's32[2]{0}', space=sflag, size = 0x8, scoped, tag = 'scoped memory for transformer_for_icd_forward.1']
    #allocation8 [shape = 'u8[196608]{0}', space=vmem, size = 0x30000, scoped, tag = 'input window, operand 6']
    #allocation9 [shape = 'u8[3072]{0}', space=vmem, size = 0xc00, scoped, tag = 'input window, operand 7']
    #allocation10 [shape = 's32[2]{0}', space=sflag, size = 0x8, scoped, tag = 'scoped memory for transformer_for_icd_forward.1']
    #allocation11 [shape = 'u8[1024]{0}', space=vmem, size = 0x400, scoped, tag = 'input window, operand 9']
    #allocation12 [shape = 'u8[1024]{0}', space=vmem, size = 0x400, scoped, tag = 'input window, operand 10']
    #allocation13 [shape = 's32[2]{0}', space=sflag, size = 0x8, scoped, tag = 'scoped memory for transformer_for_icd_forward.1']
    #allocation14 [shape = 'u8[1024]{0}', space=vmem, size = 0x400, scoped, tag = 'input window, operand 11']
    #allocation15 [shape = 'u8[262144]{0}', space=vmem, size = 0x40000, scoped, tag = 'input window, operand 12']
    #allocation16 [shape = 's32[2]{0}', space=sflag, size = 0x8, scoped, tag = 'scoped memory for transformer_for_icd_forward.1']
    #allocation17 [shape = 'u8[4096]{0}', space=vmem, size = 0x1000, scoped, tag = 'input window, operand 13']
    #allocation18 [shape = 'u8[262144]{0}', space=vmem, size = 0x40000, scoped, tag = 'input window, operand 14']
    #allocation19 [shape = 's32[2]{0}', space=sflag, size = 0x8, scoped, tag = 'scoped memory for transformer_for_icd_forward.1']
    #allocation20 [shape = 'u8[1024]{0}', space=vmem, size = 0x400, scoped, tag = 'input window, operand 15']
    #allocation21 [shape = 'u8[512]{0}', space=vmem, size = 0x400, scoped, tag = 'input window, operand 16, single buffered']
    #allocation22 [shape = 's32[1]{0}', space=sflag, size = 0x4, scoped, tag = 'scoped memory for transformer_for_icd_forward.1']
    #allocation23 [shape = 'u8[512]{0}', space=vmem, size = 0x400, scoped, tag = 'input window, operand 17, single buffered']
    #allocation24 [shape = 'u8[32768]{0}', space=vmem, size = 0x8000, scoped, tag = 'input window, operand 18, single buffered']
    #allocation25 [shape = 's32[1]{0}', space=sflag, size = 0x4, scoped, tag = 'scoped memory for transformer_for_icd_forward.1']
    #allocation26 [shape = 'u8[512]{0}', space=vmem, size = 0x400, scoped, tag = 'input window, operand 19, single buffered']
    %25 = vsyncpa [#allocation5], 0
    %s26 = scalar_lea.sflag [#allocation5], 1
    %27 = vsyncpa %s26, 0
    %28 = vsyncpa [#allocation7], 0
    %s29 = scalar_lea.sflag [#allocation7], 1
    %30 = vsyncpa %s29, 0
    %31 = vsyncpa [#allocation10], 0
    %s32 = scalar_lea.sflag [#allocation10], 1
    %33 = vsyncpa %s32, 0
    %34 = vsyncpa [#allocation13], 0
    %s35 = scalar_lea.sflag [#allocation13], 1
    %36 = vsyncpa %s35, 0
    %37 = vsyncpa [#allocation16], 0
    %s38 = scalar_lea.sflag [#allocation16], 1
    %39 = vsyncpa %s38, 0
    %40 = vsyncpa [#allocation19], 0
    %s41 = scalar_lea.sflag [#allocation19], 1
    %42 = vsyncpa %s41, 0
    %43 = vsyncpa [#allocation22], 0
    %44 = vsyncpa [#allocation25], 0
    loop: start=0, step=1, limit=4
    $region2: #{transformer_for_icd_forward.1} parent=1 // loop_pre_header
      _
    $region3: #{transformer_for_icd_forward.1} parent=1 // loop_header
      %s46 = sphi 0, %s50
      %p47 = scmp.ge.s32.totalorder %s46, 4
      %s53 = sphi 0, %s65
      %s54 = sphi 0, %s61
      %s55 = sphi 0, %s53
      %s56 = sphi 0, %s54
      %s57 = sphi 0, %s55
      %s58 = sphi 0, %s56
      %s68 = sphi 0, %s70
      %s71 = sphi 0, %s68
      %s72 = sphi 0, %s71
      %s88 = sphi 0, %s72
      %s92 = sphi 0, %s92
      %s94 = sphi 0, %s92
      %s95 = sphi 0, %s94
      %s109 = sphi 0, %s95
      %s113 = sphi 0, %s113
      %s115 = sphi 0, %s113
      %s116 = sphi 0, %s115
      %s130 = sphi 0, %s116
      %s134 = sphi 0, %s134
      %s136 = sphi 0, %s134
      %s137 = sphi 0, %s136
      %s151 = sphi 0, %s137
      %s157 = sphi 0, %s159
      %s160 = sphi 0, %s157
      %s161 = sphi 0, %s160
      %s177 = sphi 0, %s161
      %s183 = sphi 0, %s185
      %s186 = sphi 0, %s183
      %s187 = sphi 0, %s186
      %s203 = sphi 0, %s187
      %s209 = sphi 0, %s211
      %s212 = sphi 0, %s209
      %s213 = sphi 0, %s212
      %s229 = sphi 0, %s213
      %s235 = sphi 0, %s237
      %s238 = sphi 0, %s235
      %s239 = sphi 0, %s238
      %s255 = sphi 0, %s239
      %s261 = sphi 0, %s263
      %s264 = sphi 0, %s261
      %s265 = sphi 0, %s264
      %s281 = sphi 0, %s265
      %s287 = sphi 0, %s289
      %s290 = sphi 0, %s287
      %s291 = sphi 0, %s290
      %s307 = sphi 0, %s291
      %s313 = sphi 0, %s315
      %s316 = sphi 0, %s313
      %s317 = sphi 0, %s316
      %s333 = sphi 0, %s317
      %s339 = sphi 0, %s341
      %s342 = sphi 0, %s339
      %s343 = sphi 0, %s342
      %s359 = sphi 0, %s343
      %s365 = sphi 0, %s367
      %s368 = sphi 0, %s365
      %s369 = sphi 0, %s368
      %s385 = sphi 0, %s369
      %s391 = sphi 0, %s393
      %s394 = sphi 0, %s391
      %s395 = sphi 0, %s394
      %s411 = sphi 0, %s395
      %s417 = sphi 0, %s419
      %s420 = sphi 0, %s417
      %s421 = sphi 0, %s420
      %s437 = sphi 0, %s421
      %s443 = sphi 0, %s445
      %s446 = sphi 0, %s443
      %s447 = sphi 0, %s446
      %s463 = sphi 0, %s447
      %s467 = sphi 0, %s467
      %s469 = sphi 0, %s467
      %s470 = sphi 0, %s469
      %s484 = sphi 0, %s470
      %s488 = sphi 0, %s488
      %s490 = sphi 0, %s488
      %s491 = sphi 0, %s490
      %s505 = sphi 0, %s491
      %s509 = sphi 0, %s509
      %s511 = sphi 0, %s509
      %s512 = sphi 0, %s511
      %s526 = sphi 0, %s512
      %s530 = sphi 0, %s530
      %s532 = sphi 0, %s530
      %s533 = sphi 0, %s532
      %s547 = sphi 0, %s533
      %s553 = sphi 0, %s555
      %s556 = sphi 0, %s553
      %s557 = sphi 0, %s556
      %s573 = sphi 0, %s557
    $region4: #{transformer_for_icd_forward.1} parent=1 // loop_header_branch
      %49 = sbr.rel (%p47) target = $region8
    $region5: #{transformer_for_icd_forward.1} parent=1 // loop_body
      %s51 = ssub.s32 %s46, 1
      %s52 = ssub.s32 %s46, 2
      %s59 = sadd.s32 1, %s54
      %p60 = scmp.ge.s32.totalorder %s59, 2
      %s61 = scalar_select %p60, 0, %s59
      %s62 = sadd.s32 1, %s53
      %s63 = scalar_select %p60, %s62, %s53
      %p64 = scmp.ge.s32.totalorder %s63, 1
      %s65 = scalar_select %p64, 0, %s63
      %s66 = ssub.s32 %s53, %s65
      %p67 = scmp.eq.s32.totalorder %s66, 0
      %s69 = sadd.s32 %s68, 1
      %s70 = scalar_select %p67, %s68, %s69
      %p73 = pneg %p67
      %p74 = scmp.eq.s32.totalorder %s46, 1
      %p75 = por %p73, %p74
      %p76 = scmp.ne.s32.totalorder %s68, %s71
      %p77 = scmp.eq.s32.totalorder %s46, 0
      %p78 = por %p76, %p77
      %p79 = scmp.ne.s32.totalorder %s68, %s71
      %p80 = scmp.eq.s32.totalorder %s51, 1
      %p81 = por %p79, %p80
      %p82 = scmp.ne.s32.totalorder %s71, %s72
      %p83 = scmp.eq.s32.totalorder %s51, 0
      %p84 = por %p82, %p83
      %p85 = scmp.ne.s32.totalorder %s71, %s72
      %p86 = scmp.eq.s32.totalorder %s52, 1
      %p87 = por %p85, %p86
      %p89 = scmp.ne.s32.totalorder %s72, %s88
      %p90 = scmp.eq.s32.totalorder %s52, 0
      %p91 = por %p89, %p90
      %s93 = sadd.s32 %s92, 1
      %p96 = scmp.eq.s32.totalorder %s46, 1
      %p97 = scmp.ne.s32.totalorder %s92, %s94
      %p98 = scmp.eq.s32.totalorder %s46, 0
      %p99 = por %p97, %p98
      %p100 = scmp.ne.s32.totalorder %s92, %s94
      %p101 = scmp.eq.s32.totalorder %s51, 1
      %p102 = por %p100, %p101
      %p103 = scmp.ne.s32.totalorder %s94, %s95
      %p104 = scmp.eq.s32.totalorder %s51, 0
      %p105 = por %p103, %p104
      %p106 = scmp.ne.s32.totalorder %s94, %s95
      %p107 = scmp.eq.s32.totalorder %s52, 1
      %p108 = por %p106, %p107
      %p110 = scmp.ne.s32.totalorder %s95, %s109
      %p111 = scmp.eq.s32.totalorder %s52, 0
      %p112 = por %p110, %p111
      %s114 = sadd.s32 %s113, 1
      %p117 = scmp.eq.s32.totalorder %s46, 1
      %p118 = scmp.ne.s32.totalorder %s113, %s115
      %p119 = scmp.eq.s32.totalorder %s46, 0
      %p120 = por %p118, %p119
      %p121 = scmp.ne.s32.totalorder %s113, %s115
      %p122 = scmp.eq.s32.totalorder %s51, 1
      %p123 = por %p121, %p122
      %p124 = scmp.ne.s32.totalorder %s115, %s116
      %p125 = scmp.eq.s32.totalorder %s51, 0
      %p126 = por %p124, %p125
      %p127 = scmp.ne.s32.totalorder %s115, %s116
      %p128 = scmp.eq.s32.totalorder %s52, 1
      %p129 = por %p127, %p128
      %p131 = scmp.ne.s32.totalorder %s116, %s130
      %p132 = scmp.eq.s32.totalorder %s52, 0
      %p133 = por %p131, %p132
      %s135 = sadd.s32 %s134, 1
      %p138 = scmp.eq.s32.totalorder %s46, 1
      %p139 = scmp.ne.s32.totalorder %s134, %s136
      %p140 = scmp.eq.s32.totalorder %s46, 0
      %p141 = por %p139, %p140
      %p142 = scmp.ne.s32.totalorder %s134, %s136
      %p143 = scmp.eq.s32.totalorder %s51, 1
      %p144 = por %p142, %p143
      %p145 = scmp.ne.s32.totalorder %s136, %s137
      %p146 = scmp.eq.s32.totalorder %s51, 0
      %p147 = por %p145, %p146
      %p148 = scmp.ne.s32.totalorder %s136, %s137
      %p149 = scmp.eq.s32.totalorder %s52, 1
      %p150 = por %p148, %p149
      %p152 = scmp.ne.s32.totalorder %s137, %s151
      %p153 = scmp.eq.s32.totalorder %s52, 0
      %p154 = por %p152, %p153
      %s155 = ssub.s32 %s54, %s61
      %p156 = scmp.eq.s32.totalorder %s155, 0
      %s158 = sadd.s32 %s157, 1
      %s159 = scalar_select %p156, %s157, %s158
      %p162 = pneg %p156
      %p163 = scmp.eq.s32.totalorder %s46, 1
      %p164 = por %p162, %p163
      %p165 = scmp.ne.s32.totalorder %s157, %s160
      %p166 = scmp.eq.s32.totalorder %s46, 0
      %p167 = por %p165, %p166
      %p168 = scmp.ne.s32.totalorder %s157, %s160
      %p169 = scmp.eq.s32.totalorder %s51, 1
      %p170 = por %p168, %p169
      %p171 = scmp.ne.s32.totalorder %s160, %s161
      %p172 = scmp.eq.s32.totalorder %s51, 0
      %p173 = por %p171, %p172
      %p174 = scmp.ne.s32.totalorder %s160, %s161
      %p175 = scmp.eq.s32.totalorder %s52, 1
      %p176 = por %p174, %p175
      %p178 = scmp.ne.s32.totalorder %s161, %s177
      %p179 = scmp.eq.s32.totalorder %s52, 0
      %p180 = por %p178, %p179
      %s181 = ssub.s32 %s54, %s61
      %p182 = scmp.eq.s32.totalorder %s181, 0
      %s184 = sadd.s32 %s183, 1
      %s185 = scalar_select %p182, %s183, %s184
      %p188 = pneg %p182
      %p189 = scmp.eq.s32.totalorder %s46, 1
      %p190 = por %p188, %p189
      %p191 = scmp.ne.s32.totalorder %s183, %s186
      %p192 = scmp.eq.s32.totalorder %s46, 0
      %p193 = por %p191, %p192
      %p194 = scmp.ne.s32.totalorder %s183, %s186
      %p195 = scmp.eq.s32.totalorder %s51, 1
      %p196 = por %p194, %p195
      %p197 = scmp.ne.s32.totalorder %s186, %s187
      %p198 = scmp.eq.s32.totalorder %s51, 0
      %p199 = por %p197, %p198
      %p200 = scmp.ne.s32.totalorder %s186, %s187
      %p201 = scmp.eq.s32.totalorder %s52, 1
      %p202 = por %p200, %p201
      %p204 = scmp.ne.s32.totalorder %s187, %s203
      %p205 = scmp.eq.s32.totalorder %s52, 0
      %p206 = por %p204, %p205
      %s207 = ssub.s32 %s54, %s61
      %p208 = scmp.eq.s32.totalorder %s207, 0
      %s210 = sadd.s32 %s209, 1
      %s211 = scalar_select %p208, %s209, %s210
      %p214 = pneg %p208
      %p215 = scmp.eq.s32.totalorder %s46, 1
      %p216 = por %p214, %p215
      %p217 = scmp.ne.s32.totalorder %s209, %s212
      %p218 = scmp.eq.s32.totalorder %s46, 0
      %p219 = por %p217, %p218
      %p220 = scmp.ne.s32.totalorder %s209, %s212
      %p221 = scmp.eq.s32.totalorder %s51, 1
      %p222 = por %p220, %p221
      %p223 = scmp.ne.s32.totalorder %s212, %s213
      %p224 = scmp.eq.s32.totalorder %s51, 0
      %p225 = por %p223, %p224
      %p226 = scmp.ne.s32.totalorder %s212, %s213
      %p227 = scmp.eq.s32.totalorder %s52, 1
      %p228 = por %p226, %p227
      %p230 = scmp.ne.s32.totalorder %s213, %s229
      %p231 = scmp.eq.s32.totalorder %s52, 0
      %p232 = por %p230, %p231
      %s233 = ssub.s32 %s54, %s61
      %p234 = scmp.eq.s32.totalorder %s233, 0
      %s236 = sadd.s32 %s235, 1
      %s237 = scalar_select %p234, %s235, %s236
      %p240 = pneg %p234
      %p241 = scmp.eq.s32.totalorder %s46, 1
      %p242 = por %p240, %p241
      %p243 = scmp.ne.s32.totalorder %s235, %s238
      %p244 = scmp.eq.s32.totalorder %s46, 0
      %p245 = por %p243, %p244
      %p246 = scmp.ne.s32.totalorder %s235, %s238
      %p247 = scmp.eq.s32.totalorder %s51, 1
      %p248 = por %p246, %p247
      %p249 = scmp.ne.s32.totalorder %s238, %s239
      %p250 = scmp.eq.s32.totalorder %s51, 0
      %p251 = por %p249, %p250
      %p252 = scmp.ne.s32.totalorder %s238, %s239
      %p253 = scmp.eq.s32.totalorder %s52, 1
      %p254 = por %p252, %p253
      %p256 = scmp.ne.s32.totalorder %s239, %s255
      %p257 = scmp.eq.s32.totalorder %s52, 0
      %p258 = por %p256, %p257
      %s259 = ssub.s32 %s54, %s61
      %p260 = scmp.eq.s32.totalorder %s259, 0
      %s262 = sadd.s32 %s261, 1
      %s263 = scalar_select %p260, %s261, %s262
      %p266 = pneg %p260
      %p267 = scmp.eq.s32.totalorder %s46, 1
      %p268 = por %p266, %p267
      %p269 = scmp.ne.s32.totalorder %s261, %s264
      %p270 = scmp.eq.s32.totalorder %s46, 0
      %p271 = por %p269, %p270
      %p272 = scmp.ne.s32.totalorder %s261, %s264
      %p273 = scmp.eq.s32.totalorder %s51, 1
      %p274 = por %p272, %p273
      %p275 = scmp.ne.s32.totalorder %s264, %s265
      %p276 = scmp.eq.s32.totalorder %s51, 0
      %p277 = por %p275, %p276
      %p278 = scmp.ne.s32.totalorder %s264, %s265
      %p279 = scmp.eq.s32.totalorder %s52, 1
      %p280 = por %p278, %p279
      %p282 = scmp.ne.s32.totalorder %s265, %s281
      %p283 = scmp.eq.s32.totalorder %s52, 0
      %p284 = por %p282, %p283
      %s285 = ssub.s32 %s54, %s61
      %p286 = scmp.eq.s32.totalorder %s285, 0
      %s288 = sadd.s32 %s287, 1
      %s289 = scalar_select %p286, %s287, %s288
      %p292 = pneg %p286
      %p293 = scmp.eq.s32.totalorder %s46, 1
      %p294 = por %p292, %p293
      %p295 = scmp.ne.s32.totalorder %s287, %s290
      %p296 = scmp.eq.s32.totalorder %s46, 0
      %p297 = por %p295, %p296
      %p298 = scmp.ne.s32.totalorder %s287, %s290
      %p299 = scmp.eq.s32.totalorder %s51, 1
      %p300 = por %p298, %p299
      %p301 = scmp.ne.s32.totalorder %s290, %s291
      %p302 = scmp.eq.s32.totalorder %s51, 0
      %p303 = por %p301, %p302
      %p304 = scmp.ne.s32.totalorder %s290, %s291
      %p305 = scmp.eq.s32.totalorder %s52, 1
      %p306 = por %p304, %p305
      %p308 = scmp.ne.s32.totalorder %s291, %s307
      %p309 = scmp.eq.s32.totalorder %s52, 0
      %p310 = por %p308, %p309
      %s311 = ssub.s32 %s54, %s61
      %p312 = scmp.eq.s32.totalorder %s311, 0
      %s314 = sadd.s32 %s313, 1
      %s315 = scalar_select %p312, %s313, %s314
      %p318 = pneg %p312
      %p319 = scmp.eq.s32.totalorder %s46, 1
      %p320 = por %p318, %p319
      %p321 = scmp.ne.s32.totalorder %s313, %s316
      %p322 = scmp.eq.s32.totalorder %s46, 0
      %p323 = por %p321, %p322
      %p324 = scmp.ne.s32.totalorder %s313, %s316
      %p325 = scmp.eq.s32.totalorder %s51, 1
      %p326 = por %p324, %p325
      %p327 = scmp.ne.s32.totalorder %s316, %s317
      %p328 = scmp.eq.s32.totalorder %s51, 0
      %p329 = por %p327, %p328
      %p330 = scmp.ne.s32.totalorder %s316, %s317
      %p331 = scmp.eq.s32.totalorder %s52, 1
      %p332 = por %p330, %p331
      %p334 = scmp.ne.s32.totalorder %s317, %s333
      %p335 = scmp.eq.s32.totalorder %s52, 0
      %p336 = por %p334, %p335
      %s337 = ssub.s32 %s54, %s61
      %p338 = scmp.eq.s32.totalorder %s337, 0
      %s340 = sadd.s32 %s339, 1
      %s341 = scalar_select %p338, %s339, %s340
      %p344 = pneg %p338
      %p345 = scmp.eq.s32.totalorder %s46, 1
      %p346 = por %p344, %p345
      %p347 = scmp.ne.s32.totalorder %s339, %s342
      %p348 = scmp.eq.s32.totalorder %s46, 0
      %p349 = por %p347, %p348
      %p350 = scmp.ne.s32.totalorder %s339, %s342
      %p351 = scmp.eq.s32.totalorder %s51, 1
      %p352 = por %p350, %p351
      %p353 = scmp.ne.s32.totalorder %s342, %s343
      %p354 = scmp.eq.s32.totalorder %s51, 0
      %p355 = por %p353, %p354
      %p356 = scmp.ne.s32.totalorder %s342, %s343
      %p357 = scmp.eq.s32.totalorder %s52, 1
      %p358 = por %p356, %p357
      %p360 = scmp.ne.s32.totalorder %s343, %s359
      %p361 = scmp.eq.s32.totalorder %s52, 0
      %p362 = por %p360, %p361
      %s363 = ssub.s32 %s54, %s61
      %p364 = scmp.eq.s32.totalorder %s363, 0
      %s366 = sadd.s32 %s365, 1
      %s367 = scalar_select %p364, %s365, %s366
      %p370 = pneg %p364
      %p371 = scmp.eq.s32.totalorder %s46, 1
      %p372 = por %p370, %p371
      %p373 = scmp.ne.s32.totalorder %s365, %s368
      %p374 = scmp.eq.s32.totalorder %s46, 0
      %p375 = por %p373, %p374
      %p376 = scmp.ne.s32.totalorder %s365, %s368
      %p377 = scmp.eq.s32.totalorder %s51, 1
      %p378 = por %p376, %p377
      %p379 = scmp.ne.s32.totalorder %s368, %s369
      %p380 = scmp.eq.s32.totalorder %s51, 0
      %p381 = por %p379, %p380
      %p382 = scmp.ne.s32.totalorder %s368, %s369
      %p383 = scmp.eq.s32.totalorder %s52, 1
      %p384 = por %p382, %p383
      %p386 = scmp.ne.s32.totalorder %s369, %s385
      %p387 = scmp.eq.s32.totalorder %s52, 0
      %p388 = por %p386, %p387
      %s389 = ssub.s32 %s54, %s61
      %p390 = scmp.eq.s32.totalorder %s389, 0
      %s392 = sadd.s32 %s391, 1
      %s393 = scalar_select %p390, %s391, %s392
      %p396 = pneg %p390
      %p397 = scmp.eq.s32.totalorder %s46, 1
      %p398 = por %p396, %p397
      %p399 = scmp.ne.s32.totalorder %s391, %s394
      %p400 = scmp.eq.s32.totalorder %s46, 0
      %p401 = por %p399, %p400
      %p402 = scmp.ne.s32.totalorder %s391, %s394
      %p403 = scmp.eq.s32.totalorder %s51, 1
      %p404 = por %p402, %p403
      %p405 = scmp.ne.s32.totalorder %s394, %s395
      %p406 = scmp.eq.s32.totalorder %s51, 0
      %p407 = por %p405, %p406
      %p408 = scmp.ne.s32.totalorder %s394, %s395
      %p409 = scmp.eq.s32.totalorder %s52, 1
      %p410 = por %p408, %p409
      %p412 = scmp.ne.s32.totalorder %s395, %s411
      %p413 = scmp.eq.s32.totalorder %s52, 0
      %p414 = por %p412, %p413
      %s415 = ssub.s32 %s54, %s61
      %p416 = scmp.eq.s32.totalorder %s415, 0
      %s418 = sadd.s32 %s417, 1
      %s419 = scalar_select %p416, %s417, %s418
      %p422 = pneg %p416
      %p423 = scmp.eq.s32.totalorder %s46, 1
      %p424 = por %p422, %p423
      %p425 = scmp.ne.s32.totalorder %s417, %s420
      %p426 = scmp.eq.s32.totalorder %s46, 0
      %p427 = por %p425, %p426
      %p428 = scmp.ne.s32.totalorder %s417, %s420
      %p429 = scmp.eq.s32.totalorder %s51, 1
      %p430 = por %p428, %p429
      %p431 = scmp.ne.s32.totalorder %s420, %s421
      %p432 = scmp.eq.s32.totalorder %s51, 0
      %p433 = por %p431, %p432
      %p434 = scmp.ne.s32.totalorder %s420, %s421
      %p435 = scmp.eq.s32.totalorder %s52, 1
      %p436 = por %p434, %p435
      %p438 = scmp.ne.s32.totalorder %s421, %s437
      %p439 = scmp.eq.s32.totalorder %s52, 0
      %p440 = por %p438, %p439
      %s441 = ssub.s32 %s54, %s61
      %p442 = scmp.eq.s32.totalorder %s441, 0
      %s444 = sadd.s32 %s443, 1
      %s445 = scalar_select %p442, %s443, %s444
      %p448 = pneg %p442
      %p449 = scmp.eq.s32.totalorder %s46, 1
      %p450 = por %p448, %p449
      %p451 = scmp.ne.s32.totalorder %s443, %s446
      %p452 = scmp.eq.s32.totalorder %s46, 0
      %p453 = por %p451, %p452
      %p454 = scmp.ne.s32.totalorder %s443, %s446
      %p455 = scmp.eq.s32.totalorder %s51, 1
      %p456 = por %p454, %p455
      %p457 = scmp.ne.s32.totalorder %s446, %s447
      %p458 = scmp.eq.s32.totalorder %s51, 0
      %p459 = por %p457, %p458
      %p460 = scmp.ne.s32.totalorder %s446, %s447
      %p461 = scmp.eq.s32.totalorder %s52, 1
      %p462 = por %p460, %p461
      %p464 = scmp.ne.s32.totalorder %s447, %s463
      %p465 = scmp.eq.s32.totalorder %s52, 0
      %p466 = por %p464, %p465
      %s468 = sadd.s32 %s467, 1
      %p471 = scmp.eq.s32.totalorder %s46, 1
      %p472 = scmp.ne.s32.totalorder %s467, %s469
      %p473 = scmp.eq.s32.totalorder %s46, 0
      %p474 = por %p472, %p473
      %p475 = scmp.ne.s32.totalorder %s467, %s469
      %p476 = scmp.eq.s32.totalorder %s51, 1
      %p477 = por %p475, %p476
      %p478 = scmp.ne.s32.totalorder %s469, %s470
      %p479 = scmp.eq.s32.totalorder %s51, 0
      %p480 = por %p478, %p479
      %p481 = scmp.ne.s32.totalorder %s469, %s470
      %p482 = scmp.eq.s32.totalorder %s52, 1
      %p483 = por %p481, %p482
      %p485 = scmp.ne.s32.totalorder %s470, %s484
      %p486 = scmp.eq.s32.totalorder %s52, 0
      %p487 = por %p485, %p486
      %s489 = sadd.s32 %s488, 1
      %p492 = scmp.eq.s32.totalorder %s46, 1
      %p493 = scmp.ne.s32.totalorder %s488, %s490
      %p494 = scmp.eq.s32.totalorder %s46, 0
      %p495 = por %p493, %p494
      %p496 = scmp.ne.s32.totalorder %s488, %s490
      %p497 = scmp.eq.s32.totalorder %s51, 1
      %p498 = por %p496, %p497
      %p499 = scmp.ne.s32.totalorder %s490, %s491
      %p500 = scmp.eq.s32.totalorder %s51, 0
      %p501 = por %p499, %p500
      %p502 = scmp.ne.s32.totalorder %s490, %s491
      %p503 = scmp.eq.s32.totalorder %s52, 1
      %p504 = por %p502, %p503
      %p506 = scmp.ne.s32.totalorder %s491, %s505
      %p507 = scmp.eq.s32.totalorder %s52, 0
      %p508 = por %p506, %p507
      %s510 = sadd.s32 %s509, 1
      %p513 = scmp.eq.s32.totalorder %s46, 1
      %p514 = scmp.ne.s32.totalorder %s509, %s511
      %p515 = scmp.eq.s32.totalorder %s46, 0
      %p516 = por %p514, %p515
      %p517 = scmp.ne.s32.totalorder %s509, %s511
      %p518 = scmp.eq.s32.totalorder %s51, 1
      %p519 = por %p517, %p518
      %p520 = scmp.ne.s32.totalorder %s511, %s512
      %p521 = scmp.eq.s32.totalorder %s51, 0
      %p522 = por %p520, %p521
      %p523 = scmp.ne.s32.totalorder %s511, %s512
      %p524 = scmp.eq.s32.totalorder %s52, 1
      %p525 = por %p523, %p524
      %p527 = scmp.ne.s32.totalorder %s512, %s526
      %p528 = scmp.eq.s32.totalorder %s52, 0
      %p529 = por %p527, %p528
      %s531 = sadd.s32 %s530, 1
      %p534 = scmp.eq.s32.totalorder %s46, 1
      %p535 = scmp.ne.s32.totalorder %s530, %s532
      %p536 = scmp.eq.s32.totalorder %s46, 0
      %p537 = por %p535, %p536
      %p538 = scmp.ne.s32.totalorder %s530, %s532
      %p539 = scmp.eq.s32.totalorder %s51, 1
      %p540 = por %p538, %p539
      %p541 = scmp.ne.s32.totalorder %s532, %s533
      %p542 = scmp.eq.s32.totalorder %s51, 0
      %p543 = por %p541, %p542
      %p544 = scmp.ne.s32.totalorder %s532, %s533
      %p545 = scmp.eq.s32.totalorder %s52, 1
      %p546 = por %p544, %p545
      %p548 = scmp.ne.s32.totalorder %s533, %s547
      %p549 = scmp.eq.s32.totalorder %s52, 0
      %p550 = por %p548, %p549
      %s551 = ssub.s32 %s53, %s65
      %p552 = scmp.eq.s32.totalorder %s551, 0
      %s554 = sadd.s32 %s553, 1
      %s555 = scalar_select %p552, %s553, %s554
      %p558 = pneg %p552
      %p559 = scmp.eq.s32.totalorder %s46, 1
      %p560 = por %p558, %p559
      %p561 = scmp.ne.s32.totalorder %s553, %s556
      %p562 = scmp.eq.s32.totalorder %s46, 0
      %p563 = por %p561, %p562
      %p564 = scmp.ne.s32.totalorder %s553, %s556
      %p565 = scmp.eq.s32.totalorder %s51, 1
      %p566 = por %p564, %p565
      %p567 = scmp.ne.s32.totalorder %s556, %s557
      %p568 = scmp.eq.s32.totalorder %s51, 0
      %p569 = por %p567, %p568
      %p570 = scmp.ne.s32.totalorder %s556, %s557
      %p571 = scmp.eq.s32.totalorder %s52, 1
      %p572 = por %p570, %p571
      %p574 = scmp.ne.s32.totalorder %s557, %s573
      %p575 = scmp.eq.s32.totalorder %s52, 0
      %p576 = por %p574, %p575
      %p577 = scmp.le.s32.totalorder 1, %s46
      %p578 = scmp.lt.s32.totalorder %s46, 3
      %p579 = pnand %p577, %p578
      %p580 = pneg %p579
      // Predicated region
      $region9: #{transformer_for_icd_forward.1} parent=5 // pred_check
        _
      $region10: #{transformer_for_icd_forward.1} parent=5 // pred_check_branch
        %582 = sbr.rel (%p579) target = $region12
      $region11: #{transformer_for_icd_forward.1} parent=5 // pred_region
        %s583 = ssub.s32 %s46, 1
        // Predicated region
        $region13: #{transformer_for_icd_forward.1} parent=11 // pred_check
          %p584 = pneg %p84
        $region14: #{transformer_for_icd_forward.1} parent=11 // pred_check_branch
          %586 = sbr.rel (%p584) target = $region16
        $region15: #{transformer_for_icd_forward.1} parent=11 // pred_region
          %s587 = smul.u32 2, %s55
          %p588 = scmp.lt.s32.totalorder %s587, 1
          %s589 = scalar_select %p588, %s587, 1
          %s590 = smul.addr %s589, 2
          %s591 = smul.addr %s590, 8
          %s592 = scalar_lea.vmem %s0, %s591
          %s593 = smul.u32 2, %s55
        $region16: #{transformer_for_icd_forward.1} parent=11 // pred_fallthru
          _
        // Predicated region
        $region17: #{transformer_for_icd_forward.1} parent=11 // pred_check
          %p594 = pneg %p105
        $region18: #{transformer_for_icd_forward.1} parent=11 // pred_check_branch
          %596 = sbr.rel (%p594) target = $region20
        $region19: #{transformer_for_icd_forward.1} parent=11 // pred_region
          _
        $region20: #{transformer_for_icd_forward.1} parent=11 // pred_fallthru
          _
        // Predicated region
        $region21: #{transformer_for_icd_forward.1} parent=11 // pred_check
          %p597 = pneg %p126
        $region22: #{transformer_for_icd_forward.1} parent=11 // pred_check_branch
          %599 = sbr.rel (%p597) target = $region24
        $region23: #{transformer_for_icd_forward.1} parent=11 // pred_region
          _
        $region24: #{transformer_for_icd_forward.1} parent=11 // pred_fallthru
          _
        // Predicated region
        $region25: #{transformer_for_icd_forward.1} parent=11 // pred_check
          %p600 = pneg %p147
        $region26: #{transformer_for_icd_forward.1} parent=11 // pred_check_branch
          %602 = sbr.rel (%p600) target = $region28
        $region27: #{transformer_for_icd_forward.1} parent=11 // pred_region
          _
        $region28: #{transformer_for_icd_forward.1} parent=11 // pred_fallthru
          _
        // Predicated region
        $region29: #{transformer_for_icd_forward.1} parent=11 // pred_check
          %p603 = pneg %p480
        $region30: #{transformer_for_icd_forward.1} parent=11 // pred_check_branch
          %605 = sbr.rel (%p603) target = $region32
        $region31: #{transformer_for_icd_forward.1} parent=11 // pred_region
          %s607 = ssub.s32 16, 16
          %608 = vsyncadd [#allocation22], %s607
          %s610 = sshll.u32 [#allocation21], 4
          %s611 = int_to_ptr.vmem [resolvable:$true] %s610
          %613 = dma.hbm_to_vmem [thread:$0]  %s16, 16, %s611, [#allocation22]
        $region32: #{transformer_for_icd_forward.1} parent=11 // pred_fallthru
          _
        // Predicated region
        $region33: #{transformer_for_icd_forward.1} parent=11 // pred_check
          %p614 = pneg %p501
        $region34: #{transformer_for_icd_forward.1} parent=11 // pred_check_branch
          %616 = sbr.rel (%p614) target = $region36
        $region35: #{transformer_for_icd_forward.1} parent=11 // pred_region
          %s618 = ssub.s32 16, 16
          %619 = vsyncadd [#allocation22], %s618
          %s621 = sshll.u32 [#allocation23], 4
          %s622 = int_to_ptr.vmem [resolvable:$true] %s621
          %624 = dma.hbm_to_vmem [thread:$0]  %s17, 16, %s622, [#allocation22]
        $region36: #{transformer_for_icd_forward.1} parent=11 // pred_fallthru
          _
        // Predicated region
        $region37: #{transformer_for_icd_forward.1} parent=11 // pred_check
          %p625 = pneg %p522
        $region38: #{transformer_for_icd_forward.1} parent=11 // pred_check_branch
          %627 = sbr.rel (%p625) target = $region40
        $region39: #{transformer_for_icd_forward.1} parent=11 // pred_region
          %s629 = ssub.s32 1024, 1024
          %630 = vsyncadd [#allocation25], %s629
          %s631 = sshll.u32 [#allocation24], 4
          %s632 = int_to_ptr.vmem [resolvable:$true] %s631
          %637 = dma.hbm_to_vmem [thread:$0]  %s18, 1024, %s632, [#allocation25], 64, 64, 4
        $region40: #{transformer_for_icd_forward.1} parent=11 // pred_fallthru
          _
        // Predicated region
        $region41: #{transformer_for_icd_forward.1} parent=11 // pred_check
          %p638 = pneg %p543
        $region42: #{transformer_for_icd_forward.1} parent=11 // pred_check_branch
          %640 = sbr.rel (%p638) target = $region44
        $region43: #{transformer_for_icd_forward.1} parent=11 // pred_region
          %s642 = ssub.s32 16, 16
          %643 = vsyncadd [#allocation25], %s642
          %s645 = sshll.u32 [#allocation26], 4
          %s646 = int_to_ptr.vmem [resolvable:$true] %s645
          %648 = dma.hbm_to_vmem [thread:$0]  %s19, 16, %s646, [#allocation25]
        $region44: #{transformer_for_icd_forward.1} parent=11 // pred_fallthru
          _
      $region12: #{transformer_for_icd_forward.1} parent=5 // pred_fallthru
        _
      %p649 = scmp.lt.s32.totalorder %s46, 2
      // Predicated region
      $region45: #{transformer_for_icd_forward.1} parent=5 // pred_check
        %p650 = pneg %p649
      $region46: #{transformer_for_icd_forward.1} parent=5 // pred_check_branch
        %652 = sbr.rel (%p650) target = $region48
      $region47: #{transformer_for_icd_forward.1} parent=5 // pred_region
        // Predicated region
        $region49: #{transformer_for_icd_forward.1} parent=47 // pred_check
          %p653 = pneg %p167
        $region50: #{transformer_for_icd_forward.1} parent=47 // pred_check_branch
          %655 = sbr.rel (%p653) target = $region52
        $region51: #{transformer_for_icd_forward.1} parent=47 // pred_region
          %s656 = sand.u32 %s157, 1
          %s657 = scalar_lea.sflag [#allocation5], %s656
          %s658 = sand.u32 %s157, 1
          %s659 = scalar_lea.vmem [#allocation4], %s658
          %s661 = ssub.s32 16, 16
          %662 = vsyncadd %s657, %s661
          %s663 = smul.addr %s54, 16
          %s664 = scalar_lea.hbm %s4, %s663
          %s666 = sshll.u32 %s659, 4
          %s667 = int_to_ptr.vmem [resolvable:$true] %s666
          %669 = dma.hbm_to_vmem [thread:$0]  %s664, 16, %s667, %s657
        $region52: #{transformer_for_icd_forward.1} parent=47 // pred_fallthru
          _
        // Predicated region
        $region53: #{transformer_for_icd_forward.1} parent=47 // pred_check
          %p670 = pneg %p193
        $region54: #{transformer_for_icd_forward.1} parent=47 // pred_check_branch
          %672 = sbr.rel (%p670) target = $region56
        $region55: #{transformer_for_icd_forward.1} parent=47 // pred_region
          %s673 = sand.u32 %s46, 1
          %s674 = scalar_lea.sflag [#allocation7], %s673
          %s675 = sand.u32 %s183, 1
          %s676 = scalar_lea.vmem [#allocation6], %s675
          %s678 = ssub.s32 16, 16
          %679 = vsyncadd %s674, %s678
          %s680 = smul.addr %s54, 16
          %s681 = scalar_lea.hbm %s5, %s680
          %s683 = sshll.u32 %s676, 4
          %s684 = int_to_ptr.vmem [resolvable:$true] %s683
          %686 = dma.hbm_to_vmem [thread:$0]  %s681, 16, %s684, %s674
        $region56: #{transformer_for_icd_forward.1} parent=47 // pred_fallthru
          _
        // Predicated region
        $region57: #{transformer_for_icd_forward.1} parent=47 // pred_check
          %p687 = pneg %p219
        $region58: #{transformer_for_icd_forward.1} parent=47 // pred_check_branch
          %689 = sbr.rel (%p687) target = $region60
        $region59: #{transformer_for_icd_forward.1} parent=47 // pred_region
          %s690 = sand.u32 %s46, 1
          %s691 = scalar_lea.sflag [#allocation7], %s690
          %s692 = sand.u32 %s209, 1
          %s693 = smul.addr %s692, 192
          %s694 = scalar_lea.vmem [#allocation8], %s693
          %s696 = ssub.s32 3072, 3072
          %697 = vsyncadd %s691, %s696
          %s698 = smul.addr %s54, 48
          %s699 = smul.addr %s698, 64
          %s700 = scalar_lea.hbm %s6, %s699
          %s701 = sshll.u32 %s694, 4
          %s702 = int_to_ptr.vmem [resolvable:$true] %s701
          %707 = dma.hbm_to_vmem [thread:$0]  %s700, 3072, %s702, %s691, 192, 192, 12
        $region60: #{transformer_for_icd_forward.1} parent=47 // pred_fallthru
          _
        // Predicated region
        $region61: #{transformer_for_icd_forward.1} parent=47 // pred_check
          %p708 = pneg %p245
        $region62: #{transformer_for_icd_forward.1} parent=47 // pred_check_branch
          %710 = sbr.rel (%p708) target = $region64
        $region63: #{transformer_for_icd_forward.1} parent=47 // pred_region
          %s711 = sand.u32 %s46, 1
          %s712 = scalar_lea.sflag [#allocation10], %s711
          %s713 = sand.u32 %s235, 1
          %s714 = smul.addr %s713, 3
          %s715 = scalar_lea.vmem [#allocation9], %s714
          %s717 = ssub.s32 48, 48
          %718 = vsyncadd %s712, %s717
          %s719 = smul.addr %s54, 3
          %s720 = smul.addr %s719, 16
          %s721 = scalar_lea.hbm %s7, %s720
          %s723 = sshll.u32 %s715, 4
          %s724 = int_to_ptr.vmem [resolvable:$true] %s723
          %726 = dma.hbm_to_vmem [thread:$0]  %s721, 48, %s724, %s712
        $region64: #{transformer_for_icd_forward.1} parent=47 // pred_fallthru
          _
        // Predicated region
        $region65: #{transformer_for_icd_forward.1} parent=47 // pred_check
          %p727 = pneg %p271
        $region66: #{transformer_for_icd_forward.1} parent=47 // pred_check_branch
          %729 = sbr.rel (%p727) target = $region68
        $region67: #{transformer_for_icd_forward.1} parent=47 // pred_region
          %p730 = scmp.lt.s32.totalorder %s54, 1
          %s731 = scalar_select %p730, %s54, 1
          %s732 = smul.addr %s731, 16
          %s733 = smul.addr %s732, 4
          %s734 = scalar_lea.vmem %s8, %s733
        $region68: #{transformer_for_icd_forward.1} parent=47 // pred_fallthru
          _
        // Predicated region
        $region69: #{transformer_for_icd_forward.1} parent=47 // pred_check
          %p735 = pneg %p297
        $region70: #{transformer_for_icd_forward.1} parent=47 // pred_check_branch
          %737 = sbr.rel (%p735) target = $region72
        $region71: #{transformer_for_icd_forward.1} parent=47 // pred_region
          %s738 = sand.u32 %s46, 1
          %s739 = scalar_lea.sflag [#allocation10], %s738
          %s740 = sand.u32 %s287, 1
          %s741 = scalar_lea.vmem [#allocation11], %s740
          %s743 = ssub.s32 16, 16
          %744 = vsyncadd %s739, %s743
          %s745 = smul.addr %s54, 16
          %s746 = scalar_lea.hbm %s9, %s745
          %s748 = sshll.u32 %s741, 4
          %s749 = int_to_ptr.vmem [resolvable:$true] %s748
          %751 = dma.hbm_to_vmem [thread:$0]  %s746, 16, %s749, %s739
        $region72: #{transformer_for_icd_forward.1} parent=47 // pred_fallthru
          _
        // Predicated region
        $region73: #{transformer_for_icd_forward.1} parent=47 // pred_check
          %p752 = pneg %p323
        $region74: #{transformer_for_icd_forward.1} parent=47 // pred_check_branch
          %754 = sbr.rel (%p752) target = $region76
        $region75: #{transformer_for_icd_forward.1} parent=47 // pred_region
          %s755 = sand.u32 %s46, 1
          %s756 = scalar_lea.sflag [#allocation13], %s755
          %s757 = sand.u32 %s313, 1
          %s758 = scalar_lea.vmem [#allocation12], %s757
          %s760 = ssub.s32 16, 16
          %761 = vsyncadd %s756, %s760
          %s762 = smul.addr %s54, 16
          %s763 = scalar_lea.hbm %s10, %s762
          %s765 = sshll.u32 %s758, 4
          %s766 = int_to_ptr.vmem [resolvable:$true] %s765
          %768 = dma.hbm_to_vmem [thread:$0]  %s763, 16, %s766, %s756
        $region76: #{transformer_for_icd_forward.1} parent=47 // pred_fallthru
          _
        // Predicated region
        $region77: #{transformer_for_icd_forward.1} parent=47 // pred_check
          %p769 = pneg %p349
        $region78: #{transformer_for_icd_forward.1} parent=47 // pred_check_branch
          %771 = sbr.rel (%p769) target = $region80
        $region79: #{transformer_for_icd_forward.1} parent=47 // pred_region
          %s772 = sand.u32 %s46, 1
          %s773 = scalar_lea.sflag [#allocation13], %s772
          %s774 = sand.u32 %s339, 1
          %s775 = scalar_lea.vmem [#allocation14], %s774
          %s777 = ssub.s32 16, 16
          %778 = vsyncadd %s773, %s777
          %s779 = smul.addr %s54, 16
          %s780 = scalar_lea.hbm %s11, %s779
          %s782 = sshll.u32 %s775, 4
          %s783 = int_to_ptr.vmem [resolvable:$true] %s782
          %785 = dma.hbm_to_vmem [thread:$0]  %s780, 16, %s783, %s773
        $region80: #{transformer_for_icd_forward.1} parent=47 // pred_fallthru
          _
        // Predicated region
        $region81: #{transformer_for_icd_forward.1} parent=47 // pred_check
          %p786 = pneg %p375
        $region82: #{transformer_for_icd_forward.1} parent=47 // pred_check_branch
          %788 = sbr.rel (%p786) target = $region84
        $region83: #{transformer_for_icd_forward.1} parent=47 // pred_region
          %s789 = sand.u32 %s46, 1
          %s790 = scalar_lea.sflag [#allocation16], %s789
          %s791 = sand.u32 %s365, 1
          %s792 = smul.addr %s791, 256
          %s793 = scalar_lea.vmem [#allocation15], %s792
          %s795 = ssub.s32 4096, 4096
          %796 = vsyncadd %s790, %s795
          %s797 = smul.addr %s54, 64
          %s798 = smul.addr %s797, 64
          %s799 = scalar_lea.hbm %s12, %s798
          %s800 = sshll.u32 %s793, 4
          %s801 = int_to_ptr.vmem [resolvable:$true] %s800
          %806 = dma.hbm_to_vmem [thread:$0]  %s799, 4096, %s801, %s790, 256, 256, 16
        $region84: #{transformer_for_icd_forward.1} parent=47 // pred_fallthru
          _
        // Predicated region
        $region85: #{transformer_for_icd_forward.1} parent=47 // pred_check
          %p807 = pneg %p401
        $region86: #{transformer_for_icd_forward.1} parent=47 // pred_check_branch
          %809 = sbr.rel (%p807) target = $region88
        $region87: #{transformer_for_icd_forward.1} parent=47 // pred_region
          %s810 = sand.u32 %s46, 1
          %s811 = scalar_lea.sflag [#allocation16], %s810
          %s812 = sand.u32 %s391, 1
          %s813 = smul.addr %s812, 4
          %s814 = scalar_lea.vmem [#allocation17], %s813
          %s816 = ssub.s32 64, 64
          %817 = vsyncadd %s811, %s816
          %s818 = smul.addr %s54, 4
          %s819 = smul.addr %s818, 16
          %s820 = scalar_lea.hbm %s13, %s819
          %s822 = sshll.u32 %s814, 4
          %s823 = int_to_ptr.vmem [resolvable:$true] %s822
          %825 = dma.hbm_to_vmem [thread:$0]  %s820, 64, %s823, %s811
        $region88: #{transformer_for_icd_forward.1} parent=47 // pred_fallthru
          _
        // Predicated region
        $region89: #{transformer_for_icd_forward.1} parent=47 // pred_check
          %p826 = pneg %p427
        $region90: #{transformer_for_icd_forward.1} parent=47 // pred_check_branch
          %828 = sbr.rel (%p826) target = $region92
        $region91: #{transformer_for_icd_forward.1} parent=47 // pred_region
          %s829 = sand.u32 %s46, 1
          %s830 = scalar_lea.sflag [#allocation19], %s829
          %s831 = sand.u32 %s417, 1
          %s832 = smul.addr %s831, 256
          %s833 = scalar_lea.vmem [#allocation18], %s832
          %s835 = ssub.s32 4096, 4096
          %836 = vsyncadd %s830, %s835
          %s837 = smul.addr %s54, 64
          %s838 = smul.addr %s837, 64
          %s839 = scalar_lea.hbm %s14, %s838
          %s840 = sshll.u32 %s833, 4
          %s841 = int_to_ptr.vmem [resolvable:$true] %s840
          %846 = dma.hbm_to_vmem [thread:$0]  %s839, 4096, %s841, %s830, 64, 64, 4
        $region92: #{transformer_for_icd_forward.1} parent=47 // pred_fallthru
          _
        // Predicated region
        $region93: #{transformer_for_icd_forward.1} parent=47 // pred_check
          %p847 = pneg %p453
        $region94: #{transformer_for_icd_forward.1} parent=47 // pred_check_branch
          %849 = sbr.rel (%p847) target = $region96
        $region95: #{transformer_for_icd_forward.1} parent=47 // pred_region
          %s850 = sand.u32 %s46, 1
          %s851 = scalar_lea.sflag [#allocation19], %s850
          %s852 = sand.u32 %s443, 1
          %s853 = scalar_lea.vmem [#allocation20], %s852
          %s855 = ssub.s32 16, 16
          %856 = vsyncadd %s851, %s855
          %s857 = smul.addr %s54, 16
          %s858 = scalar_lea.hbm %s15, %s857
          %s860 = sshll.u32 %s853, 4
          %s861 = int_to_ptr.vmem [resolvable:$true] %s860
          %863 = dma.hbm_to_vmem [thread:$0]  %s858, 16, %s861, %s851
        $region96: #{transformer_for_icd_forward.1} parent=47 // pred_fallthru
          _
      $region48: #{transformer_for_icd_forward.1} parent=5 // pred_fallthru
        _
      %p864 = scmp.le.s32.totalorder 1, %s46
      %p865 = scmp.lt.s32.totalorder %s46, 3
      %p866 = pnand %p864, %p865
      %p867 = pneg %p866
      // Predicated region
      $region97: #{transformer_for_icd_forward.1} parent=5 // pred_check
        _
      $region98: #{transformer_for_icd_forward.1} parent=5 // pred_check_branch
        %869 = sbr.rel (%p866) target = $region100
      $region99: #{transformer_for_icd_forward.1} parent=5 // pred_region
        %s870 = ssub.s32 %s46, 1
        %s871 = sand.u32 %s160, 1
        %s872 = scalar_lea.sflag [#allocation5], %s871
        %s873 = sand.u32 %s160, 1
        %s874 = scalar_lea.vmem [#allocation4], %s873
        // Predicated region
        $region101: #{transformer_for_icd_forward.1} parent=99 // pred_check
          %p875 = pneg %p173
        $region102: #{transformer_for_icd_forward.1} parent=99 // pred_check_branch
          %877 = sbr.rel (%p875) target = $region104
        $region103: #{transformer_for_icd_forward.1} parent=99 // pred_region
          %878 = dma.done %s872, 16
        $region104: #{transformer_for_icd_forward.1} parent=99 // pred_fallthru
          _
        %s879 = sand.u32 %s51, 1
        %s880 = scalar_lea.sflag [#allocation7], %s879
        %s881 = sand.u32 %s186, 1
        %s882 = scalar_lea.vmem [#allocation6], %s881
        // Predicated region
        $region105: #{transformer_for_icd_forward.1} parent=99 // pred_check
          %p883 = pneg %p199
        $region106: #{transformer_for_icd_forward.1} parent=99 // pred_check_branch
          %885 = sbr.rel (%p883) target = $region108
        $region107: #{transformer_for_icd_forward.1} parent=99 // pred_region
          %886 = dma.done %s880, 16
        $region108: #{transformer_for_icd_forward.1} parent=99 // pred_fallthru
          _
        %s887 = sand.u32 %s51, 1
        %s888 = scalar_lea.sflag [#allocation7], %s887
        %s889 = sand.u32 %s212, 1
        %s890 = smul.addr %s889, 192
        %s891 = scalar_lea.vmem [#allocation8], %s890
        // Predicated region
        $region109: #{transformer_for_icd_forward.1} parent=99 // pred_check
          %p892 = pneg %p225
        $region110: #{transformer_for_icd_forward.1} parent=99 // pred_check_branch
          %894 = sbr.rel (%p892) target = $region112
        $region111: #{transformer_for_icd_forward.1} parent=99 // pred_region
          %895 = dma.done %s888, 3072
        $region112: #{transformer_for_icd_forward.1} parent=99 // pred_fallthru
          _
        %s896 = sand.u32 %s51, 1
        %s897 = scalar_lea.sflag [#allocation10], %s896
        %s898 = sand.u32 %s238, 1
        %s899 = smul.addr %s898, 3
        %s900 = scalar_lea.vmem [#allocation9], %s899
        // Predicated region
        $region113: #{transformer_for_icd_forward.1} parent=99 // pred_check
          %p901 = pneg %p251
        $region114: #{transformer_for_icd_forward.1} parent=99 // pred_check_branch
          %903 = sbr.rel (%p901) target = $region116
        $region115: #{transformer_for_icd_forward.1} parent=99 // pred_region
          %904 = dma.done %s897, 48
        $region116: #{transformer_for_icd_forward.1} parent=99 // pred_fallthru
          _
        %s905 = sand.u32 %s51, 1
        %s906 = scalar_lea.sflag [#allocation10], %s905
        %s907 = sand.u32 %s290, 1
        %s908 = scalar_lea.vmem [#allocation11], %s907
        // Predicated region
        $region117: #{transformer_for_icd_forward.1} parent=99 // pred_check
          %p909 = pneg %p303
        $region118: #{transformer_for_icd_forward.1} parent=99 // pred_check_branch
          %911 = sbr.rel (%p909) target = $region120
        $region119: #{transformer_for_icd_forward.1} parent=99 // pred_region
          %912 = dma.done %s906, 16
        $region120: #{transformer_for_icd_forward.1} parent=99 // pred_fallthru
          _
        %s913 = sand.u32 %s51, 1
        %s914 = scalar_lea.sflag [#allocation13], %s913
        %s915 = sand.u32 %s316, 1
        %s916 = scalar_lea.vmem [#allocation12], %s915
        // Predicated region
        $region121: #{transformer_for_icd_forward.1} parent=99 // pred_check
          %p917 = pneg %p329
        $region122: #{transformer_for_icd_forward.1} parent=99 // pred_check_branch
          %919 = sbr.rel (%p917) target = $region124
        $region123: #{transformer_for_icd_forward.1} parent=99 // pred_region
          %920 = dma.done %s914, 16
        $region124: #{transformer_for_icd_forward.1} parent=99 // pred_fallthru
          _
        %s921 = sand.u32 %s51, 1
        %s922 = scalar_lea.sflag [#allocation13], %s921
        %s923 = sand.u32 %s342, 1
        %s924 = scalar_lea.vmem [#allocation14], %s923
        // Predicated region
        $region125: #{transformer_for_icd_forward.1} parent=99 // pred_check
          %p925 = pneg %p355
        $region126: #{transformer_for_icd_forward.1} parent=99 // pred_check_branch
          %927 = sbr.rel (%p925) target = $region128
        $region127: #{transformer_for_icd_forward.1} parent=99 // pred_region
          %928 = dma.done %s922, 16
        $region128: #{transformer_for_icd_forward.1} parent=99 // pred_fallthru
          _
        %s929 = sand.u32 %s51, 1
        %s930 = scalar_lea.sflag [#allocation16], %s929
        %s931 = sand.u32 %s368, 1
        %s932 = smul.addr %s931, 256
        %s933 = scalar_lea.vmem [#allocation15], %s932
        // Predicated region
        $region129: #{transformer_for_icd_forward.1} parent=99 // pred_check
          %p934 = pneg %p381
        $region130: #{transformer_for_icd_forward.1} parent=99 // pred_check_branch
          %936 = sbr.rel (%p934) target = $region132
        $region131: #{transformer_for_icd_forward.1} parent=99 // pred_region
          %937 = dma.done %s930, 4096
        $region132: #{transformer_for_icd_forward.1} parent=99 // pred_fallthru
          _
        %s938 = sand.u32 %s51, 1
        %s939 = scalar_lea.sflag [#allocation16], %s938
        %s940 = sand.u32 %s394, 1
        %s941 = smul.addr %s940, 4
        %s942 = scalar_lea.vmem [#allocation17], %s941
        // Predicated region
        $region133: #{transformer_for_icd_forward.1} parent=99 // pred_check
          %p943 = pneg %p407
        $region134: #{transformer_for_icd_forward.1} parent=99 // pred_check_branch
          %945 = sbr.rel (%p943) target = $region136
        $region135: #{transformer_for_icd_forward.1} parent=99 // pred_region
          %946 = dma.done %s939, 64
        $region136: #{transformer_for_icd_forward.1} parent=99 // pred_fallthru
          _
        %s947 = sand.u32 %s51, 1
        %s948 = scalar_lea.sflag [#allocation19], %s947
        %s949 = sand.u32 %s420, 1
        %s950 = smul.addr %s949, 256
        %s951 = scalar_lea.vmem [#allocation18], %s950
        // Predicated region
        $region137: #{transformer_for_icd_forward.1} parent=99 // pred_check
          %p952 = pneg %p433
        $region138: #{transformer_for_icd_forward.1} parent=99 // pred_check_branch
          %954 = sbr.rel (%p952) target = $region140
        $region139: #{transformer_for_icd_forward.1} parent=99 // pred_region
          %955 = dma.done %s948, 4096
        $region140: #{transformer_for_icd_forward.1} parent=99 // pred_fallthru
          _
        %s956 = sand.u32 %s51, 1
        %s957 = scalar_lea.sflag [#allocation19], %s956
        %s958 = sand.u32 %s446, 1
        %s959 = scalar_lea.vmem [#allocation20], %s958
        // Predicated region
        $region141: #{transformer_for_icd_forward.1} parent=99 // pred_check
          %p960 = pneg %p459
        $region142: #{transformer_for_icd_forward.1} parent=99 // pred_check_branch
          %962 = sbr.rel (%p960) target = $region144
        $region143: #{transformer_for_icd_forward.1} parent=99 // pred_region
          %963 = dma.done %s957, 16
        $region144: #{transformer_for_icd_forward.1} parent=99 // pred_fallthru
          _
        // Predicated region
        $region145: #{transformer_for_icd_forward.1} parent=99 // pred_check
          %p964 = pneg %p480
        $region146: #{transformer_for_icd_forward.1} parent=99 // pred_check_branch
          %966 = sbr.rel (%p964) target = $region148
        $region147: #{transformer_for_icd_forward.1} parent=99 // pred_region
          %967 = dma.done [#allocation22], 16
        $region148: #{transformer_for_icd_forward.1} parent=99 // pred_fallthru
          _
        // Predicated region
        $region149: #{transformer_for_icd_forward.1} parent=99 // pred_check
          %p968 = pneg %p501
        $region150: #{transformer_for_icd_forward.1} parent=99 // pred_check_branch
          %970 = sbr.rel (%p968) target = $region152
        $region151: #{transformer_for_icd_forward.1} parent=99 // pred_region
          %971 = dma.done [#allocation22], 16
        $region152: #{transformer_for_icd_forward.1} parent=99 // pred_fallthru
          _
        // Predicated region
        $region153: #{transformer_for_icd_forward.1} parent=99 // pred_check
          %p972 = pneg %p522
        $region154: #{transformer_for_icd_forward.1} parent=99 // pred_check_branch
          %974 = sbr.rel (%p972) target = $region156
        $region155: #{transformer_for_icd_forward.1} parent=99 // pred_region
          %975 = dma.done [#allocation25], 1024
        $region156: #{transformer_for_icd_forward.1} parent=99 // pred_fallthru
          _
        // Predicated region
        $region157: #{transformer_for_icd_forward.1} parent=99 // pred_check
          %p976 = pneg %p543
        $region158: #{transformer_for_icd_forward.1} parent=99 // pred_check_branch
          %978 = sbr.rel (%p976) target = $region160
        $region159: #{transformer_for_icd_forward.1} parent=99 // pred_region
          %979 = dma.done [#allocation25], 16
        $region160: #{transformer_for_icd_forward.1} parent=99 // pred_fallthru
          _
        %s980 = smul.u32 2, %s55
        %p981 = scmp.lt.s32.totalorder %s980, 1
        %s982 = scalar_select %p981, %s980, 1
        %s983 = smul.addr %s982, 2
        %s984 = smul.addr %s983, 8
        %s985 = scalar_lea.vmem %s0, %s984
        %p986 = pneg %p84
        %p987 = pneg %p81
        %p988 = pneg %p105
        %p989 = pneg %p102
        %p990 = pneg %p126
        %p991 = pneg %p123
        %p992 = pneg %p147
        %p993 = pneg %p144
        %s994 = sand.u32 %s160, 1
        %s995 = scalar_lea.sflag [#allocation5], %s994
        %s996 = sand.u32 %s160, 1
        %s997 = scalar_lea.vmem [#allocation4], %s996
        %p998 = pneg %p173
        %p999 = pneg %p170
        %s1000 = sand.u32 %s51, 1
        %s1001 = scalar_lea.sflag [#allocation7], %s1000
        %s1002 = sand.u32 %s186, 1
        %s1003 = scalar_lea.vmem [#allocation6], %s1002
        %p1004 = pneg %p199
        %p1005 = pneg %p196
        %s1006 = sand.u32 %s51, 1
        %s1007 = scalar_lea.sflag [#allocation7], %s1006
        %s1008 = sand.u32 %s212, 1
        %s1009 = smul.addr %s1008, 192
        %s1010 = scalar_lea.vmem [#allocation8], %s1009
        %p1011 = pneg %p225
        %p1012 = pneg %p222
        %s1013 = sand.u32 %s51, 1
        %s1014 = scalar_lea.sflag [#allocation10], %s1013
        %s1015 = sand.u32 %s238, 1
        %s1016 = smul.addr %s1015, 3
        %s1017 = scalar_lea.vmem [#allocation9], %s1016
        %p1018 = pneg %p251
        %p1019 = pneg %p248
        %p1020 = scmp.lt.s32.totalorder %s56, 1
        %s1021 = scalar_select %p1020, %s56, 1
        %s1022 = smul.addr %s1021, 16
        %s1023 = smul.addr %s1022, 4
        %s1024 = scalar_lea.vmem %s8, %s1023
        %p1025 = pneg %p277
        %p1026 = pneg %p274
        %s1027 = sand.u32 %s51, 1
        %s1028 = scalar_lea.sflag [#allocation10], %s1027
        %s1029 = sand.u32 %s290, 1
        %s1030 = scalar_lea.vmem [#allocation11], %s1029
        %p1031 = pneg %p303
        %p1032 = pneg %p300
        %s1033 = sand.u32 %s51, 1
        %s1034 = scalar_lea.sflag [#allocation13], %s1033
        %s1035 = sand.u32 %s316, 1
        %s1036 = scalar_lea.vmem [#allocation12], %s1035
        %p1037 = pneg %p329
        %p1038 = pneg %p326
        %s1039 = sand.u32 %s51, 1
        %s1040 = scalar_lea.sflag [#allocation13], %s1039
        %s1041 = sand.u32 %s342, 1
        %s1042 = scalar_lea.vmem [#allocation14], %s1041
        %p1043 = pneg %p355
        %p1044 = pneg %p352
        %s1045 = sand.u32 %s51, 1
        %s1046 = scalar_lea.sflag [#allocation16], %s1045
        %s1047 = sand.u32 %s368, 1
        %s1048 = smul.addr %s1047, 256
        %s1049 = scalar_lea.vmem [#allocation15], %s1048
        %p1050 = pneg %p381
        %p1051 = pneg %p378
        %s1052 = sand.u32 %s51, 1
        %s1053 = scalar_lea.sflag [#allocation16], %s1052
        %s1054 = sand.u32 %s394, 1
        %s1055 = smul.addr %s1054, 4
        %s1056 = scalar_lea.vmem [#allocation17], %s1055
        %p1057 = pneg %p407
        %p1058 = pneg %p404
        %s1059 = sand.u32 %s51, 1
        %s1060 = scalar_lea.sflag [#allocation19], %s1059
        %s1061 = sand.u32 %s420, 1
        %s1062 = smul.addr %s1061, 256
        %s1063 = scalar_lea.vmem [#allocation18], %s1062
        %p1064 = pneg %p433
        %p1065 = pneg %p430
        %s1066 = sand.u32 %s51, 1
        %s1067 = scalar_lea.sflag [#allocation19], %s1066
        %s1068 = sand.u32 %s446, 1
        %s1069 = scalar_lea.vmem [#allocation20], %s1068
        %p1070 = pneg %p459
        %p1071 = pneg %p456
        %p1072 = pneg %p480
        %p1073 = pneg %p477
        %p1074 = pneg %p501
        %p1075 = pneg %p498
        %p1076 = pneg %p522
        %p1077 = pneg %p519
        %p1078 = pneg %p543
        %p1079 = pneg %p540
        %p1080 = pneg %p569
        %p1081 = pneg %p566
        %s1082 = smul.u32 2, %s55
        %p1083 = scmp.lt.s32.totalorder %s1082, 1
        %s1084 = scalar_select %p1083, %s1082, 1
        %s1085 = smul.addr %s1084, 2
        %s1086 = smul.addr %s1085, 8
        %s1087 = scalar_lea.vmem %s20, %s1086
        %s1088 = smul.u32 2, %s55
        %p1089 = scmp.lt.s32.totalorder %s1088, 1
        %s1090 = scalar_select %p1089, %s1088, 1
        %s1091 = smul.addr %s1090, 2
        %s1092 = smul.addr %s1091, 8
        %s1093 = scalar_lea.vmem %s0, %s1092
        %s1094 = smul.u32 2, %s55
        %p1095 = scmp.lt.s32.totalorder %s56, 1
        %s1096 = scalar_select %p1095, %s56, 1
        %s1097 = smul.addr %s1096, 16
        %s1098 = smul.addr %s1097, 4
        %s1099 = scalar_lea.vmem %s8, %s1098
        %s1100 = smul.u32 2, %s55
        %p1101 = scmp.lt.s32.totalorder %s1100, 1
        %s1102 = scalar_select %p1101, %s1100, 1
        %s1103 = smul.addr %s1102, 2
        %s1104 = smul.addr %s1103, 8
        %s1105 = scalar_lea.vmem %s20, %s1104
        %s1106 = smul.u32 2, %s55
        %p1108 = scmp.eq.s32.totalorder %s56, 0
        // Predicated region
        $region161: #{transformer_for_icd_forward.1} parent=99 // pred_check
          %p1109 = pneg %p1108
        $region162: #{transformer_for_icd_forward.1} parent=99 // pred_check_branch
          %1111 = sbr.rel (%p1109) target = $region164
        $region163: #{transformer_for_icd_forward.1} parent=99 // pred_region
          %v1112 = vld [vmem:[%s1093] sm:$0xff]
          %v1113 = vld [vmem:[%s1093 + $0x8] sm:$0xff]
          %v1114 = vld [vmem:[%s1093 + $0x10] sm:$0xff]
          %v1115 = vld [vmem:[%s1093 + $0x18] sm:$0xff]
          %v1116 = vpack.c.bf16 %v1113, %v1112
          %v1117 = vpack.c.bf16 %v1115, %v1114
          %v1118 = vld [vmem:[%s1] sm:$0xf]
          %v1119 = vld [vmem:[%s1 + $0x4] sm:$0xf]
          %v1120 = vld [vmem:[%s1 + $0x8] sm:$0xf]
          %v1121 = vld [vmem:[%s1 + $0xc] sm:$0xf]
          %v1122 = vld [vmem:[%s1 + $0x10] sm:$0xf]
          %v1123 = vld [vmem:[%s1 + $0x14] sm:$0xf]
          %v1124 = vld [vmem:[%s1 + $0x18] sm:$0xf]
          %v1125 = vld [vmem:[%s1 + $0x1c] sm:$0xf]
          %v1126 = vld [vmem:[%s1 + $0x20] sm:$0xf]
          %v1127 = vld [vmem:[%s1 + $0x24] sm:$0xf]
          %v1128 = vld [vmem:[%s1 + $0x28] sm:$0xf]
          %v1129 = vld [vmem:[%s1 + $0x2c] sm:$0xf]
          %v1130 = vld [vmem:[%s1 + $0x30] sm:$0xf]
          %v1131 = vld [vmem:[%s1 + $0x34] sm:$0xf]
          %v1132 = vld [vmem:[%s1 + $0x38] sm:$0xf]
          %v1133 = vld [vmem:[%s1 + $0x3c] sm:$0xf]
          %v1134 = vld [vmem:[%s2] sm:$0x1]
          %v1136 = vlaneseq
          %v1137 = vshrl.u32 %v1136, 7
          %v1138 = vsub.s32 0, %v1137
          %v1139 = vrot.slane %v1134, %v1138
          %v1157 = vunpack.c.l.b16 %v1118
          %v1158 = vunpack.c.l.b16 %v1119
          %v1159 = vunpack.c.l.b16 %v1120
          %v1160 = vunpack.c.l.b16 %v1121
          %v1161 = vunpack.c.l.b16 %v1122
          %v1162 = vunpack.c.l.b16 %v1123
          %v1163 = vunpack.c.l.b16 %v1124
          %v1164 = vunpack.c.l.b16 %v1125
          %v1165 = vunpack.c.l.b16 %v1126
          %v1166 = vunpack.c.l.b16 %v1127
          %v1167 = vunpack.c.l.b16 %v1128
          %v1168 = vunpack.c.l.b16 %v1129
          %v1169 = vunpack.c.l.b16 %v1130
          %v1170 = vunpack.c.l.b16 %v1131
          %v1171 = vunpack.c.l.b16 %v1132
          %v1172 = vunpack.c.l.b16 %v1133
          %v1173 = vpack.c.b16 %v1158, %v1157
          %v1174 = vpack.c.b16 %v1160, %v1159
          %v1175 = vpack.c.b16 %v1162, %v1161
          %v1176 = vpack.c.b16 %v1164, %v1163
          %v1177 = vpack.c.b16 %v1166, %v1165
          %v1178 = vpack.c.b16 %v1168, %v1167
          %v1179 = vpack.c.b16 %v1170, %v1169
          %v1180 = vpack.c.b16 %v1172, %v1171
          %1189 = vmatprep.subr.bf16.mxu0 0
          %1190 = vmatpush1.bf16.msra.mxu0 %v1173
          %1191 = vmatprep.subr.bf16.mxu0 0
          %1192 = vmatpush1.bf16.msra.mxu0 %v1174
          %1193 = vmatprep.subr.bf16.mxu0 0
          %1194 = vmatpush1.bf16.msra.mxu0 %v1175
          %1195 = vmatprep.subr.bf16.mxu0 0
          %1196 = vmatpush1.bf16.msra.mxu0 %v1176
          %1197 = vmatprep.subr.bf16.mxu0 0
          %1198 = vmatpush1.bf16.msra.mxu0 %v1177
          %1199 = vmatprep.subr.bf16.mxu0 0
          %1200 = vmatpush1.bf16.msra.mxu0 %v1178
          %1201 = vmatprep.subr.bf16.mxu0 0
          %1202 = vmatpush1.bf16.msra.mxu0 %v1179
          %1203 = vmatprep.subr.bf16.mxu0 0
          %1204 = vmatpush1.bf16.msra.mxu0 %v1180
          %1205 = vmatprep.subr.bf16.mxu0 0
          %1206 = vmatpush1.bf16.msra.mxu0 0
          %1207 = vmatprep.subr.bf16.mxu0 0
          %1208 = vmatpush1.bf16.msra.mxu0 0
          %1209 = vmatprep.subr.bf16.mxu0 0
          %1210 = vmatpush1.bf16.msra.mxu0 0
          %1211 = vmatprep.subr.bf16.mxu0 0
          %1212 = vmatpush1.bf16.msra.mxu0 0
          %1213 = vmatprep.subr.bf16.mxu0 0
          %1214 = vmatpush1.bf16.msra.mxu0 0
          %1215 = vmatprep.subr.bf16.mxu0 0
          %1216 = vmatpush1.bf16.msra.mxu0 0
          %1217 = vmatprep.subr.bf16.mxu0 0
          %1218 = vmatpush1.bf16.msra.mxu0 0
          %1219 = vmatprep.subr.bf16.mxu0 0
          %1220 = vmatpush1.bf16.msra.mxu0 0
          %1221 = vmatprep.mubr.bf16.mxu0 0
          %1222 = vmatmul.mubr.bf16.gmra.mrb[0].mxu0 %v1116
          %v1223 = vpop.f32.mrb[0].mxu0
          %v1224 = vadd.f32 %v1139, %v1223
          %v1225 = vpop.f32.mrb[0].mxu0
          %v1226 = vpop.f32.mrb[0].mxu0
          %v1227 = vadd.f32 %v1139, %v1226
          %v1228 = vpop.f32.mrb[0].mxu0
          %1229 = vmatprep.mubr.bf16.mxu0 0
          %1230 = vmatmul.mubr.bf16.gmra.mrb[0].mxu0 %v1117
          %v1231 = vpop.f32.mrb[0].mxu0
          %v1232 = vadd.f32 %v1139, %v1231
          %v1233 = vpop.f32.mrb[0].mxu0
          %v1234 = vpop.f32.mrb[0].mxu0
          %v1235 = vadd.f32 %v1139, %v1234
          %v1236 = vpop.f32.mrb[0].mxu0
          %1237 = vdwg.mxu0
          %v1238 = vld [vmem:[%s3] sm:$0xff]
          %v1239 = vld [vmem:[%s3 + $0x8] sm:$0xff]
          %v1240 = vadd.f32 %v1224, %v1238
          %v1241 = vadd.f32 %v1227, %v1239
          %v1242 = vadd.f32 %v1232, %v1238
          %v1243 = vadd.f32 %v1235, %v1239
          %1244 = vst [vmem:[#allocation2] sm:$0xff] %v1240
          %1245 = vst [vmem:[#allocation2 + $0x8] sm:$0xff] %v1241
          %1246 = vst [vmem:[#allocation2 + $0x10] sm:$0xff] %v1242
          %1247 = vst [vmem:[#allocation2 + $0x18] sm:$0xff] %v1243
          %v1248 = vlaneseq
          %v1249 = vshrl.u32 %v1248, 7
          %v1250 = vadd.s32 %v1249, 8
          %v1251 = vlaneseq
          %v1252 = vand.u32 %v1251, 127
          %vm1253 = vcmp.le.s32.totalorder %v1252, %v1249
          %vm1254 = vcmp.le.s32.totalorder %v1252, %v1250
          %v1255 = vsel %vm1253, 0.0, -1e+30
          %v1256 = vsel %vm1254, 0.0, -1e+30
          %vm1257 = vcmask 130048
          %1258 = vst.msk [vmem:[#allocation3] sm:$0xff] %vm1257, %v1255
          %1259 = vst.msk [vmem:[#allocation3 + $0x8] sm:$0xff] %vm1257, %v1256
        $region164: #{transformer_for_icd_forward.1} parent=99 // pred_fallthru
          _
        %v1260 = vld [vmem:[#allocation2] sm:$0xff]
        %v1261 = vld [vmem:[#allocation2 + $0x8] sm:$0xff]
        %v1262 = vld [vmem:[#allocation2 + $0x10] sm:$0xff]
        %v1263 = vld [vmem:[#allocation2 + $0x18] sm:$0xff]
        %v1264 = vld [vmem:[#allocation3] sm:$0xff]
        %v1265 = vld [vmem:[#allocation3 + $0x8] sm:$0xff]
        %v1266 = vld [vmem:[%s874] sm:$0x1]
        %v1267 = vld [vmem:[%s882] sm:$0x1]
        %1268 = vadd.xlane.f32.xlu0 %v1260
        %v1269 = vpop.xlane.xlu0 %1268
        %1270 = vadd.xlane.f32.xlu0 %v1261
        %v1271 = vpop.xlane.xlu0 %1270
        %1272 = vadd.xlane.f32.xlu0 %v1262
        %v1273 = vpop.xlane.xlu0 %1272
        %1274 = vadd.xlane.f32.xlu0 %v1263
        %v1275 = vpop.xlane.xlu0 %1274
        %v1276 = vrcp.pop 128.0
        %v1277 = vmul.f32 %v1269, %v1276
        %v1278 = vmul.f32 %v1271, %v1276
        %v1279 = vmul.f32 %v1273, %v1276
        %v1280 = vmul.f32 %v1275, %v1276
        %v1281 = vsub.f32 %v1260, %v1277
        %v1282 = vsub.f32 %v1261, %v1278
        %v1283 = vsub.f32 %v1262, %v1279
        %v1284 = vsub.f32 %v1263, %v1280
        %v1285 = vmul.f32 %v1281, %v1281
        %v1286 = vmul.f32 %v1282, %v1282
        %v1287 = vmul.f32 %v1283, %v1283
        %v1288 = vmul.f32 %v1284, %v1284
        %1289 = vadd.xlane.f32.xlu0 %v1285
        %v1290 = vpop.xlane.xlu0 %1289
        %1291 = vadd.xlane.f32.xlu0 %v1286
        %v1292 = vpop.xlane.xlu0 %1291
        %1293 = vadd.xlane.f32.xlu0 %v1287
        %v1294 = vpop.xlane.xlu0 %1293
        %1295 = vadd.xlane.f32.xlu0 %v1288
        %v1296 = vpop.xlane.xlu0 %1295
        %v1297 = vmul.f32 %v1290, %v1276
        %v1298 = vmul.f32 %v1292, %v1276
        %v1299 = vmul.f32 %v1294, %v1276
        %v1300 = vmul.f32 %v1296, %v1276
        %v1301 = vadd.f32 %v1297, 1e-05
        %v1302 = vadd.f32 %v1298, 1e-05
        %v1303 = vadd.f32 %v1299, 1e-05
        %v1304 = vadd.f32 %v1300, 1e-05
        %v1305 = vrsqrt.pop %v1301
        %v1306 = vrsqrt.pop %v1302
        %v1307 = vrsqrt.pop %v1303
        %v1308 = vrsqrt.pop %v1304
        %v1309 = vmul.f32 %v1281, %v1305
        %v1310 = vmul.f32 %v1282, %v1306
        %v1311 = vmul.f32 %v1283, %v1307
        %v1312 = vmul.f32 %v1284, %v1308
        %v1314 = vlaneseq
        %v1315 = vshrl.u32 %v1314, 7
        %v1316 = vsub.s32 0, %v1315
        %v1317 = vrot.slane %v1266, %v1316
        %v1319 = vmul.f32 %v1309, %v1317
        %v1320 = vmul.f32 %v1310, %v1317
        %v1321 = vmul.f32 %v1311, %v1317
        %v1322 = vmul.f32 %v1312, %v1317
        %v1324 = vlaneseq
        %v1325 = vshrl.u32 %v1324, 7
        %v1326 = vsub.s32 0, %v1325
        %v1327 = vrot.slane %v1267, %v1326
        %v1329 = vadd.f32 %v1319, %v1327
        %v1330 = vadd.f32 %v1320, %v1327
        %v1331 = vadd.f32 %v1321, %v1327
        %v1332 = vadd.f32 %v1322, %v1327
        %v1333 = vpack.c.bf16 %v1330, %v1329
        %v1334 = vpack.c.bf16 %v1332, %v1331
        %v1335 = vld [vmem:[%s891] sm:$0xff]
        %v1336 = vld [vmem:[%s891 + $0x8] sm:$0xf]
        %v1337 = vld [vmem:[%s891 + $0xc] sm:$0xff]
        %v1338 = vld [vmem:[%s891 + $0x14] sm:$0xf]
        %v1339 = vld [vmem:[%s891 + $0x18] sm:$0xff]
        %v1340 = vld [vmem:[%s891 + $0x20] sm:$0xf]
        %v1341 = vld [vmem:[%s891 + $0x24] sm:$0xff]
        %v1342 = vld [vmem:[%s891 + $0x2c] sm:$0xf]
        %v1343 = vld [vmem:[%s891 + $0x30] sm:$0xff]
        %v1344 = vld [vmem:[%s891 + $0x38] sm:$0xf]
        %v1345 = vld [vmem:[%s891 + $0x3c] sm:$0xff]
        %v1346 = vld [vmem:[%s891 + $0x44] sm:$0xf]
        %v1347 = vld [vmem:[%s891 + $0x48] sm:$0xff]
        %v1348 = vld [vmem:[%s891 + $0x50] sm:$0xf]
        %v1349 = vld [vmem:[%s891 + $0x54] sm:$0xff]
        %v1350 = vld [vmem:[%s891 + $0x5c] sm:$0xf]
        %v1351 = vld [vmem:[%s891 + $0x60] sm:$0xff]
        %v1352 = vld [vmem:[%s891 + $0x68] sm:$0xf]
        %v1353 = vld [vmem:[%s891 + $0x6c] sm:$0xff]
        %v1354 = vld [vmem:[%s891 + $0x74] sm:$0xf]
        %v1355 = vld [vmem:[%s891 + $0x78] sm:$0xff]
        %v1356 = vld [vmem:[%s891 + $0x80] sm:$0xf]
        %v1357 = vld [vmem:[%s891 + $0x84] sm:$0xff]
        %v1358 = vld [vmem:[%s891 + $0x8c] sm:$0xf]
        %v1359 = vld [vmem:[%s891 + $0x90] sm:$0xff]
        %v1360 = vld [vmem:[%s891 + $0x98] sm:$0xf]
        %v1361 = vld [vmem:[%s891 + $0x9c] sm:$0xff]
        %v1362 = vld [vmem:[%s891 + $0xa4] sm:$0xf]
        %v1363 = vld [vmem:[%s891 + $0xa8] sm:$0xff]
        %v1364 = vld [vmem:[%s891 + $0xb0] sm:$0xf]
        %v1365 = vld [vmem:[%s891 + $0xb4] sm:$0xff]
        %v1366 = vld [vmem:[%s891 + $0xbc] sm:$0xf]
        %v1367 = vld [vmem:[%s900] sm:$0x7]
        %v1369 = vlaneseq
        %v1370 = vshrl.u32 %v1369, 7
        %v1371 = vsub.s32 0, %v1370
        %v1372 = vrot.slane %v1367, %v1371
        %v1373 = vlaneseq
        %v1374 = vshrl.u32 %v1373, 7
        %v1375 = vsub.s32 1, %v1374
        %v1376 = vrot.slane %v1367, %v1375
        %v1377 = vlaneseq
        %v1378 = vshrl.u32 %v1377, 7
        %v1379 = vsub.s32 2, %v1378
        %v1380 = vrot.slane %v1367, %v1379
        %v1416 = vunpack.c.l.b16 %v1335
        %v1417 = vunpack.c.h.b16 %v1335
        %v1418 = vunpack.c.l.b16 %v1336
        %v1419 = vunpack.c.l.b16 %v1337
        %v1420 = vunpack.c.h.b16 %v1337
        %v1421 = vunpack.c.l.b16 %v1338
        %v1422 = vunpack.c.l.b16 %v1339
        %v1423 = vunpack.c.h.b16 %v1339
        %v1424 = vunpack.c.l.b16 %v1340
        %v1425 = vunpack.c.l.b16 %v1341
        %v1426 = vunpack.c.h.b16 %v1341
        %v1427 = vunpack.c.l.b16 %v1342
        %v1428 = vunpack.c.l.b16 %v1343
        %v1429 = vunpack.c.h.b16 %v1343
        %v1430 = vunpack.c.l.b16 %v1344
        %v1431 = vunpack.c.l.b16 %v1345
        %v1432 = vunpack.c.h.b16 %v1345
        %v1433 = vunpack.c.l.b16 %v1346
        %v1434 = vunpack.c.l.b16 %v1347
        %v1435 = vunpack.c.h.b16 %v1347
        %v1436 = vunpack.c.l.b16 %v1348
        %v1437 = vunpack.c.l.b16 %v1349
        %v1438 = vunpack.c.h.b16 %v1349
        %v1439 = vunpack.c.l.b16 %v1350
        %v1440 = vunpack.c.l.b16 %v1351
        %v1441 = vunpack.c.h.b16 %v1351
        %v1442 = vunpack.c.l.b16 %v1352
        %v1443 = vunpack.c.l.b16 %v1353
        %v1444 = vunpack.c.h.b16 %v1353
        %v1445 = vunpack.c.l.b16 %v1354
        %v1446 = vunpack.c.l.b16 %v1355
        %v1447 = vunpack.c.h.b16 %v1355
        %v1448 = vunpack.c.l.b16 %v1356
        %v1449 = vunpack.c.l.b16 %v1357
        %v1450 = vunpack.c.h.b16 %v1357
        %v1451 = vunpack.c.l.b16 %v1358
        %v1452 = vunpack.c.l.b16 %v1359
        %v1453 = vunpack.c.h.b16 %v1359
        %v1454 = vunpack.c.l.b16 %v1360
        %v1455 = vunpack.c.l.b16 %v1361
        %v1456 = vunpack.c.h.b16 %v1361
        %v1457 = vunpack.c.l.b16 %v1362
        %v1458 = vunpack.c.l.b16 %v1363
        %v1459 = vunpack.c.h.b16 %v1363
        %v1460 = vunpack.c.l.b16 %v1364
        %v1461 = vunpack.c.l.b16 %v1365
        %v1462 = vunpack.c.h.b16 %v1365
        %v1463 = vunpack.c.l.b16 %v1366
        %v1464 = vpack.c.b16 %v1419, %v1416
        %v1465 = vpack.c.b16 %v1420, %v1417
        %v1466 = vpack.c.b16 %v1421, %v1418
        %v1467 = vpack.c.b16 %v1425, %v1422
        %v1468 = vpack.c.b16 %v1426, %v1423
        %v1469 = vpack.c.b16 %v1427, %v1424
        %v1470 = vpack.c.b16 %v1431, %v1428
        %v1471 = vpack.c.b16 %v1432, %v1429
        %v1472 = vpack.c.b16 %v1433, %v1430
        %v1473 = vpack.c.b16 %v1437, %v1434
        %v1474 = vpack.c.b16 %v1438, %v1435
        %v1475 = vpack.c.b16 %v1439, %v1436
        %v1476 = vpack.c.b16 %v1443, %v1440
        %v1477 = vpack.c.b16 %v1444, %v1441
        %v1478 = vpack.c.b16 %v1445, %v1442
        %v1479 = vpack.c.b16 %v1449, %v1446
        %v1480 = vpack.c.b16 %v1450, %v1447
        %v1481 = vpack.c.b16 %v1451, %v1448
        %v1482 = vpack.c.b16 %v1455, %v1452
        %v1483 = vpack.c.b16 %v1456, %v1453
        %v1484 = vpack.c.b16 %v1457, %v1454
        %v1485 = vpack.c.b16 %v1461, %v1458
        %v1486 = vpack.c.b16 %v1462, %v1459
        %v1487 = vpack.c.b16 %v1463, %v1460
        %1512 = vmatprep.subr.bf16.mxu0 %v1465
        %1513 = vmatpush1.bf16.msra.mxu0 %v1464
        %1514 = vmatprep.subr.bf16.mxu0 %v1468
        %1515 = vmatpush1.bf16.msra.mxu0 %v1467
        %1516 = vmatprep.subr.bf16.mxu0 %v1471
        %1517 = vmatpush1.bf16.msra.mxu0 %v1470
        %1518 = vmatprep.subr.bf16.mxu0 %v1474
        %1519 = vmatpush1.bf16.msra.mxu0 %v1473
        %1520 = vmatprep.subr.bf16.mxu0 %v1477
        %1521 = vmatpush1.bf16.msra.mxu0 %v1476
        %1522 = vmatprep.subr.bf16.mxu0 %v1480
        %1523 = vmatpush1.bf16.msra.mxu0 %v1479
        %1524 = vmatprep.subr.bf16.mxu0 %v1483
        %1525 = vmatpush1.bf16.msra.mxu0 %v1482
        %1526 = vmatprep.subr.bf16.mxu0 %v1486
        %1527 = vmatpush1.bf16.msra.mxu0 %v1485
        %1528 = vmatprep.subr.bf16.mxu0 0
        %1529 = vmatpush1.bf16.msra.mxu0 0
        %1530 = vmatprep.subr.bf16.mxu0 0
        %1531 = vmatpush1.bf16.msra.mxu0 0
        %1532 = vmatprep.subr.bf16.mxu0 0
        %1533 = vmatpush1.bf16.msra.mxu0 0
        %1534 = vmatprep.subr.bf16.mxu0 0
        %1535 = vmatpush1.bf16.msra.mxu0 0
        %1536 = vmatprep.subr.bf16.mxu0 0
        %1537 = vmatpush1.bf16.msra.mxu0 0
        %1538 = vmatprep.subr.bf16.mxu0 0
        %1539 = vmatpush1.bf16.msra.mxu0 0
        %1540 = vmatprep.subr.bf16.mxu0 0
        %1541 = vmatpush1.bf16.msra.mxu0 0
        %1542 = vmatprep.subr.bf16.mxu0 0
        %1543 = vmatpush1.bf16.msra.mxu0 0
        %1544 = vmatprep.mubr.bf16.mxu0 0
        %1545 = vmatmul.mubr.bf16.gmra.mrb[0].mxu0 %v1333
        %v1546 = vpop.f32.mrb[0].mxu0
        %v1547 = vadd.f32 %v1372, %v1546
        %v1548 = vpop.f32.mrb[0].mxu0
        %v1549 = vadd.f32 %v1376, %v1548
        %v1550 = vpop.f32.mrb[0].mxu0
        %v1551 = vadd.f32 %v1372, %v1550
        %v1552 = vpop.f32.mrb[0].mxu0
        %v1553 = vadd.f32 %v1376, %v1552
        %1554 = vmatprep.mubr.bf16.mxu0 0
        %1555 = vmatmul.mubr.bf16.gmra.mrb[0].mxu0 %v1334
        %v1556 = vpop.f32.mrb[0].mxu0
        %v1557 = vadd.f32 %v1372, %v1556
        %v1558 = vpop.f32.mrb[0].mxu0
        %v1559 = vadd.f32 %v1376, %v1558
        %v1560 = vpop.f32.mrb[0].mxu0
        %v1561 = vadd.f32 %v1372, %v1560
        %v1562 = vpop.f32.mrb[0].mxu0
        %v1563 = vadd.f32 %v1376, %v1562
        %1564 = vdwg.mxu0
        %1565 = vmatprep.subr.bf16.mxu0 0
        %1566 = vmatpush1.bf16.msra.mxu0 %v1466
        %1567 = vmatprep.subr.bf16.mxu0 0
        %1568 = vmatpush1.bf16.msra.mxu0 %v1469
        %1569 = vmatprep.subr.bf16.mxu0 0
        %1570 = vmatpush1.bf16.msra.mxu0 %v1472
        %1571 = vmatprep.subr.bf16.mxu0 0
        %1572 = vmatpush1.bf16.msra.mxu0 %v1475
        %1573 = vmatprep.subr.bf16.mxu0 0
        %1574 = vmatpush1.bf16.msra.mxu0 %v1478
        %1575 = vmatprep.subr.bf16.mxu0 0
        %1576 = vmatpush1.bf16.msra.mxu0 %v1481
        %1577 = vmatprep.subr.bf16.mxu0 0
        %1578 = vmatpush1.bf16.msra.mxu0 %v1484
        %1579 = vmatprep.subr.bf16.mxu0 0
        %1580 = vmatpush1.bf16.msra.mxu0 %v1487
        %1581 = vmatprep.subr.bf16.mxu0 0
        %1582 = vmatpush1.bf16.msra.mxu0 0
        %1583 = vmatprep.subr.bf16.mxu0 0
        %1584 = vmatpush1.bf16.msra.mxu0 0
        %1585 = vmatprep.subr.bf16.mxu0 0
        %1586 = vmatpush1.bf16.msra.mxu0 0
        %1587 = vmatprep.subr.bf16.mxu0 0
        %1588 = vmatpush1.bf16.msra.mxu0 0
        %1589 = vmatprep.subr.bf16.mxu0 0
        %1590 = vmatpush1.bf16.msra.mxu0 0
        %1591 = vmatprep.subr.bf16.mxu0 0
        %1592 = vmatpush1.bf16.msra.mxu0 0
        %1593 = vmatprep.subr.bf16.mxu0 0
        %1594 = vmatpush1.bf16.msra.mxu0 0
        %1595 = vmatprep.subr.bf16.mxu0 0
        %1596 = vmatpush1.bf16.msra.mxu0 0
        %1597 = vmatprep.mubr.bf16.mxu0 0
        %1598 = vmatmul.mubr.bf16.gmra.mrb[0].mxu0 %v1333
        %v1599 = vpop.f32.mrb[0].mxu0
        %v1600 = vadd.f32 %v1380, %v1599
        %v1601 = vpop.f32.mrb[0].mxu0
        %v1602 = vpop.f32.mrb[0].mxu0
        %v1603 = vadd.f32 %v1380, %v1602
        %v1604 = vpop.f32.mrb[0].mxu0
        %1605 = vmatprep.mubr.bf16.mxu0 0
        %1606 = vmatmul.mubr.bf16.gmra.mrb[0].mxu0 %v1334
        %v1607 = vpop.f32.mrb[0].mxu0
        %v1608 = vadd.f32 %v1380, %v1607
        %v1609 = vpop.f32.mrb[0].mxu0
        %v1610 = vpop.f32.mrb[0].mxu0
        %v1611 = vadd.f32 %v1380, %v1610
        %v1612 = vpop.f32.mrb[0].mxu0
        %1613 = vdwg.mxu0
        %v1614 = vmul.f32 %v1547, 0.17677669
        %v1615 = vmul.f32 %v1551, 0.17677669
        %v1616 = vmul.f32 %v1557, 0.17677669
        %v1617 = vmul.f32 %v1561, 0.17677669
        %v1618 = vpack.c.bf16 %v1615, %v1614
        %v1619 = vpack.c.bf16 %v1617, %v1616
        %v1620 = vpack.c.bf16 %v1553, %v1549
        %v1621 = vpack.c.bf16 %v1563, %v1559
        %v1622 = vpack.c.bf16 %v1603, %v1600
        %v1623 = vpack.c.bf16 %v1611, %v1608
        %v1624 = vld [vmem:[%s1099] sm:$0xf]
        %v1625 = vld [vmem:[%s1099 + $0x4] sm:$0xf]
        %v1626 = vld [vmem:[%s1099 + $0x8] sm:$0xf]
        %v1627 = vld [vmem:[%s1099 + $0xc] sm:$0xf]
        %v1628 = vld [vmem:[%s1099 + $0x10] sm:$0xf]
        %v1629 = vld [vmem:[%s1099 + $0x14] sm:$0xf]
        %v1630 = vld [vmem:[%s1099 + $0x18] sm:$0xf]
        %v1631 = vld [vmem:[%s1099 + $0x1c] sm:$0xf]
        %v1632 = vld [vmem:[%s1099 + $0x20] sm:$0xf]
        %v1633 = vld [vmem:[%s1099 + $0x24] sm:$0xf]
        %v1634 = vld [vmem:[%s1099 + $0x28] sm:$0xf]
        %v1635 = vld [vmem:[%s1099 + $0x2c] sm:$0xf]
        %v1636 = vld [vmem:[%s1099 + $0x30] sm:$0xf]
        %v1637 = vld [vmem:[%s1099 + $0x34] sm:$0xf]
        %v1638 = vld [vmem:[%s1099 + $0x38] sm:$0xf]
        %v1639 = vld [vmem:[%s1099 + $0x3c] sm:$0xf]
        %vm1640 = vcmask 261120
        %v1642 = vsel %vm1640, %v1618, 0
        %v1645 = vsel %vm1640, %v1620, 0
        %1647 = vmatprep.subr.bf16.mxu0 0
        %1648 = vmatpush1.bf16.xpose.msra.mxu0 %v1645
        %1649 = vmatprep.subr.bf16.mxu0 0
        %1650 = vmatpush1.bf16.xpose.msra.mxu0 0
        %1651 = vmatprep.subr.bf16.mxu0 0
        %1652 = vmatpush1.bf16.xpose.msra.mxu0 0
        %1653 = vmatprep.subr.bf16.mxu0 0
        %1654 = vmatpush1.bf16.xpose.msra.mxu0 0
        %1655 = vmatprep.subr.bf16.mxu0 0
        %1656 = vmatpush1.bf16.xpose.msra.mxu0 0
        %1657 = vmatprep.subr.bf16.mxu0 0
        %1658 = vmatpush1.bf16.xpose.msra.mxu0 0
        %1659 = vmatprep.subr.bf16.mxu0 0
        %1660 = vmatpush1.bf16.xpose.msra.mxu0 0
        %1661 = vmatprep.subr.bf16.mxu0 0
        %1662 = vmatpush1.bf16.xpose.msra.mxu0 0
        %1663 = vmatprep.subr.bf16.mxu0 0
        %1664 = vmatpush1.bf16.xpose.msra.mxu0 0
        %1665 = vmatprep.subr.bf16.mxu0 0
        %1666 = vmatpush1.bf16.xpose.msra.mxu0 0
        %1667 = vmatprep.subr.bf16.mxu0 0
        %1668 = vmatpush1.bf16.xpose.msra.mxu0 0
        %1669 = vmatprep.subr.bf16.mxu0 0
        %1670 = vmatpush1.bf16.xpose.msra.mxu0 0
        %1671 = vmatprep.subr.bf16.mxu0 0
        %1672 = vmatpush1.bf16.xpose.msra.mxu0 0
        %1673 = vmatprep.subr.bf16.mxu0 0
        %1674 = vmatpush1.bf16.xpose.msra.mxu0 0
        %1675 = vmatprep.subr.bf16.mxu0 0
        %1676 = vmatpush1.bf16.xpose.msra.mxu0 0
        %1677 = vmatprep.subr.bf16.mxu0 0
        %1678 = vmatpush1.bf16.xpose.msra.mxu0 0
        %1679 = vmatprep.mubr.bf16.mxu0 0
        %1680 = vmatmul.mubr.bf16.gmra.mrb[0].mxu0 %v1642
        %v1681 = vpop.f32.mrb[0].mxu0
        %v1682 = vadd.f32 %v1264, %v1681
        %v1683 = vpop.f32.mrb[0].mxu0
        %v1684 = vpop.f32.mrb[0].mxu0
        %v1685 = vadd.f32 %v1265, %v1684
        %v1686 = vpop.f32.mrb[0].mxu0
        %1687 = vdwg.mxu0
        %v1689 = vsel %vm1640, %v1619, 0
        %v1692 = vsel %vm1640, %v1621, 0
        %1694 = vmatprep.subr.bf16.mxu0 0
        %1695 = vmatpush1.bf16.xpose.msra.mxu0 %v1692
        %1696 = vmatprep.subr.bf16.mxu0 0
        %1697 = vmatpush1.bf16.xpose.msra.mxu0 0
        %1698 = vmatprep.subr.bf16.mxu0 0
        %1699 = vmatpush1.bf16.xpose.msra.mxu0 0
        %1700 = vmatprep.subr.bf16.mxu0 0
        %1701 = vmatpush1.bf16.xpose.msra.mxu0 0
        %1702 = vmatprep.subr.bf16.mxu0 0
        %1703 = vmatpush1.bf16.xpose.msra.mxu0 0
        %1704 = vmatprep.subr.bf16.mxu0 0
        %1705 = vmatpush1.bf16.xpose.msra.mxu0 0
        %1706 = vmatprep.subr.bf16.mxu0 0
        %1707 = vmatpush1.bf16.xpose.msra.mxu0 0
        %1708 = vmatprep.subr.bf16.mxu0 0
        %1709 = vmatpush1.bf16.xpose.msra.mxu0 0
        %1710 = vmatprep.subr.bf16.mxu0 0
        %1711 = vmatpush1.bf16.xpose.msra.mxu0 0
        %1712 = vmatprep.subr.bf16.mxu0 0
        %1713 = vmatpush1.bf16.xpose.msra.mxu0 0
        %1714 = vmatprep.subr.bf16.mxu0 0
        %1715 = vmatpush1.bf16.xpose.msra.mxu0 0
        %1716 = vmatprep.subr.bf16.mxu0 0
        %1717 = vmatpush1.bf16.xpose.msra.mxu0 0
        %1718 = vmatprep.subr.bf16.mxu0 0
        %1719 = vmatpush1.bf16.xpose.msra.mxu0 0
        %1720 = vmatprep.subr.bf16.mxu0 0
        %1721 = vmatpush1.bf16.xpose.msra.mxu0 0
        %1722 = vmatprep.subr.bf16.mxu0 0
        %1723 = vmatpush1.bf16.xpose.msra.mxu0 0
        %1724 = vmatprep.subr.bf16.mxu0 0
        %1725 = vmatpush1.bf16.xpose.msra.mxu0 0
        %1726 = vmatprep.mubr.bf16.mxu0 0
        %1727 = vmatmul.mubr.bf16.gmra.mrb[0].mxu0 %v1689
        %v1728 = vpop.f32.mrb[0].mxu0
        %v1729 = vadd.f32 %v1264, %v1728
        %v1730 = vpop.f32.mrb[0].mxu0
        %v1731 = vpop.f32.mrb[0].mxu0
        %v1732 = vadd.f32 %v1265, %v1731
        %v1733 = vpop.f32.mrb[0].mxu0
        %1734 = vdwg.mxu0
        %vm1735 = vcmask 130048
        %v1736 = vsel %vm1735, %v1682, -inf
        %1737 = vmax.xlane.f32.xlu0 %v1736
        %v1738 = vpop.xlane.xlu0 %1737
        %v1739 = vsel %vm1735, %v1685, -inf
        %1740 = vmax.xlane.f32.xlu0 %v1739
        %v1741 = vpop.xlane.xlu0 %1740
        %v1742 = vsel %vm1735, %v1729, -inf
        %1743 = vmax.xlane.f32.xlu0 %v1742
        %v1744 = vpop.xlane.xlu0 %1743
        %v1745 = vsel %vm1735, %v1732, -inf
        %1746 = vmax.xlane.f32.xlu0 %v1745
        %v1747 = vpop.xlane.xlu0 %1746
        %v1748 = vsub.f32 %v1682, %v1738
        %v1749 = vsub.f32 %v1685, %v1741
        %v1750 = vsub.f32 %v1729, %v1744
        %v1751 = vsub.f32 %v1732, %v1747
        %v1752 = vmul.f32 %v1748, 1.442695
        %v1753 = vpow.pop %v1752
        %v1754 = vmul.f32 %v1749, 1.442695
        %v1755 = vpow.pop %v1754
        %v1756 = vmul.f32 %v1750, 1.442695
        %v1757 = vpow.pop %v1756
        %v1758 = vmul.f32 %v1751, 1.442695
        %v1759 = vpow.pop %v1758
        %v1760 = vsel %vm1735, %v1753, 0.0
        %1761 = vadd.xlane.f32.xlu0 %v1760
        %v1762 = vpop.xlane.xlu0 %1761
        %v1763 = vsel %vm1735, %v1755, 0.0
        %1764 = vadd.xlane.f32.xlu0 %v1763
        %v1765 = vpop.xlane.xlu0 %1764
        %v1766 = vsel %vm1735, %v1757, 0.0
        %1767 = vadd.xlane.f32.xlu0 %v1766
        %v1768 = vpop.xlane.xlu0 %1767
        %v1769 = vsel %vm1735, %v1759, 0.0
        %1770 = vadd.xlane.f32.xlu0 %v1769
        %v1771 = vpop.xlane.xlu0 %1770
        %v1772 = vrcp.pop %v1762
        %v1773 = vrcp.pop %v1765
        %v1774 = vrcp.pop %v1768
        %v1775 = vrcp.pop %v1771
        %v1776 = vmul.f32 %v1753, %v1772
        %v1777 = vmul.f32 %v1755, %v1773
        %v1778 = vmul.f32 %v1757, %v1774
        %v1779 = vmul.f32 %v1759, %v1775
        %v1780 = vpack.c.bf16 %v1777, %v1776
        %v1781 = vpack.c.bf16 %v1779, %v1778
        %v1783 = vsel %vm1735, %v1780, 0
        %1785 = vmatprep.subr.bf16.mxu0 0
        %1786 = vmatpush1.bf16.msra.mxu0 %v1622
        %1787 = vmatprep.subr.bf16.mxu0 0
        %1788 = vmatpush1.bf16.msra.mxu0 0
        %1789 = vmatprep.subr.bf16.mxu0 0
        %1790 = vmatpush1.bf16.msra.mxu0 0
        %1791 = vmatprep.subr.bf16.mxu0 0
        %1792 = vmatpush1.bf16.msra.mxu0 0
        %1793 = vmatprep.subr.bf16.mxu0 0
        %1794 = vmatpush1.bf16.msra.mxu0 0
        %1795 = vmatprep.subr.bf16.mxu0 0
        %1796 = vmatpush1.bf16.msra.mxu0 0
        %1797 = vmatprep.subr.bf16.mxu0 0
        %1798 = vmatpush1.bf16.msra.mxu0 0
        %1799 = vmatprep.subr.bf16.mxu0 0
        %1800 = vmatpush1.bf16.msra.mxu0 0
        %1801 = vmatprep.subr.bf16.mxu0 0
        %1802 = vmatpush1.bf16.msra.mxu0 0
        %1803 = vmatprep.subr.bf16.mxu0 0
        %1804 = vmatpush1.bf16.msra.mxu0 0
        %1805 = vmatprep.subr.bf16.mxu0 0
        %1806 = vmatpush1.bf16.msra.mxu0 0
        %1807 = vmatprep.subr.bf16.mxu0 0
        %1808 = vmatpush1.bf16.msra.mxu0 0
        %1809 = vmatprep.subr.bf16.mxu0 0
        %1810 = vmatpush1.bf16.msra.mxu0 0
        %1811 = vmatprep.subr.bf16.mxu0 0
        %1812 = vmatpush1.bf16.msra.mxu0 0
        %1813 = vmatprep.subr.bf16.mxu0 0
        %1814 = vmatpush1.bf16.msra.mxu0 0
        %1815 = vmatprep.subr.bf16.mxu0 0
        %1816 = vmatpush1.bf16.msra.mxu0 0
        %1817 = vmatprep.mubr.bf16.mxu0 0
        %1818 = vmatmul.mubr.bf16.gmra.mrb[0].mxu0 %v1783
        %v1819 = vpop.f32.mrb[0].mxu0
        %v1820 = vadd.f32 0.0, %v1819
        %v1821 = vpop.f32.mrb[0].mxu0
        %v1822 = vpop.f32.mrb[0].mxu0
        %v1823 = vadd.f32 0.0, %v1822
        %v1824 = vpop.f32.mrb[0].mxu0
        %1825 = vdwg.mxu0
        %v1827 = vsel %vm1735, %v1781, 0
        %1829 = vmatprep.subr.bf16.mxu0 0
        %1830 = vmatpush1.bf16.msra.mxu0 %v1623
        %1831 = vmatprep.subr.bf16.mxu0 0
        %1832 = vmatpush1.bf16.msra.mxu0 0
        %1833 = vmatprep.subr.bf16.mxu0 0
        %1834 = vmatpush1.bf16.msra.mxu0 0
        %1835 = vmatprep.subr.bf16.mxu0 0
        %1836 = vmatpush1.bf16.msra.mxu0 0
        %1837 = vmatprep.subr.bf16.mxu0 0
        %1838 = vmatpush1.bf16.msra.mxu0 0
        %1839 = vmatprep.subr.bf16.mxu0 0
        %1840 = vmatpush1.bf16.msra.mxu0 0
        %1841 = vmatprep.subr.bf16.mxu0 0
        %1842 = vmatpush1.bf16.msra.mxu0 0
        %1843 = vmatprep.subr.bf16.mxu0 0
        %1844 = vmatpush1.bf16.msra.mxu0 0
        %1845 = vmatprep.subr.bf16.mxu0 0
        %1846 = vmatpush1.bf16.msra.mxu0 0
        %1847 = vmatprep.subr.bf16.mxu0 0
        %1848 = vmatpush1.bf16.msra.mxu0 0
        %1849 = vmatprep.subr.bf16.mxu0 0
        %1850 = vmatpush1.bf16.msra.mxu0 0
        %1851 = vmatprep.subr.bf16.mxu0 0
        %1852 = vmatpush1.bf16.msra.mxu0 0
        %1853 = vmatprep.subr.bf16.mxu0 0
        %1854 = vmatpush1.bf16.msra.mxu0 0
        %1855 = vmatprep.subr.bf16.mxu0 0
        %1856 = vmatpush1.bf16.msra.mxu0 0
        %1857 = vmatprep.subr.bf16.mxu0 0
        %1858 = vmatpush1.bf16.msra.mxu0 0
        %1859 = vmatprep.subr.bf16.mxu0 0
        %1860 = vmatpush1.bf16.msra.mxu0 0
        %1861 = vmatprep.mubr.bf16.mxu0 0
        %1862 = vmatmul.mubr.bf16.gmra.mrb[0].mxu0 %v1827
        %v1863 = vpop.f32.mrb[0].mxu0
        %v1864 = vadd.f32 0.0, %v1863
        %v1865 = vpop.f32.mrb[0].mxu0
        %v1866 = vpop.f32.mrb[0].mxu0
        %v1867 = vadd.f32 0.0, %v1866
        %v1868 = vpop.f32.mrb[0].mxu0
        %1869 = vdwg.mxu0
        %v1870 = vpack.c.bf16 %v1823, %v1820
        %v1871 = vpack.c.bf16 %v1867, %v1864
        %1873 = vrot.lane.b32.xlu0 %v1618, 96
        %v1874 = vpop.permute.xlu0 %1873
        %1876 = vrot.lane.b32.xlu0 %v1620, 96
        %v1877 = vpop.permute.xlu0 %1876
        %v1879 = vsel %vm1640, %v1874, 0
        %v1882 = vsel %vm1640, %v1877, 0
        %1884 = vmatprep.subr.bf16.mxu0 0
        %1885 = vmatpush1.bf16.xpose.msra.mxu0 %v1882
        %1886 = vmatprep.subr.bf16.mxu0 0
        %1887 = vmatpush1.bf16.xpose.msra.mxu0 0
        %1888 = vmatprep.subr.bf16.mxu0 0
        %1889 = vmatpush1.bf16.xpose.msra.mxu0 0
        %1890 = vmatprep.subr.bf16.mxu0 0
        %1891 = vmatpush1.bf16.xpose.msra.mxu0 0
        %1892 = vmatprep.subr.bf16.mxu0 0
        %1893 = vmatpush1.bf16.xpose.msra.mxu0 0
        %1894 = vmatprep.subr.bf16.mxu0 0
        %1895 = vmatpush1.bf16.xpose.msra.mxu0 0
        %1896 = vmatprep.subr.bf16.mxu0 0
        %1897 = vmatpush1.bf16.xpose.msra.mxu0 0
        %1898 = vmatprep.subr.bf16.mxu0 0
        %1899 = vmatpush1.bf16.xpose.msra.mxu0 0
        %1900 = vmatprep.subr.bf16.mxu0 0
        %1901 = vmatpush1.bf16.xpose.msra.mxu0 0
        %1902 = vmatprep.subr.bf16.mxu0 0
        %1903 = vmatpush1.bf16.xpose.msra.mxu0 0
        %1904 = vmatprep.subr.bf16.mxu0 0
        %1905 = vmatpush1.bf16.xpose.msra.mxu0 0
        %1906 = vmatprep.subr.bf16.mxu0 0
        %1907 = vmatpush1.bf16.xpose.msra.mxu0 0
        %1908 = vmatprep.subr.bf16.mxu0 0
        %1909 = vmatpush1.bf16.xpose.msra.mxu0 0
        %1910 = vmatprep.subr.bf16.mxu0 0
        %1911 = vmatpush1.bf16.xpose.msra.mxu0 0
        %1912 = vmatprep.subr.bf16.mxu0 0
        %1913 = vmatpush1.bf16.xpose.msra.mxu0 0
        %1914 = vmatprep.subr.bf16.mxu0 0
        %1915 = vmatpush1.bf16.xpose.msra.mxu0 0
        %1916 = vmatprep.mubr.bf16.mxu0 0
        %1917 = vmatmul.mubr.bf16.gmra.mrb[0].mxu0 %v1879
        %v1918 = vpop.f32.mrb[0].mxu0
        %v1919 = vadd.f32 %v1264, %v1918
        %v1920 = vpop.f32.mrb[0].mxu0
        %v1921 = vpop.f32.mrb[0].mxu0
        %v1922 = vadd.f32 %v1265, %v1921
        %v1923 = vpop.f32.mrb[0].mxu0
        %1924 = vdwg.mxu0
        %1926 = vrot.lane.b32.xlu0 %v1619, 96
        %v1927 = vpop.permute.xlu0 %1926
        %1929 = vrot.lane.b32.xlu0 %v1621, 96
        %v1930 = vpop.permute.xlu0 %1929
        %v1932 = vsel %vm1640, %v1927, 0
        %v1935 = vsel %vm1640, %v1930, 0
        %1937 = vmatprep.subr.bf16.mxu0 0
        %1938 = vmatpush1.bf16.xpose.msra.mxu0 %v1935
        %1939 = vmatprep.subr.bf16.mxu0 0
        %1940 = vmatpush1.bf16.xpose.msra.mxu0 0
        %1941 = vmatprep.subr.bf16.mxu0 0
        %1942 = vmatpush1.bf16.xpose.msra.mxu0 0
        %1943 = vmatprep.subr.bf16.mxu0 0
        %1944 = vmatpush1.bf16.xpose.msra.mxu0 0
        %1945 = vmatprep.subr.bf16.mxu0 0
        %1946 = vmatpush1.bf16.xpose.msra.mxu0 0
        %1947 = vmatprep.subr.bf16.mxu0 0
        %1948 = vmatpush1.bf16.xpose.msra.mxu0 0
        %1949 = vmatprep.subr.bf16.mxu0 0
        %1950 = vmatpush1.bf16.xpose.msra.mxu0 0
        %1951 = vmatprep.subr.bf16.mxu0 0
        %1952 = vmatpush1.bf16.xpose.msra.mxu0 0
        %1953 = vmatprep.subr.bf16.mxu0 0
        %1954 = vmatpush1.bf16.xpose.msra.mxu0 0
        %1955 = vmatprep.subr.bf16.mxu0 0
        %1956 = vmatpush1.bf16.xpose.msra.mxu0 0
        %1957 = vmatprep.subr.bf16.mxu0 0
        %1958 = vmatpush1.bf16.xpose.msra.mxu0 0
        %1959 = vmatprep.subr.bf16.mxu0 0
        %1960 = vmatpush1.bf16.xpose.msra.mxu0 0
        %1961 = vmatprep.subr.bf16.mxu0 0
        %1962 = vmatpush1.bf16.xpose.msra.mxu0 0
        %1963 = vmatprep.subr.bf16.mxu0 0
        %1964 = vmatpush1.bf16.xpose.msra.mxu0 0
        %1965 = vmatprep.subr.bf16.mxu0 0
        %1966 = vmatpush1.bf16.xpose.msra.mxu0 0
        %1967 = vmatprep.subr.bf16.mxu0 0
        %1968 = vmatpush1.bf16.xpose.msra.mxu0 0
        %1969 = vmatprep.mubr.bf16.mxu0 0
        %1970 = vmatmul.mubr.bf16.gmra.mrb[0].mxu0 %v1932
        %v1971 = vpop.f32.mrb[0].mxu0
        %v1972 = vadd.f32 %v1264, %v1971
        %v1973 = vpop.f32.mrb[0].mxu0
        %v1974 = vpop.f32.mrb[0].mxu0
        %v1975 = vadd.f32 %v1265, %v1974
        %v1976 = vpop.f32.mrb[0].mxu0
        %1977 = vdwg.mxu0
        %v1978 = vsel %vm1735, %v1919, -inf
        %1979 = vmax.xlane.f32.xlu0 %v1978
        %v1980 = vpop.xlane.xlu0 %1979
        %v1981 = vsel %vm1735, %v1922, -inf
        %1982 = vmax.xlane.f32.xlu0 %v1981
        %v1983 = vpop.xlane.xlu0 %1982
        %v1984 = vsel %vm1735, %v1972, -inf
        %1985 = vmax.xlane.f32.xlu0 %v1984
        %v1986 = vpop.xlane.xlu0 %1985
        %v1987 = vsel %vm1735, %v1975, -inf
        %1988 = vmax.xlane.f32.xlu0 %v1987
        %v1989 = vpop.xlane.xlu0 %1988
        %v1990 = vsub.f32 %v1919, %v1980
        %v1991 = vsub.f32 %v1922, %v1983
        %v1992 = vsub.f32 %v1972, %v1986
        %v1993 = vsub.f32 %v1975, %v1989
        %v1994 = vmul.f32 %v1990, 1.442695
        %v1995 = vpow.pop %v1994
        %v1996 = vmul.f32 %v1991, 1.442695
        %v1997 = vpow.pop %v1996
        %v1998 = vmul.f32 %v1992, 1.442695
        %v1999 = vpow.pop %v1998
        %v2000 = vmul.f32 %v1993, 1.442695
        %v2001 = vpow.pop %v2000
        %v2002 = vsel %vm1735, %v1995, 0.0
        %2003 = vadd.xlane.f32.xlu0 %v2002
        %v2004 = vpop.xlane.xlu0 %2003
        %v2005 = vsel %vm1735, %v1997, 0.0
        %2006 = vadd.xlane.f32.xlu0 %v2005
        %v2007 = vpop.xlane.xlu0 %2006
        %v2008 = vsel %vm1735, %v1999, 0.0
        %2009 = vadd.xlane.f32.xlu0 %v2008
        %v2010 = vpop.xlane.xlu0 %2009
        %v2011 = vsel %vm1735, %v2001, 0.0
        %2012 = vadd.xlane.f32.xlu0 %v2011
        %v2013 = vpop.xlane.xlu0 %2012
        %v2014 = vrcp.pop %v2004
        %v2015 = vrcp.pop %v2007
        %v2016 = vrcp.pop %v2010
        %v2017 = vrcp.pop %v2013
        %v2018 = vmul.f32 %v1995, %v2014
        %v2019 = vmul.f32 %v1997, %v2015
        %v2020 = vmul.f32 %v1999, %v2016
        %v2021 = vmul.f32 %v2001, %v2017
        %v2022 = vpack.c.bf16 %v2019, %v2018
        %v2023 = vpack.c.bf16 %v2021, %v2020
        %2025 = vrot.lane.b32.xlu0 %v1622, 96
        %v2026 = vpop.permute.xlu0 %2025
        %v2029 = vsel %vm1735, %v2022, 0
        %2031 = vmatprep.subr.bf16.mxu0 0
        %2032 = vmatpush1.bf16.msra.mxu0 %v2026
        %2033 = vmatprep.subr.bf16.mxu0 0
        %2034 = vmatpush1.bf16.msra.mxu0 0
        %2035 = vmatprep.subr.bf16.mxu0 0
        %2036 = vmatpush1.bf16.msra.mxu0 0
        %2037 = vmatprep.subr.bf16.mxu0 0
        %2038 = vmatpush1.bf16.msra.mxu0 0
        %2039 = vmatprep.subr.bf16.mxu0 0
        %2040 = vmatpush1.bf16.msra.mxu0 0
        %2041 = vmatprep.subr.bf16.mxu0 0
        %2042 = vmatpush1.bf16.msra.mxu0 0
        %2043 = vmatprep.subr.bf16.mxu0 0
        %2044 = vmatpush1.bf16.msra.mxu0 0
        %2045 = vmatprep.subr.bf16.mxu0 0
        %2046 = vmatpush1.bf16.msra.mxu0 0
        %2047 = vmatprep.subr.bf16.mxu0 0
        %2048 = vmatpush1.bf16.msra.mxu0 0
        %2049 = vmatprep.subr.bf16.mxu0 0
        %2050 = vmatpush1.bf16.msra.mxu0 0
        %2051 = vmatprep.subr.bf16.mxu0 0
        %2052 = vmatpush1.bf16.msra.mxu0 0
        %2053 = vmatprep.subr.bf16.mxu0 0
        %2054 = vmatpush1.bf16.msra.mxu0 0
        %2055 = vmatprep.subr.bf16.mxu0 0
        %2056 = vmatpush1.bf16.msra.mxu0 0
        %2057 = vmatprep.subr.bf16.mxu0 0
        %2058 = vmatpush1.bf16.msra.mxu0 0
        %2059 = vmatprep.subr.bf16.mxu0 0
        %2060 = vmatpush1.bf16.msra.mxu0 0
        %2061 = vmatprep.subr.bf16.mxu0 0
        %2062 = vmatpush1.bf16.msra.mxu0 0
        %2063 = vmatprep.mubr.bf16.mxu0 0
        %2064 = vmatmul.mubr.bf16.gmra.mrb[0].mxu0 %v2029
        %v2065 = vpop.f32.mrb[0].mxu0
        %v2066 = vadd.f32 0.0, %v2065
        %v2067 = vpop.f32.mrb[0].mxu0
        %v2068 = vpop.f32.mrb[0].mxu0
        %v2069 = vadd.f32 0.0, %v2068
        %v2070 = vpop.f32.mrb[0].mxu0
        %2071 = vdwg.mxu0
        %2073 = vrot.lane.b32.xlu0 %v1623, 96
        %v2074 = vpop.permute.xlu0 %2073
        %v2077 = vsel %vm1735, %v2023, 0
        %2079 = vmatprep.subr.bf16.mxu0 0
        %2080 = vmatpush1.bf16.msra.mxu0 %v2074
        %2081 = vmatprep.subr.bf16.mxu0 0
        %2082 = vmatpush1.bf16.msra.mxu0 0
        %2083 = vmatprep.subr.bf16.mxu0 0
        %2084 = vmatpush1.bf16.msra.mxu0 0
        %2085 = vmatprep.subr.bf16.mxu0 0
        %2086 = vmatpush1.bf16.msra.mxu0 0
        %2087 = vmatprep.subr.bf16.mxu0 0
        %2088 = vmatpush1.bf16.msra.mxu0 0
        %2089 = vmatprep.subr.bf16.mxu0 0
        %2090 = vmatpush1.bf16.msra.mxu0 0
        %2091 = vmatprep.subr.bf16.mxu0 0
        %2092 = vmatpush1.bf16.msra.mxu0 0
        %2093 = vmatprep.subr.bf16.mxu0 0
        %2094 = vmatpush1.bf16.msra.mxu0 0
        %2095 = vmatprep.subr.bf16.mxu0 0
        %2096 = vmatpush1.bf16.msra.mxu0 0
        %2097 = vmatprep.subr.bf16.mxu0 0
        %2098 = vmatpush1.bf16.msra.mxu0 0
        %2099 = vmatprep.subr.bf16.mxu0 0
        %2100 = vmatpush1.bf16.msra.mxu0 0
        %2101 = vmatprep.subr.bf16.mxu0 0
        %2102 = vmatpush1.bf16.msra.mxu0 0
        %2103 = vmatprep.subr.bf16.mxu0 0
        %2104 = vmatpush1.bf16.msra.mxu0 0
        %2105 = vmatprep.subr.bf16.mxu0 0
        %2106 = vmatpush1.bf16.msra.mxu0 0
        %2107 = vmatprep.subr.bf16.mxu0 0
        %2108 = vmatpush1.bf16.msra.mxu0 0
        %2109 = vmatprep.subr.bf16.mxu0 0
        %2110 = vmatpush1.bf16.msra.mxu0 0
        %2111 = vmatprep.mubr.bf16.mxu0 0
        %2112 = vmatmul.mubr.bf16.gmra.mrb[0].mxu0 %v2077
        %v2113 = vpop.f32.mrb[0].mxu0
        %v2114 = vadd.f32 0.0, %v2113
        %v2115 = vpop.f32.mrb[0].mxu0
        %v2116 = vpop.f32.mrb[0].mxu0
        %v2117 = vadd.f32 0.0, %v2116
        %v2118 = vpop.f32.mrb[0].mxu0
        %2119 = vdwg.mxu0
        %v2120 = vpack.c.bf16 %v2069, %v2066
        %v2121 = vpack.c.bf16 %v2117, %v2114
        %v2126 = vunpack.c.l.b16 %v1628
        %v2127 = vunpack.c.l.b16 %v1629
        %v2128 = vunpack.c.l.b16 %v1630
        %v2129 = vunpack.c.l.b16 %v1631
        %v2130 = vpack.c.b16 %v2127, %v2126
        %v2131 = vpack.c.b16 %v2129, %v2128
        %v2135 = vsel %vm1640, %v2120, 0
        %v2138 = vsel %vm1640, %v2121, 0
        %2140 = vmatprep.subr.bf16.mxu0 0
        %2141 = vmatpush1.bf16.msra.mxu0 %v2130
        %2142 = vmatprep.subr.bf16.mxu0 0
        %2143 = vmatpush1.bf16.msra.mxu0 %v2131
        %2144 = vmatprep.subr.bf16.mxu0 0
        %2145 = vmatpush1.bf16.msra.mxu0 0
        %2146 = vmatprep.subr.bf16.mxu0 0
        %2147 = vmatpush1.bf16.msra.mxu0 0
        %2148 = vmatprep.subr.bf16.mxu0 0
        %2149 = vmatpush1.bf16.msra.mxu0 0
        %2150 = vmatprep.subr.bf16.mxu0 0
        %2151 = vmatpush1.bf16.msra.mxu0 0
        %2152 = vmatprep.subr.bf16.mxu0 0
        %2153 = vmatpush1.bf16.msra.mxu0 0
        %2154 = vmatprep.subr.bf16.mxu0 0
        %2155 = vmatpush1.bf16.msra.mxu0 0
        %2156 = vmatprep.subr.bf16.mxu0 0
        %2157 = vmatpush1.bf16.msra.mxu0 0
        %2158 = vmatprep.subr.bf16.mxu0 0
        %2159 = vmatpush1.bf16.msra.mxu0 0
        %2160 = vmatprep.subr.bf16.mxu0 0
        %2161 = vmatpush1.bf16.msra.mxu0 0
        %2162 = vmatprep.subr.bf16.mxu0 0
        %2163 = vmatpush1.bf16.msra.mxu0 0
        %2164 = vmatprep.subr.bf16.mxu0 0
        %2165 = vmatpush1.bf16.msra.mxu0 0
        %2166 = vmatprep.subr.bf16.mxu0 0
        %2167 = vmatpush1.bf16.msra.mxu0 0
        %2168 = vmatprep.subr.bf16.mxu0 0
        %2169 = vmatpush1.bf16.msra.mxu0 0
        %2170 = vmatprep.subr.bf16.mxu0 0
        %2171 = vmatpush1.bf16.msra.mxu0 0
        %2172 = vmatprep.mubr.bf16.mxu0 0
        %2173 = vmatmul.mubr.bf16.gmra.mrb[0].mxu0 %v2135
        %v2174 = vpop.f32.mrb[0].mxu0
        %v2175 = vadd.f32 0.0, %v2174
        %v2176 = vpop.f32.mrb[0].mxu0
        %v2177 = vpop.f32.mrb[0].mxu0
        %v2178 = vadd.f32 0.0, %v2177
        %v2179 = vpop.f32.mrb[0].mxu0
        %2180 = vmatprep.mubr.bf16.mxu0 0
        %2181 = vmatmul.mubr.bf16.gmra.mrb[0].mxu0 %v2138
        %v2182 = vpop.f32.mrb[0].mxu0
        %v2183 = vadd.f32 0.0, %v2182
        %v2184 = vpop.f32.mrb[0].mxu0
        %v2185 = vpop.f32.mrb[0].mxu0
        %v2186 = vadd.f32 0.0, %v2185
        %v2187 = vpop.f32.mrb[0].mxu0
        %2188 = vdwg.mxu0
        %v2193 = vunpack.c.l.b16 %v1624
        %v2194 = vunpack.c.l.b16 %v1625
        %v2195 = vunpack.c.l.b16 %v1626
        %v2196 = vunpack.c.l.b16 %v1627
        %v2197 = vpack.c.b16 %v2194, %v2193
        %v2198 = vpack.c.b16 %v2196, %v2195
        %v2202 = vsel %vm1640, %v1870, 0
        %v2205 = vsel %vm1640, %v1871, 0
        %2207 = vmatprep.subr.bf16.mxu0 0
        %2208 = vmatpush1.bf16.msra.mxu0 %v2197
        %2209 = vmatprep.subr.bf16.mxu0 0
        %2210 = vmatpush1.bf16.msra.mxu0 %v2198
        %2211 = vmatprep.subr.bf16.mxu0 0
        %2212 = vmatpush1.bf16.msra.mxu0 0
        %2213 = vmatprep.subr.bf16.mxu0 0
        %2214 = vmatpush1.bf16.msra.mxu0 0
        %2215 = vmatprep.subr.bf16.mxu0 0
        %2216 = vmatpush1.bf16.msra.mxu0 0
        %2217 = vmatprep.subr.bf16.mxu0 0
        %2218 = vmatpush1.bf16.msra.mxu0 0
        %2219 = vmatprep.subr.bf16.mxu0 0
        %2220 = vmatpush1.bf16.msra.mxu0 0
        %2221 = vmatprep.subr.bf16.mxu0 0
        %2222 = vmatpush1.bf16.msra.mxu0 0
        %2223 = vmatprep.subr.bf16.mxu0 0
        %2224 = vmatpush1.bf16.msra.mxu0 0
        %2225 = vmatprep.subr.bf16.mxu0 0
        %2226 = vmatpush1.bf16.msra.mxu0 0
        %2227 = vmatprep.subr.bf16.mxu0 0
        %2228 = vmatpush1.bf16.msra.mxu0 0
        %2229 = vmatprep.subr.bf16.mxu0 0
        %2230 = vmatpush1.bf16.msra.mxu0 0
        %2231 = vmatprep.subr.bf16.mxu0 0
        %2232 = vmatpush1.bf16.msra.mxu0 0
        %2233 = vmatprep.subr.bf16.mxu0 0
        %2234 = vmatpush1.bf16.msra.mxu0 0
        %2235 = vmatprep.subr.bf16.mxu0 0
        %2236 = vmatpush1.bf16.msra.mxu0 0
        %2237 = vmatprep.subr.bf16.mxu0 0
        %2238 = vmatpush1.bf16.msra.mxu0 0
        %2239 = vmatprep.mubr.bf16.mxu0 0
        %2240 = vmatmul.mubr.bf16.gmra.mrb[0].mxu0 %v2202
        %v2241 = vpop.f32.mrb[0].mxu0
        %v2242 = vadd.f32 %v2175, %v2241
        %v2243 = vpop.f32.mrb[0].mxu0
        %v2244 = vpop.f32.mrb[0].mxu0
        %v2245 = vadd.f32 %v2178, %v2244
        %v2246 = vpop.f32.mrb[0].mxu0
        %2247 = vmatprep.mubr.bf16.mxu0 0
        %2248 = vmatmul.mubr.bf16.gmra.mrb[0].mxu0 %v2205
        %v2249 = vpop.f32.mrb[0].mxu0
        %v2250 = vadd.f32 %v2183, %v2249
        %v2251 = vpop.f32.mrb[0].mxu0
        %v2252 = vpop.f32.mrb[0].mxu0
        %v2253 = vadd.f32 %v2186, %v2252
        %v2254 = vpop.f32.mrb[0].mxu0
        %2255 = vdwg.mxu0
        %2256 = vrot.lane.b32.xlu0 %v1618, 64
        %v2257 = vpop.permute.xlu0 %2256
        %2258 = vrot.lane.b32.xlu0 %v1620, 64
        %v2259 = vpop.permute.xlu0 %2258
        %v2261 = vsel %vm1640, %v2257, 0
        %v2264 = vsel %vm1640, %v2259, 0
        %2266 = vmatprep.subr.bf16.mxu0 0
        %2267 = vmatpush1.bf16.xpose.msra.mxu0 %v2264
        %2268 = vmatprep.subr.bf16.mxu0 0
        %2269 = vmatpush1.bf16.xpose.msra.mxu0 0
        %2270 = vmatprep.subr.bf16.mxu0 0
        %2271 = vmatpush1.bf16.xpose.msra.mxu0 0
        %2272 = vmatprep.subr.bf16.mxu0 0
        %2273 = vmatpush1.bf16.xpose.msra.mxu0 0
        %2274 = vmatprep.subr.bf16.mxu0 0
        %2275 = vmatpush1.bf16.xpose.msra.mxu0 0
        %2276 = vmatprep.subr.bf16.mxu0 0
        %2277 = vmatpush1.bf16.xpose.msra.mxu0 0
        %2278 = vmatprep.subr.bf16.mxu0 0
        %2279 = vmatpush1.bf16.xpose.msra.mxu0 0
        %2280 = vmatprep.subr.bf16.mxu0 0
        %2281 = vmatpush1.bf16.xpose.msra.mxu0 0
        %2282 = vmatprep.subr.bf16.mxu0 0
        %2283 = vmatpush1.bf16.xpose.msra.mxu0 0
        %2284 = vmatprep.subr.bf16.mxu0 0
        %2285 = vmatpush1.bf16.xpose.msra.mxu0 0
        %2286 = vmatprep.subr.bf16.mxu0 0
        %2287 = vmatpush1.bf16.xpose.msra.mxu0 0
        %2288 = vmatprep.subr.bf16.mxu0 0
        %2289 = vmatpush1.bf16.xpose.msra.mxu0 0
        %2290 = vmatprep.subr.bf16.mxu0 0
        %2291 = vmatpush1.bf16.xpose.msra.mxu0 0
        %2292 = vmatprep.subr.bf16.mxu0 0
        %2293 = vmatpush1.bf16.xpose.msra.mxu0 0
        %2294 = vmatprep.subr.bf16.mxu0 0
        %2295 = vmatpush1.bf16.xpose.msra.mxu0 0
        %2296 = vmatprep.subr.bf16.mxu0 0
        %2297 = vmatpush1.bf16.xpose.msra.mxu0 0
        %2298 = vmatprep.mubr.bf16.mxu0 0
        %2299 = vmatmul.mubr.bf16.gmra.mrb[0].mxu0 %v2261
        %v2300 = vpop.f32.mrb[0].mxu0
        %v2301 = vadd.f32 %v1264, %v2300
        %v2302 = vpop.f32.mrb[0].mxu0
        %v2303 = vpop.f32.mrb[0].mxu0
        %v2304 = vadd.f32 %v1265, %v2303
        %v2305 = vpop.f32.mrb[0].mxu0
        %2306 = vdwg.mxu0
        %2307 = vrot.lane.b32.xlu0 %v1619, 64
        %v2308 = vpop.permute.xlu0 %2307
        %2309 = vrot.lane.b32.xlu0 %v1621, 64
        %v2310 = vpop.permute.xlu0 %2309
        %v2312 = vsel %vm1640, %v2308, 0
        %v2315 = vsel %vm1640, %v2310, 0
        %2317 = vmatprep.subr.bf16.mxu0 0
        %2318 = vmatpush1.bf16.xpose.msra.mxu0 %v2315
        %2319 = vmatprep.subr.bf16.mxu0 0
        %2320 = vmatpush1.bf16.xpose.msra.mxu0 0
        %2321 = vmatprep.subr.bf16.mxu0 0
        %2322 = vmatpush1.bf16.xpose.msra.mxu0 0
        %2323 = vmatprep.subr.bf16.mxu0 0
        %2324 = vmatpush1.bf16.xpose.msra.mxu0 0
        %2325 = vmatprep.subr.bf16.mxu0 0
        %2326 = vmatpush1.bf16.xpose.msra.mxu0 0
        %2327 = vmatprep.subr.bf16.mxu0 0
        %2328 = vmatpush1.bf16.xpose.msra.mxu0 0
        %2329 = vmatprep.subr.bf16.mxu0 0
        %2330 = vmatpush1.bf16.xpose.msra.mxu0 0
        %2331 = vmatprep.subr.bf16.mxu0 0
        %2332 = vmatpush1.bf16.xpose.msra.mxu0 0
        %2333 = vmatprep.subr.bf16.mxu0 0
        %2334 = vmatpush1.bf16.xpose.msra.mxu0 0
        %2335 = vmatprep.subr.bf16.mxu0 0
        %2336 = vmatpush1.bf16.xpose.msra.mxu0 0
        %2337 = vmatprep.subr.bf16.mxu0 0
        %2338 = vmatpush1.bf16.xpose.msra.mxu0 0
        %2339 = vmatprep.subr.bf16.mxu0 0
        %2340 = vmatpush1.bf16.xpose.msra.mxu0 0
        %2341 = vmatprep.subr.bf16.mxu0 0
        %2342 = vmatpush1.bf16.xpose.msra.mxu0 0
        %2343 = vmatprep.subr.bf16.mxu0 0
        %2344 = vmatpush1.bf16.xpose.msra.mxu0 0
        %2345 = vmatprep.subr.bf16.mxu0 0
        %2346 = vmatpush1.bf16.xpose.msra.mxu0 0
        %2347 = vmatprep.subr.bf16.mxu0 0
        %2348 = vmatpush1.bf16.xpose.msra.mxu0 0
        %2349 = vmatprep.mubr.bf16.mxu0 0
        %2350 = vmatmul.mubr.bf16.gmra.mrb[0].mxu0 %v2312
        %v2351 = vpop.f32.mrb[0].mxu0
        %v2352 = vadd.f32 %v1264, %v2351
        %v2353 = vpop.f32.mrb[0].mxu0
        %v2354 = vpop.f32.mrb[0].mxu0
        %v2355 = vadd.f32 %v1265, %v2354
        %v2356 = vpop.f32.mrb[0].mxu0
        %2357 = vdwg.mxu0
        %v2358 = vsel %vm1735, %v2301, -inf
        %2359 = vmax.xlane.f32.xlu0 %v2358
        %v2360 = vpop.xlane.xlu0 %2359
        %v2361 = vsel %vm1735, %v2304, -inf
        %2362 = vmax.xlane.f32.xlu0 %v2361
        %v2363 = vpop.xlane.xlu0 %2362
        %v2364 = vsel %vm1735, %v2352, -inf
        %2365 = vmax.xlane.f32.xlu0 %v2364
        %v2366 = vpop.xlane.xlu0 %2365
        %v2367 = vsel %vm1735, %v2355, -inf
        %2368 = vmax.xlane.f32.xlu0 %v2367
        %v2369 = vpop.xlane.xlu0 %2368
        %v2370 = vsub.f32 %v2301, %v2360
        %v2371 = vsub.f32 %v2304, %v2363
        %v2372 = vsub.f32 %v2352, %v2366
        %v2373 = vsub.f32 %v2355, %v2369
        %v2374 = vmul.f32 %v2370, 1.442695
        %v2375 = vpow.pop %v2374
        %v2376 = vmul.f32 %v2371, 1.442695
        %v2377 = vpow.pop %v2376
        %v2378 = vmul.f32 %v2372, 1.442695
        %v2379 = vpow.pop %v2378
        %v2380 = vmul.f32 %v2373, 1.442695
        %v2381 = vpow.pop %v2380
        %v2382 = vsel %vm1735, %v2375, 0.0
        %2383 = vadd.xlane.f32.xlu0 %v2382
        %v2384 = vpop.xlane.xlu0 %2383
        %v2385 = vsel %vm1735, %v2377, 0.0
        %2386 = vadd.xlane.f32.xlu0 %v2385
        %v2387 = vpop.xlane.xlu0 %2386
        %v2388 = vsel %vm1735, %v2379, 0.0
        %2389 = vadd.xlane.f32.xlu0 %v2388
        %v2390 = vpop.xlane.xlu0 %2389
        %v2391 = vsel %vm1735, %v2381, 0.0
        %2392 = vadd.xlane.f32.xlu0 %v2391
        %v2393 = vpop.xlane.xlu0 %2392
        %v2394 = vrcp.pop %v2384
        %v2395 = vrcp.pop %v2387
        %v2396 = vrcp.pop %v2390
        %v2397 = vrcp.pop %v2393
        %v2398 = vmul.f32 %v2375, %v2394
        %v2399 = vmul.f32 %v2377, %v2395
        %v2400 = vmul.f32 %v2379, %v2396
        %v2401 = vmul.f32 %v2381, %v2397
        %v2402 = vpack.c.bf16 %v2399, %v2398
        %v2403 = vpack.c.bf16 %v2401, %v2400
        %2404 = vrot.lane.b32.xlu0 %v1622, 64
        %v2405 = vpop.permute.xlu0 %2404
        %v2408 = vsel %vm1735, %v2402, 0
        %2410 = vmatprep.subr.bf16.mxu0 0
        %2411 = vmatpush1.bf16.msra.mxu0 %v2405
        %2412 = vmatprep.subr.bf16.mxu0 0
        %2413 = vmatpush1.bf16.msra.mxu0 0
        %2414 = vmatprep.subr.bf16.mxu0 0
        %2415 = vmatpush1.bf16.msra.mxu0 0
        %2416 = vmatprep.subr.bf16.mxu0 0
        %2417 = vmatpush1.bf16.msra.mxu0 0
        %2418 = vmatprep.subr.bf16.mxu0 0
        %2419 = vmatpush1.bf16.msra.mxu0 0
        %2420 = vmatprep.subr.bf16.mxu0 0
        %2421 = vmatpush1.bf16.msra.mxu0 0
        %2422 = vmatprep.subr.bf16.mxu0 0
        %2423 = vmatpush1.bf16.msra.mxu0 0
        %2424 = vmatprep.subr.bf16.mxu0 0
        %2425 = vmatpush1.bf16.msra.mxu0 0
        %2426 = vmatprep.subr.bf16.mxu0 0
        %2427 = vmatpush1.bf16.msra.mxu0 0
        %2428 = vmatprep.subr.bf16.mxu0 0
        %2429 = vmatpush1.bf16.msra.mxu0 0
        %2430 = vmatprep.subr.bf16.mxu0 0
        %2431 = vmatpush1.bf16.msra.mxu0 0
        %2432 = vmatprep.subr.bf16.mxu0 0
        %2433 = vmatpush1.bf16.msra.mxu0 0
        %2434 = vmatprep.subr.bf16.mxu0 0
        %2435 = vmatpush1.bf16.msra.mxu0 0
        %2436 = vmatprep.subr.bf16.mxu0 0
        %2437 = vmatpush1.bf16.msra.mxu0 0
        %2438 = vmatprep.subr.bf16.mxu0 0
        %2439 = vmatpush1.bf16.msra.mxu0 0
        %2440 = vmatprep.subr.bf16.mxu0 0
        %2441 = vmatpush1.bf16.msra.mxu0 0
        %2442 = vmatprep.mubr.bf16.mxu0 0
        %2443 = vmatmul.mubr.bf16.gmra.mrb[0].mxu0 %v2408
        %v2444 = vpop.f32.mrb[0].mxu0
        %v2445 = vadd.f32 0.0, %v2444
        %v2446 = vpop.f32.mrb[0].mxu0
        %v2447 = vpop.f32.mrb[0].mxu0
        %v2448 = vadd.f32 0.0, %v2447
        %v2449 = vpop.f32.mrb[0].mxu0
        %2450 = vdwg.mxu0
        %2451 = vrot.lane.b32.xlu0 %v1623, 64
        %v2452 = vpop.permute.xlu0 %2451
        %v2455 = vsel %vm1735, %v2403, 0
        %2457 = vmatprep.subr.bf16.mxu0 0
        %2458 = vmatpush1.bf16.msra.mxu0 %v2452
        %2459 = vmatprep.subr.bf16.mxu0 0
        %2460 = vmatpush1.bf16.msra.mxu0 0
        %2461 = vmatprep.subr.bf16.mxu0 0
        %2462 = vmatpush1.bf16.msra.mxu0 0
        %2463 = vmatprep.subr.bf16.mxu0 0
        %2464 = vmatpush1.bf16.msra.mxu0 0
        %2465 = vmatprep.subr.bf16.mxu0 0
        %2466 = vmatpush1.bf16.msra.mxu0 0
        %2467 = vmatprep.subr.bf16.mxu0 0
        %2468 = vmatpush1.bf16.msra.mxu0 0
        %2469 = vmatprep.subr.bf16.mxu0 0
        %2470 = vmatpush1.bf16.msra.mxu0 0
        %2471 = vmatprep.subr.bf16.mxu0 0
        %2472 = vmatpush1.bf16.msra.mxu0 0
        %2473 = vmatprep.subr.bf16.mxu0 0
        %2474 = vmatpush1.bf16.msra.mxu0 0
        %2475 = vmatprep.subr.bf16.mxu0 0
        %2476 = vmatpush1.bf16.msra.mxu0 0
        %2477 = vmatprep.subr.bf16.mxu0 0
        %2478 = vmatpush1.bf16.msra.mxu0 0
        %2479 = vmatprep.subr.bf16.mxu0 0
        %2480 = vmatpush1.bf16.msra.mxu0 0
        %2481 = vmatprep.subr.bf16.mxu0 0
        %2482 = vmatpush1.bf16.msra.mxu0 0
        %2483 = vmatprep.subr.bf16.mxu0 0
        %2484 = vmatpush1.bf16.msra.mxu0 0
        %2485 = vmatprep.subr.bf16.mxu0 0
        %2486 = vmatpush1.bf16.msra.mxu0 0
        %2487 = vmatprep.subr.bf16.mxu0 0
        %2488 = vmatpush1.bf16.msra.mxu0 0
        %2489 = vmatprep.mubr.bf16.mxu0 0
        %2490 = vmatmul.mubr.bf16.gmra.mrb[0].mxu0 %v2455
        %v2491 = vpop.f32.mrb[0].mxu0
        %v2492 = vadd.f32 0.0, %v2491
        %v2493 = vpop.f32.mrb[0].mxu0
        %v2494 = vpop.f32.mrb[0].mxu0
        %v2495 = vadd.f32 0.0, %v2494
        %v2496 = vpop.f32.mrb[0].mxu0
        %2497 = vdwg.mxu0
        %v2498 = vpack.c.bf16 %v2448, %v2445
        %v2499 = vpack.c.bf16 %v2495, %v2492
        %v2504 = vunpack.c.l.b16 %v1632
        %v2505 = vunpack.c.l.b16 %v1633
        %v2506 = vunpack.c.l.b16 %v1634
        %v2507 = vunpack.c.l.b16 %v1635
        %v2508 = vpack.c.b16 %v2505, %v2504
        %v2509 = vpack.c.b16 %v2507, %v2506
        %v2513 = vsel %vm1640, %v2498, 0
        %v2516 = vsel %vm1640, %v2499, 0
        %2518 = vmatprep.subr.bf16.mxu0 0
        %2519 = vmatpush1.bf16.msra.mxu0 %v2508
        %2520 = vmatprep.subr.bf16.mxu0 0
        %2521 = vmatpush1.bf16.msra.mxu0 %v2509
        %2522 = vmatprep.subr.bf16.mxu0 0
        %2523 = vmatpush1.bf16.msra.mxu0 0
        %2524 = vmatprep.subr.bf16.mxu0 0
        %2525 = vmatpush1.bf16.msra.mxu0 0
        %2526 = vmatprep.subr.bf16.mxu0 0
        %2527 = vmatpush1.bf16.msra.mxu0 0
        %2528 = vmatprep.subr.bf16.mxu0 0
        %2529 = vmatpush1.bf16.msra.mxu0 0
        %2530 = vmatprep.subr.bf16.mxu0 0
        %2531 = vmatpush1.bf16.msra.mxu0 0
        %2532 = vmatprep.subr.bf16.mxu0 0
        %2533 = vmatpush1.bf16.msra.mxu0 0
        %2534 = vmatprep.subr.bf16.mxu0 0
        %2535 = vmatpush1.bf16.msra.mxu0 0
        %2536 = vmatprep.subr.bf16.mxu0 0
        %2537 = vmatpush1.bf16.msra.mxu0 0
        %2538 = vmatprep.subr.bf16.mxu0 0
        %2539 = vmatpush1.bf16.msra.mxu0 0
        %2540 = vmatprep.subr.bf16.mxu0 0
        %2541 = vmatpush1.bf16.msra.mxu0 0
        %2542 = vmatprep.subr.bf16.mxu0 0
        %2543 = vmatpush1.bf16.msra.mxu0 0
        %2544 = vmatprep.subr.bf16.mxu0 0
        %2545 = vmatpush1.bf16.msra.mxu0 0
        %2546 = vmatprep.subr.bf16.mxu0 0
        %2547 = vmatpush1.bf16.msra.mxu0 0
        %2548 = vmatprep.subr.bf16.mxu0 0
        %2549 = vmatpush1.bf16.msra.mxu0 0
        %2550 = vmatprep.mubr.bf16.mxu0 0
        %2551 = vmatmul.mubr.bf16.gmra.mrb[0].mxu0 %v2513
        %v2552 = vpop.f32.mrb[0].mxu0
        %v2553 = vadd.f32 0.0, %v2552
        %v2554 = vpop.f32.mrb[0].mxu0
        %v2555 = vpop.f32.mrb[0].mxu0
        %v2556 = vadd.f32 0.0, %v2555
        %v2557 = vpop.f32.mrb[0].mxu0
        %2558 = vmatprep.mubr.bf16.mxu0 0
        %2559 = vmatmul.mubr.bf16.gmra.mrb[0].mxu0 %v2516
        %v2560 = vpop.f32.mrb[0].mxu0
        %v2561 = vadd.f32 0.0, %v2560
        %v2562 = vpop.f32.mrb[0].mxu0
        %v2563 = vpop.f32.mrb[0].mxu0
        %v2564 = vadd.f32 0.0, %v2563
        %v2565 = vpop.f32.mrb[0].mxu0
        %2566 = vdwg.mxu0
        %v2567 = vadd.f32 %v2242, %v2553
        %v2568 = vadd.f32 %v2245, %v2556
        %v2569 = vadd.f32 %v2250, %v2561
        %v2570 = vadd.f32 %v2253, %v2564
        %2571 = vrot.lane.b32.xlu0 %v1618, 32
        %v2572 = vpop.permute.xlu0 %2571
        %2573 = vrot.lane.b32.xlu0 %v1620, 32
        %v2574 = vpop.permute.xlu0 %2573
        %v2576 = vsel %vm1640, %v2572, 0
        %v2579 = vsel %vm1640, %v2574, 0
        %2581 = vmatprep.subr.bf16.mxu0 0
        %2582 = vmatpush1.bf16.xpose.msra.mxu0 %v2579
        %2583 = vmatprep.subr.bf16.mxu0 0
        %2584 = vmatpush1.bf16.xpose.msra.mxu0 0
        %2585 = vmatprep.subr.bf16.mxu0 0
        %2586 = vmatpush1.bf16.xpose.msra.mxu0 0
        %2587 = vmatprep.subr.bf16.mxu0 0
        %2588 = vmatpush1.bf16.xpose.msra.mxu0 0
        %2589 = vmatprep.subr.bf16.mxu0 0
        %2590 = vmatpush1.bf16.xpose.msra.mxu0 0
        %2591 = vmatprep.subr.bf16.mxu0 0
        %2592 = vmatpush1.bf16.xpose.msra.mxu0 0
        %2593 = vmatprep.subr.bf16.mxu0 0
        %2594 = vmatpush1.bf16.xpose.msra.mxu0 0
        %2595 = vmatprep.subr.bf16.mxu0 0
        %2596 = vmatpush1.bf16.xpose.msra.mxu0 0
        %2597 = vmatprep.subr.bf16.mxu0 0
        %2598 = vmatpush1.bf16.xpose.msra.mxu0 0
        %2599 = vmatprep.subr.bf16.mxu0 0
        %2600 = vmatpush1.bf16.xpose.msra.mxu0 0
        %2601 = vmatprep.subr.bf16.mxu0 0
        %2602 = vmatpush1.bf16.xpose.msra.mxu0 0
        %2603 = vmatprep.subr.bf16.mxu0 0
        %2604 = vmatpush1.bf16.xpose.msra.mxu0 0
        %2605 = vmatprep.subr.bf16.mxu0 0
        %2606 = vmatpush1.bf16.xpose.msra.mxu0 0
        %2607 = vmatprep.subr.bf16.mxu0 0
        %2608 = vmatpush1.bf16.xpose.msra.mxu0 0
        %2609 = vmatprep.subr.bf16.mxu0 0
        %2610 = vmatpush1.bf16.xpose.msra.mxu0 0
        %2611 = vmatprep.subr.bf16.mxu0 0
        %2612 = vmatpush1.bf16.xpose.msra.mxu0 0
        %2613 = vmatprep.mubr.bf16.mxu0 0
        %2614 = vmatmul.mubr.bf16.gmra.mrb[0].mxu0 %v2576
        %v2615 = vpop.f32.mrb[0].mxu0
        %v2616 = vadd.f32 %v1264, %v2615
        %v2617 = vpop.f32.mrb[0].mxu0
        %v2618 = vpop.f32.mrb[0].mxu0
        %v2619 = vadd.f32 %v1265, %v2618
        %v2620 = vpop.f32.mrb[0].mxu0
        %2621 = vdwg.mxu0
        %2622 = vrot.lane.b32.xlu0 %v1619, 32
        %v2623 = vpop.permute.xlu0 %2622
        %2624 = vrot.lane.b32.xlu0 %v1621, 32
        %v2625 = vpop.permute.xlu0 %2624
        %v2627 = vsel %vm1640, %v2623, 0
        %v2630 = vsel %vm1640, %v2625, 0
        %2632 = vmatprep.subr.bf16.mxu0 0
        %2633 = vmatpush1.bf16.xpose.msra.mxu0 %v2630
        %2634 = vmatprep.subr.bf16.mxu0 0
        %2635 = vmatpush1.bf16.xpose.msra.mxu0 0
        %2636 = vmatprep.subr.bf16.mxu0 0
        %2637 = vmatpush1.bf16.xpose.msra.mxu0 0
        %2638 = vmatprep.subr.bf16.mxu0 0
        %2639 = vmatpush1.bf16.xpose.msra.mxu0 0
        %2640 = vmatprep.subr.bf16.mxu0 0
        %2641 = vmatpush1.bf16.xpose.msra.mxu0 0
        %2642 = vmatprep.subr.bf16.mxu0 0
        %2643 = vmatpush1.bf16.xpose.msra.mxu0 0
        %2644 = vmatprep.subr.bf16.mxu0 0
        %2645 = vmatpush1.bf16.xpose.msra.mxu0 0
        %2646 = vmatprep.subr.bf16.mxu0 0
        %2647 = vmatpush1.bf16.xpose.msra.mxu0 0
        %2648 = vmatprep.subr.bf16.mxu0 0
        %2649 = vmatpush1.bf16.xpose.msra.mxu0 0
        %2650 = vmatprep.subr.bf16.mxu0 0
        %2651 = vmatpush1.bf16.xpose.msra.mxu0 0
        %2652 = vmatprep.subr.bf16.mxu0 0
        %2653 = vmatpush1.bf16.xpose.msra.mxu0 0
        %2654 = vmatprep.subr.bf16.mxu0 0
        %2655 = vmatpush1.bf16.xpose.msra.mxu0 0
        %2656 = vmatprep.subr.bf16.mxu0 0
        %2657 = vmatpush1.bf16.xpose.msra.mxu0 0
        %2658 = vmatprep.subr.bf16.mxu0 0
        %2659 = vmatpush1.bf16.xpose.msra.mxu0 0
        %2660 = vmatprep.subr.bf16.mxu0 0
        %2661 = vmatpush1.bf16.xpose.msra.mxu0 0
        %2662 = vmatprep.subr.bf16.mxu0 0
        %2663 = vmatpush1.bf16.xpose.msra.mxu0 0
        %2664 = vmatprep.mubr.bf16.mxu0 0
        %2665 = vmatmul.mubr.bf16.gmra.mrb[0].mxu0 %v2627
        %v2666 = vpop.f32.mrb[0].mxu0
        %v2667 = vadd.f32 %v1264, %v2666
        %v2668 = vpop.f32.mrb[0].mxu0
        %v2669 = vpop.f32.mrb[0].mxu0
        %v2670 = vadd.f32 %v1265, %v2669
        %v2671 = vpop.f32.mrb[0].mxu0
        %2672 = vdwg.mxu0
        %v2673 = vsel %vm1735, %v2616, -inf
        %2674 = vmax.xlane.f32.xlu0 %v2673
        %v2675 = vpop.xlane.xlu0 %2674
        %v2676 = vsel %vm1735, %v2619, -inf
        %2677 = vmax.xlane.f32.xlu0 %v2676
        %v2678 = vpop.xlane.xlu0 %2677
        %v2679 = vsel %vm1735, %v2667, -inf
        %2680 = vmax.xlane.f32.xlu0 %v2679
        %v2681 = vpop.xlane.xlu0 %2680
        %v2682 = vsel %vm1735, %v2670, -inf
        %2683 = vmax.xlane.f32.xlu0 %v2682
        %v2684 = vpop.xlane.xlu0 %2683
        %v2685 = vsub.f32 %v2616, %v2675
        %v2686 = vsub.f32 %v2619, %v2678
        %v2687 = vsub.f32 %v2667, %v2681
        %v2688 = vsub.f32 %v2670, %v2684
        %v2689 = vmul.f32 %v2685, 1.442695
        %v2690 = vpow.pop %v2689
        %v2691 = vmul.f32 %v2686, 1.442695
        %v2692 = vpow.pop %v2691
        %v2693 = vmul.f32 %v2687, 1.442695
        %v2694 = vpow.pop %v2693
        %v2695 = vmul.f32 %v2688, 1.442695
        %v2696 = vpow.pop %v2695
        %v2697 = vsel %vm1735, %v2690, 0.0
        %2698 = vadd.xlane.f32.xlu0 %v2697
        %v2699 = vpop.xlane.xlu0 %2698
        %v2700 = vsel %vm1735, %v2692, 0.0
        %2701 = vadd.xlane.f32.xlu0 %v2700
        %v2702 = vpop.xlane.xlu0 %2701
        %v2703 = vsel %vm1735, %v2694, 0.0
        %2704 = vadd.xlane.f32.xlu0 %v2703
        %v2705 = vpop.xlane.xlu0 %2704
        %v2706 = vsel %vm1735, %v2696, 0.0
        %2707 = vadd.xlane.f32.xlu0 %v2706
        %v2708 = vpop.xlane.xlu0 %2707
        %v2709 = vrcp.pop %v2699
        %v2710 = vrcp.pop %v2702
        %v2711 = vrcp.pop %v2705
        %v2712 = vrcp.pop %v2708
        %v2713 = vmul.f32 %v2690, %v2709
        %v2714 = vmul.f32 %v2692, %v2710
        %v2715 = vmul.f32 %v2694, %v2711
        %v2716 = vmul.f32 %v2696, %v2712
        %v2717 = vpack.c.bf16 %v2714, %v2713
        %v2718 = vpack.c.bf16 %v2716, %v2715
        %2719 = vrot.lane.b32.xlu0 %v1622, 32
        %v2720 = vpop.permute.xlu0 %2719
        %v2723 = vsel %vm1735, %v2717, 0
        %2725 = vmatprep.subr.bf16.mxu0 0
        %2726 = vmatpush1.bf16.msra.mxu0 %v2720
        %2727 = vmatprep.subr.bf16.mxu0 0
        %2728 = vmatpush1.bf16.msra.mxu0 0
        %2729 = vmatprep.subr.bf16.mxu0 0
        %2730 = vmatpush1.bf16.msra.mxu0 0
        %2731 = vmatprep.subr.bf16.mxu0 0
        %2732 = vmatpush1.bf16.msra.mxu0 0
        %2733 = vmatprep.subr.bf16.mxu0 0
        %2734 = vmatpush1.bf16.msra.mxu0 0
        %2735 = vmatprep.subr.bf16.mxu0 0
        %2736 = vmatpush1.bf16.msra.mxu0 0
        %2737 = vmatprep.subr.bf16.mxu0 0
        %2738 = vmatpush1.bf16.msra.mxu0 0
        %2739 = vmatprep.subr.bf16.mxu0 0
        %2740 = vmatpush1.bf16.msra.mxu0 0
        %2741 = vmatprep.subr.bf16.mxu0 0
        %2742 = vmatpush1.bf16.msra.mxu0 0
        %2743 = vmatprep.subr.bf16.mxu0 0
        %2744 = vmatpush1.bf16.msra.mxu0 0
        %2745 = vmatprep.subr.bf16.mxu0 0
        %2746 = vmatpush1.bf16.msra.mxu0 0
        %2747 = vmatprep.subr.bf16.mxu0 0
        %2748 = vmatpush1.bf16.msra.mxu0 0
        %2749 = vmatprep.subr.bf16.mxu0 0
        %2750 = vmatpush1.bf16.msra.mxu0 0
        %2751 = vmatprep.subr.bf16.mxu0 0
        %2752 = vmatpush1.bf16.msra.mxu0 0
        %2753 = vmatprep.subr.bf16.mxu0 0
        %2754 = vmatpush1.bf16.msra.mxu0 0
        %2755 = vmatprep.subr.bf16.mxu0 0
        %2756 = vmatpush1.bf16.msra.mxu0 0
        %2757 = vmatprep.mubr.bf16.mxu0 0
        %2758 = vmatmul.mubr.bf16.gmra.mrb[0].mxu0 %v2723
        %v2759 = vpop.f32.mrb[0].mxu0
        %v2760 = vadd.f32 0.0, %v2759
        %v2761 = vpop.f32.mrb[0].mxu0
        %v2762 = vpop.f32.mrb[0].mxu0
        %v2763 = vadd.f32 0.0, %v2762
        %v2764 = vpop.f32.mrb[0].mxu0
        %2765 = vdwg.mxu0
        %2766 = vrot.lane.b32.xlu0 %v1623, 32
        %v2767 = vpop.permute.xlu0 %2766
        %v2770 = vsel %vm1735, %v2718, 0
        %2772 = vmatprep.subr.bf16.mxu0 0
        %2773 = vmatpush1.bf16.msra.mxu0 %v2767
        %2774 = vmatprep.subr.bf16.mxu0 0
        %2775 = vmatpush1.bf16.msra.mxu0 0
        %2776 = vmatprep.subr.bf16.mxu0 0
        %2777 = vmatpush1.bf16.msra.mxu0 0
        %2778 = vmatprep.subr.bf16.mxu0 0
        %2779 = vmatpush1.bf16.msra.mxu0 0
        %2780 = vmatprep.subr.bf16.mxu0 0
        %2781 = vmatpush1.bf16.msra.mxu0 0
        %2782 = vmatprep.subr.bf16.mxu0 0
        %2783 = vmatpush1.bf16.msra.mxu0 0
        %2784 = vmatprep.subr.bf16.mxu0 0
        %2785 = vmatpush1.bf16.msra.mxu0 0
        %2786 = vmatprep.subr.bf16.mxu0 0
        %2787 = vmatpush1.bf16.msra.mxu0 0
        %2788 = vmatprep.subr.bf16.mxu0 0
        %2789 = vmatpush1.bf16.msra.mxu0 0
        %2790 = vmatprep.subr.bf16.mxu0 0
        %2791 = vmatpush1.bf16.msra.mxu0 0
        %2792 = vmatprep.subr.bf16.mxu0 0
        %2793 = vmatpush1.bf16.msra.mxu0 0
        %2794 = vmatprep.subr.bf16.mxu0 0
        %2795 = vmatpush1.bf16.msra.mxu0 0
        %2796 = vmatprep.subr.bf16.mxu0 0
        %2797 = vmatpush1.bf16.msra.mxu0 0
        %2798 = vmatprep.subr.bf16.mxu0 0
        %2799 = vmatpush1.bf16.msra.mxu0 0
        %2800 = vmatprep.subr.bf16.mxu0 0
        %2801 = vmatpush1.bf16.msra.mxu0 0
        %2802 = vmatprep.subr.bf16.mxu0 0
        %2803 = vmatpush1.bf16.msra.mxu0 0
        %2804 = vmatprep.mubr.bf16.mxu0 0
        %2805 = vmatmul.mubr.bf16.gmra.mrb[0].mxu0 %v2770
        %v2806 = vpop.f32.mrb[0].mxu0
        %v2807 = vadd.f32 0.0, %v2806
        %v2808 = vpop.f32.mrb[0].mxu0
        %v2809 = vpop.f32.mrb[0].mxu0
        %v2810 = vadd.f32 0.0, %v2809
        %v2811 = vpop.f32.mrb[0].mxu0
        %2812 = vdwg.mxu0
        %v2813 = vpack.c.bf16 %v2763, %v2760
        %v2814 = vpack.c.bf16 %v2810, %v2807
        %v2819 = vunpack.c.l.b16 %v1636
        %v2820 = vunpack.c.l.b16 %v1637
        %v2821 = vunpack.c.l.b16 %v1638
        %v2822 = vunpack.c.l.b16 %v1639
        %v2823 = vpack.c.b16 %v2820, %v2819
        %v2824 = vpack.c.b16 %v2822, %v2821
        %v2828 = vsel %vm1640, %v2813, 0
        %v2831 = vsel %vm1640, %v2814, 0
        %2833 = vmatprep.subr.bf16.mxu0 0
        %2834 = vmatpush1.bf16.msra.mxu0 %v2823
        %2835 = vmatprep.subr.bf16.mxu0 0
        %2836 = vmatpush1.bf16.msra.mxu0 %v2824
        %2837 = vmatprep.subr.bf16.mxu0 0
        %2838 = vmatpush1.bf16.msra.mxu0 0
        %2839 = vmatprep.subr.bf16.mxu0 0
        %2840 = vmatpush1.bf16.msra.mxu0 0
        %2841 = vmatprep.subr.bf16.mxu0 0
        %2842 = vmatpush1.bf16.msra.mxu0 0
        %2843 = vmatprep.subr.bf16.mxu0 0
        %2844 = vmatpush1.bf16.msra.mxu0 0
        %2845 = vmatprep.subr.bf16.mxu0 0
        %2846 = vmatpush1.bf16.msra.mxu0 0
        %2847 = vmatprep.subr.bf16.mxu0 0
        %2848 = vmatpush1.bf16.msra.mxu0 0
        %2849 = vmatprep.subr.bf16.mxu0 0
        %2850 = vmatpush1.bf16.msra.mxu0 0
        %2851 = vmatprep.subr.bf16.mxu0 0
        %2852 = vmatpush1.bf16.msra.mxu0 0
        %2853 = vmatprep.subr.bf16.mxu0 0
        %2854 = vmatpush1.bf16.msra.mxu0 0
        %2855 = vmatprep.subr.bf16.mxu0 0
        %2856 = vmatpush1.bf16.msra.mxu0 0
        %2857 = vmatprep.subr.bf16.mxu0 0
        %2858 = vmatpush1.bf16.msra.mxu0 0
        %2859 = vmatprep.subr.bf16.mxu0 0
        %2860 = vmatpush1.bf16.msra.mxu0 0
        %2861 = vmatprep.subr.bf16.mxu0 0
        %2862 = vmatpush1.bf16.msra.mxu0 0
        %2863 = vmatprep.subr.bf16.mxu0 0
        %2864 = vmatpush1.bf16.msra.mxu0 0
        %2865 = vmatprep.mubr.bf16.mxu0 0
        %2866 = vmatmul.mubr.bf16.gmra.mrb[0].mxu0 %v2828
        %v2867 = vpop.f32.mrb[0].mxu0
        %v2868 = vadd.f32 0.0, %v2867
        %v2869 = vpop.f32.mrb[0].mxu0
        %v2870 = vpop.f32.mrb[0].mxu0
        %v2871 = vadd.f32 0.0, %v2870
        %v2872 = vpop.f32.mrb[0].mxu0
        %2873 = vmatprep.mubr.bf16.mxu0 0
        %2874 = vmatmul.mubr.bf16.gmra.mrb[0].mxu0 %v2831
        %v2875 = vpop.f32.mrb[0].mxu0
        %v2876 = vadd.f32 0.0, %v2875
        %v2877 = vpop.f32.mrb[0].mxu0
        %v2878 = vpop.f32.mrb[0].mxu0
        %v2879 = vadd.f32 0.0, %v2878
        %v2880 = vpop.f32.mrb[0].mxu0
        %2881 = vdwg.mxu0
        %v2882 = vadd.f32 %v2567, %v2868
        %v2883 = vadd.f32 %v2568, %v2871
        %v2884 = vadd.f32 %v2569, %v2876
        %v2885 = vadd.f32 %v2570, %v2879
        %v2886 = vadd.f32 %v1260, %v2882
        %v2887 = vadd.f32 %v1261, %v2883
        %v2888 = vadd.f32 %v1262, %v2884
        %v2889 = vadd.f32 %v1263, %v2885
        %v2890 = vld [vmem:[%s908] sm:$0x1]
        %v2892 = vlaneseq
        %v2893 = vshrl.u32 %v2892, 7
        %v2894 = vsub.s32 0, %v2893
        %v2895 = vrot.slane %v2890, %v2894
        %v2897 = vadd.f32 %v2886, %v2895
        %v2898 = vadd.f32 %v2887, %v2895
        %v2899 = vadd.f32 %v2888, %v2895
        %v2900 = vadd.f32 %v2889, %v2895
        %v2901 = vld [vmem:[%s916] sm:$0x1]
        %v2902 = vld [vmem:[%s924] sm:$0x1]
        %2903 = vadd.xlane.f32.xlu0 %v2897
        %v2904 = vpop.xlane.xlu0 %2903
        %2905 = vadd.xlane.f32.xlu0 %v2898
        %v2906 = vpop.xlane.xlu0 %2905
        %2907 = vadd.xlane.f32.xlu0 %v2899
        %v2908 = vpop.xlane.xlu0 %2907
        %2909 = vadd.xlane.f32.xlu0 %v2900
        %v2910 = vpop.xlane.xlu0 %2909
        %v2911 = vmul.f32 %v2904, %v1276
        %v2912 = vmul.f32 %v2906, %v1276
        %v2913 = vmul.f32 %v2908, %v1276
        %v2914 = vmul.f32 %v2910, %v1276
        %v2915 = vsub.f32 %v2897, %v2911
        %v2916 = vsub.f32 %v2898, %v2912
        %v2917 = vsub.f32 %v2899, %v2913
        %v2918 = vsub.f32 %v2900, %v2914
        %v2919 = vmul.f32 %v2915, %v2915
        %v2920 = vmul.f32 %v2916, %v2916
        %v2921 = vmul.f32 %v2917, %v2917
        %v2922 = vmul.f32 %v2918, %v2918
        %2923 = vadd.xlane.f32.xlu0 %v2919
        %v2924 = vpop.xlane.xlu0 %2923
        %2925 = vadd.xlane.f32.xlu0 %v2920
        %v2926 = vpop.xlane.xlu0 %2925
        %2927 = vadd.xlane.f32.xlu0 %v2921
        %v2928 = vpop.xlane.xlu0 %2927
        %2929 = vadd.xlane.f32.xlu0 %v2922
        %v2930 = vpop.xlane.xlu0 %2929
        %v2931 = vmul.f32 %v2924, %v1276
        %v2932 = vmul.f32 %v2926, %v1276
        %v2933 = vmul.f32 %v2928, %v1276
        %v2934 = vmul.f32 %v2930, %v1276
        %v2935 = vadd.f32 %v2931, 1e-05
        %v2936 = vadd.f32 %v2932, 1e-05
        %v2937 = vadd.f32 %v2933, 1e-05
        %v2938 = vadd.f32 %v2934, 1e-05
        %v2939 = vrsqrt.pop %v2935
        %v2940 = vrsqrt.pop %v2936
        %v2941 = vrsqrt.pop %v2937
        %v2942 = vrsqrt.pop %v2938
        %v2943 = vmul.f32 %v2915, %v2939
        %v2944 = vmul.f32 %v2916, %v2940
        %v2945 = vmul.f32 %v2917, %v2941
        %v2946 = vmul.f32 %v2918, %v2942
        %v2948 = vlaneseq
        %v2949 = vshrl.u32 %v2948, 7
        %v2950 = vsub.s32 0, %v2949
        %v2951 = vrot.slane %v2901, %v2950
        %v2953 = vmul.f32 %v2943, %v2951
        %v2954 = vmul.f32 %v2944, %v2951
        %v2955 = vmul.f32 %v2945, %v2951
        %v2956 = vmul.f32 %v2946, %v2951
        %v2958 = vlaneseq
        %v2959 = vshrl.u32 %v2958, 7
        %v2960 = vsub.s32 0, %v2959
        %v2961 = vrot.slane %v2902, %v2960
        %v2963 = vadd.f32 %v2953, %v2961
        %v2964 = vadd.f32 %v2954, %v2961
        %v2965 = vadd.f32 %v2955, %v2961
        %v2966 = vadd.f32 %v2956, %v2961
        %v2967 = vpack.c.bf16 %v2964, %v2963
        %v2968 = vpack.c.bf16 %v2966, %v2965
        %v2969 = vld [vmem:[%s933] sm:$0xff]
        %v2970 = vld [vmem:[%s933 + $0x8] sm:$0xff]
        %v2971 = vld [vmem:[%s933 + $0x10] sm:$0xff]
        %v2972 = vld [vmem:[%s933 + $0x18] sm:$0xff]
        %v2973 = vld [vmem:[%s933 + $0x20] sm:$0xff]
        %v2974 = vld [vmem:[%s933 + $0x28] sm:$0xff]
        %v2975 = vld [vmem:[%s933 + $0x30] sm:$0xff]
        %v2976 = vld [vmem:[%s933 + $0x38] sm:$0xff]
        %v2977 = vld [vmem:[%s933 + $0x40] sm:$0xff]
        %v2978 = vld [vmem:[%s933 + $0x48] sm:$0xff]
        %v2979 = vld [vmem:[%s933 + $0x50] sm:$0xff]
        %v2980 = vld [vmem:[%s933 + $0x58] sm:$0xff]
        %v2981 = vld [vmem:[%s933 + $0x60] sm:$0xff]
        %v2982 = vld [vmem:[%s933 + $0x68] sm:$0xff]
        %v2983 = vld [vmem:[%s933 + $0x70] sm:$0xff]
        %v2984 = vld [vmem:[%s933 + $0x78] sm:$0xff]
        %v2985 = vld [vmem:[%s933 + $0x80] sm:$0xff]
        %v2986 = vld [vmem:[%s933 + $0x88] sm:$0xff]
        %v2987 = vld [vmem:[%s933 + $0x90] sm:$0xff]
        %v2988 = vld [vmem:[%s933 + $0x98] sm:$0xff]
        %v2989 = vld [vmem:[%s933 + $0xa0] sm:$0xff]
        %v2990 = vld [vmem:[%s933 + $0xa8] sm:$0xff]
        %v2991 = vld [vmem:[%s933 + $0xb0] sm:$0xff]
        %v2992 = vld [vmem:[%s933 + $0xb8] sm:$0xff]
        %v2993 = vld [vmem:[%s933 + $0xc0] sm:$0xff]
        %v2994 = vld [vmem:[%s933 + $0xc8] sm:$0xff]
        %v2995 = vld [vmem:[%s933 + $0xd0] sm:$0xff]
        %v2996 = vld [vmem:[%s933 + $0xd8] sm:$0xff]
        %v2997 = vld [vmem:[%s933 + $0xe0] sm:$0xff]
        %v2998 = vld [vmem:[%s933 + $0xe8] sm:$0xff]
        %v2999 = vld [vmem:[%s933 + $0xf0] sm:$0xff]
        %v3000 = vld [vmem:[%s933 + $0xf8] sm:$0xff]
        %v3001 = vld [vmem:[%s942] sm:$0xf]
        %v3003 = vlaneseq
        %v3004 = vshrl.u32 %v3003, 7
        %v3005 = vsub.s32 0, %v3004
        %v3006 = vrot.slane %v3001, %v3005
        %v3007 = vlaneseq
        %v3008 = vshrl.u32 %v3007, 7
        %v3009 = vsub.s32 1, %v3008
        %v3010 = vrot.slane %v3001, %v3009
        %v3011 = vlaneseq
        %v3012 = vshrl.u32 %v3011, 7
        %v3013 = vsub.s32 2, %v3012
        %v3014 = vrot.slane %v3001, %v3013
        %v3015 = vlaneseq
        %v3016 = vshrl.u32 %v3015, 7
        %v3017 = vsub.s32 3, %v3016
        %v3018 = vrot.slane %v3001, %v3017
        %v3055 = vunpack.c.l.b16 %v2969
        %v3056 = vunpack.c.h.b16 %v2969
        %v3057 = vunpack.c.l.b16 %v2970
        %v3058 = vunpack.c.h.b16 %v2970
        %v3059 = vunpack.c.l.b16 %v2971
        %v3060 = vunpack.c.h.b16 %v2971
        %v3061 = vunpack.c.l.b16 %v2972
        %v3062 = vunpack.c.h.b16 %v2972
        %v3063 = vunpack.c.l.b16 %v2973
        %v3064 = vunpack.c.h.b16 %v2973
        %v3065 = vunpack.c.l.b16 %v2974
        %v3066 = vunpack.c.h.b16 %v2974
        %v3067 = vunpack.c.l.b16 %v2975
        %v3068 = vunpack.c.h.b16 %v2975
        %v3069 = vunpack.c.l.b16 %v2976
        %v3070 = vunpack.c.h.b16 %v2976
        %v3071 = vunpack.c.l.b16 %v2977
        %v3072 = vunpack.c.h.b16 %v2977
        %v3073 = vunpack.c.l.b16 %v2978
        %v3074 = vunpack.c.h.b16 %v2978
        %v3075 = vunpack.c.l.b16 %v2979
        %v3076 = vunpack.c.h.b16 %v2979
        %v3077 = vunpack.c.l.b16 %v2980
        %v3078 = vunpack.c.h.b16 %v2980
        %v3079 = vunpack.c.l.b16 %v2981
        %v3080 = vunpack.c.h.b16 %v2981
        %v3081 = vunpack.c.l.b16 %v2982
        %v3082 = vunpack.c.h.b16 %v2982
        %v3083 = vunpack.c.l.b16 %v2983
        %v3084 = vunpack.c.h.b16 %v2983
        %v3085 = vunpack.c.l.b16 %v2984
        %v3086 = vunpack.c.h.b16 %v2984
        %v3087 = vunpack.c.l.b16 %v2985
        %v3088 = vunpack.c.h.b16 %v2985
        %v3089 = vunpack.c.l.b16 %v2986
        %v3090 = vunpack.c.h.b16 %v2986
        %v3091 = vunpack.c.l.b16 %v2987
        %v3092 = vunpack.c.h.b16 %v2987
        %v3093 = vunpack.c.l.b16 %v2988
        %v3094 = vunpack.c.h.b16 %v2988
        %v3095 = vunpack.c.l.b16 %v2989
        %v3096 = vunpack.c.h.b16 %v2989
        %v3097 = vunpack.c.l.b16 %v2990
        %v3098 = vunpack.c.h.b16 %v2990
        %v3099 = vunpack.c.l.b16 %v2991
        %v3100 = vunpack.c.h.b16 %v2991
        %v3101 = vunpack.c.l.b16 %v2992
        %v3102 = vunpack.c.h.b16 %v2992
        %v3103 = vunpack.c.l.b16 %v2993
        %v3104 = vunpack.c.h.b16 %v2993
        %v3105 = vunpack.c.l.b16 %v2994
        %v3106 = vunpack.c.h.b16 %v2994
        %v3107 = vunpack.c.l.b16 %v2995
        %v3108 = vunpack.c.h.b16 %v2995
        %v3109 = vunpack.c.l.b16 %v2996
        %v3110 = vunpack.c.h.b16 %v2996
        %v3111 = vunpack.c.l.b16 %v2997
        %v3112 = vunpack.c.h.b16 %v2997
        %v3113 = vunpack.c.l.b16 %v2998
        %v3114 = vunpack.c.h.b16 %v2998
        %v3115 = vunpack.c.l.b16 %v2999
        %v3116 = vunpack.c.h.b16 %v2999
        %v3117 = vunpack.c.l.b16 %v3000
        %v3118 = vunpack.c.h.b16 %v3000
        %v3119 = vpack.c.b16 %v3059, %v3055
        %v3120 = vpack.c.b16 %v3060, %v3056
        %v3121 = vpack.c.b16 %v3061, %v3057
        %v3122 = vpack.c.b16 %v3062, %v3058
        %v3123 = vpack.c.b16 %v3067, %v3063
        %v3124 = vpack.c.b16 %v3068, %v3064
        %v3125 = vpack.c.b16 %v3069, %v3065
        %v3126 = vpack.c.b16 %v3070, %v3066
        %v3127 = vpack.c.b16 %v3075, %v3071
        %v3128 = vpack.c.b16 %v3076, %v3072
        %v3129 = vpack.c.b16 %v3077, %v3073
        %v3130 = vpack.c.b16 %v3078, %v3074
        %v3131 = vpack.c.b16 %v3083, %v3079
        %v3132 = vpack.c.b16 %v3084, %v3080
        %v3133 = vpack.c.b16 %v3085, %v3081
        %v3134 = vpack.c.b16 %v3086, %v3082
        %v3135 = vpack.c.b16 %v3091, %v3087
        %v3136 = vpack.c.b16 %v3092, %v3088
        %v3137 = vpack.c.b16 %v3093, %v3089
        %v3138 = vpack.c.b16 %v3094, %v3090
        %v3139 = vpack.c.b16 %v3099, %v3095
        %v3140 = vpack.c.b16 %v3100, %v3096
        %v3141 = vpack.c.b16 %v3101, %v3097
        %v3142 = vpack.c.b16 %v3102, %v3098
        %v3143 = vpack.c.b16 %v3107, %v3103
        %v3144 = vpack.c.b16 %v3108, %v3104
        %v3145 = vpack.c.b16 %v3109, %v3105
        %v3146 = vpack.c.b16 %v3110, %v3106
        %v3147 = vpack.c.b16 %v3115, %v3111
        %v3148 = vpack.c.b16 %v3116, %v3112
        %v3149 = vpack.c.b16 %v3117, %v3113
        %v3150 = vpack.c.b16 %v3118, %v3114
        %3183 = vmatprep.subr.bf16.mxu0 %v3120
        %3184 = vmatpush1.bf16.msra.mxu0 %v3119
        %3185 = vmatprep.subr.bf16.mxu0 %v3124
        %3186 = vmatpush1.bf16.msra.mxu0 %v3123
        %3187 = vmatprep.subr.bf16.mxu0 %v3128
        %3188 = vmatpush1.bf16.msra.mxu0 %v3127
        %3189 = vmatprep.subr.bf16.mxu0 %v3132
        %3190 = vmatpush1.bf16.msra.mxu0 %v3131
        %3191 = vmatprep.subr.bf16.mxu0 %v3136
        %3192 = vmatpush1.bf16.msra.mxu0 %v3135
        %3193 = vmatprep.subr.bf16.mxu0 %v3140
        %3194 = vmatpush1.bf16.msra.mxu0 %v3139
        %3195 = vmatprep.subr.bf16.mxu0 %v3144
        %3196 = vmatpush1.bf16.msra.mxu0 %v3143
        %3197 = vmatprep.subr.bf16.mxu0 %v3148
        %3198 = vmatpush1.bf16.msra.mxu0 %v3147
        %3199 = vmatprep.subr.bf16.mxu0 0
        %3200 = vmatpush1.bf16.msra.mxu0 0
        %3201 = vmatprep.subr.bf16.mxu0 0
        %3202 = vmatpush1.bf16.msra.mxu0 0
        %3203 = vmatprep.subr.bf16.mxu0 0
        %3204 = vmatpush1.bf16.msra.mxu0 0
        %3205 = vmatprep.subr.bf16.mxu0 0
        %3206 = vmatpush1.bf16.msra.mxu0 0
        %3207 = vmatprep.subr.bf16.mxu0 0
        %3208 = vmatpush1.bf16.msra.mxu0 0
        %3209 = vmatprep.subr.bf16.mxu0 0
        %3210 = vmatpush1.bf16.msra.mxu0 0
        %3211 = vmatprep.subr.bf16.mxu0 0
        %3212 = vmatpush1.bf16.msra.mxu0 0
        %3213 = vmatprep.subr.bf16.mxu0 0
        %3214 = vmatpush1.bf16.msra.mxu0 0
        %3215 = vmatprep.mubr.bf16.mxu0 0
        %3216 = vmatmul.mubr.bf16.gmra.mrb[0].mxu0 %v2967
        %v3217 = vpop.f32.mrb[0].mxu0
        %v3218 = vadd.f32 %v3006, %v3217
        %v3219 = vpop.f32.mrb[0].mxu0
        %v3220 = vadd.f32 %v3010, %v3219
        %v3221 = vpop.f32.mrb[0].mxu0
        %v3222 = vadd.f32 %v3006, %v3221
        %v3223 = vpop.f32.mrb[0].mxu0
        %v3224 = vadd.f32 %v3010, %v3223
        %3225 = vmatprep.mubr.bf16.mxu0 0
        %3226 = vmatmul.mubr.bf16.gmra.mrb[0].mxu0 %v2968
        %v3227 = vpop.f32.mrb[0].mxu0
        %v3228 = vadd.f32 %v3006, %v3227
        %v3229 = vpop.f32.mrb[0].mxu0
        %v3230 = vadd.f32 %v3010, %v3229
        %v3231 = vpop.f32.mrb[0].mxu0
        %v3232 = vadd.f32 %v3006, %v3231
        %v3233 = vpop.f32.mrb[0].mxu0
        %v3234 = vadd.f32 %v3010, %v3233
        %3235 = vdwg.mxu0
        %3236 = vmatprep.subr.bf16.mxu0 %v3122
        %3237 = vmatpush1.bf16.msra.mxu0 %v3121
        %3238 = vmatprep.subr.bf16.mxu0 %v3126
        %3239 = vmatpush1.bf16.msra.mxu0 %v3125
        %3240 = vmatprep.subr.bf16.mxu0 %v3130
        %3241 = vmatpush1.bf16.msra.mxu0 %v3129
        %3242 = vmatprep.subr.bf16.mxu0 %v3134
        %3243 = vmatpush1.bf16.msra.mxu0 %v3133
        %3244 = vmatprep.subr.bf16.mxu0 %v3138
        %3245 = vmatpush1.bf16.msra.mxu0 %v3137
        %3246 = vmatprep.subr.bf16.mxu0 %v3142
        %3247 = vmatpush1.bf16.msra.mxu0 %v3141
        %3248 = vmatprep.subr.bf16.mxu0 %v3146
        %3249 = vmatpush1.bf16.msra.mxu0 %v3145
        %3250 = vmatprep.subr.bf16.mxu0 %v3150
        %3251 = vmatpush1.bf16.msra.mxu0 %v3149
        %3252 = vmatprep.subr.bf16.mxu0 0
        %3253 = vmatpush1.bf16.msra.mxu0 0
        %3254 = vmatprep.subr.bf16.mxu0 0
        %3255 = vmatpush1.bf16.msra.mxu0 0
        %3256 = vmatprep.subr.bf16.mxu0 0
        %3257 = vmatpush1.bf16.msra.mxu0 0
        %3258 = vmatprep.subr.bf16.mxu0 0
        %3259 = vmatpush1.bf16.msra.mxu0 0
        %3260 = vmatprep.subr.bf16.mxu0 0
        %3261 = vmatpush1.bf16.msra.mxu0 0
        %3262 = vmatprep.subr.bf16.mxu0 0
        %3263 = vmatpush1.bf16.msra.mxu0 0
        %3264 = vmatprep.subr.bf16.mxu0 0
        %3265 = vmatpush1.bf16.msra.mxu0 0
        %3266 = vmatprep.subr.bf16.mxu0 0
        %3267 = vmatpush1.bf16.msra.mxu0 0
        %3268 = vmatprep.mubr.bf16.mxu0 0
        %3269 = vmatmul.mubr.bf16.gmra.mrb[0].mxu0 %v2967
        %v3270 = vpop.f32.mrb[0].mxu0
        %v3271 = vadd.f32 %v3014, %v3270
        %v3272 = vpop.f32.mrb[0].mxu0
        %v3273 = vadd.f32 %v3018, %v3272
        %v3274 = vpop.f32.mrb[0].mxu0
        %v3275 = vadd.f32 %v3014, %v3274
        %v3276 = vpop.f32.mrb[0].mxu0
        %v3277 = vadd.f32 %v3018, %v3276
        %3278 = vmatprep.mubr.bf16.mxu0 0
        %3279 = vmatmul.mubr.bf16.gmra.mrb[0].mxu0 %v2968
        %v3280 = vpop.f32.mrb[0].mxu0
        %v3281 = vadd.f32 %v3014, %v3280
        %v3282 = vpop.f32.mrb[0].mxu0
        %v3283 = vadd.f32 %v3018, %v3282
        %v3284 = vpop.f32.mrb[0].mxu0
        %v3285 = vadd.f32 %v3014, %v3284
        %v3286 = vpop.f32.mrb[0].mxu0
        %v3287 = vadd.f32 %v3018, %v3286
        %3288 = vdwg.mxu0
        %v3289 = vmul.f32 %v3218, 0.5
        %v3290 = vmul.f32 %v3220, 0.5
        %v3291 = vmul.f32 %v3271, 0.5
        %v3292 = vmul.f32 %v3273, 0.5
        %v3293 = vmul.f32 %v3222, 0.5
        %v3294 = vmul.f32 %v3224, 0.5
        %v3295 = vmul.f32 %v3275, 0.5
        %v3296 = vmul.f32 %v3277, 0.5
        %v3297 = vmul.f32 %v3228, 0.5
        %v3298 = vmul.f32 %v3230, 0.5
        %v3299 = vmul.f32 %v3281, 0.5
        %v3300 = vmul.f32 %v3283, 0.5
        %v3301 = vmul.f32 %v3232, 0.5
        %v3302 = vmul.f32 %v3234, 0.5
        %v3303 = vmul.f32 %v3285, 0.5
        %v3304 = vmul.f32 %v3287, 0.5
        %v3305 = vmul.f32 %v3218, 0.044715
        %v3306 = vmul.f32 %v3220, 0.044715
        %v3307 = vmul.f32 %v3271, 0.044715
        %v3308 = vmul.f32 %v3273, 0.044715
        %v3309 = vmul.f32 %v3222, 0.044715
        %v3310 = vmul.f32 %v3224, 0.044715
        %v3311 = vmul.f32 %v3275, 0.044715
        %v3312 = vmul.f32 %v3277, 0.044715
        %v3313 = vmul.f32 %v3228, 0.044715
        %v3314 = vmul.f32 %v3230, 0.044715
        %v3315 = vmul.f32 %v3281, 0.044715
        %v3316 = vmul.f32 %v3283, 0.044715
        %v3317 = vmul.f32 %v3232, 0.044715
        %v3318 = vmul.f32 %v3234, 0.044715
        %v3319 = vmul.f32 %v3285, 0.044715
        %v3320 = vmul.f32 %v3287, 0.044715
        %v3321 = vmul.f32 %v3305, %v3218
        %v3322 = vmul.f32 %v3306, %v3220
        %v3323 = vmul.f32 %v3307, %v3271
        %v3324 = vmul.f32 %v3308, %v3273
        %v3325 = vmul.f32 %v3309, %v3222
        %v3326 = vmul.f32 %v3310, %v3224
        %v3327 = vmul.f32 %v3311, %v3275
        %v3328 = vmul.f32 %v3312, %v3277
        %v3329 = vmul.f32 %v3313, %v3228
        %v3330 = vmul.f32 %v3314, %v3230
        %v3331 = vmul.f32 %v3315, %v3281
        %v3332 = vmul.f32 %v3316, %v3283
        %v3333 = vmul.f32 %v3317, %v3232
        %v3334 = vmul.f32 %v3318, %v3234
        %v3335 = vmul.f32 %v3319, %v3285
        %v3336 = vmul.f32 %v3320, %v3287
        %v3337 = vmul.f32 %v3321, %v3218
        %v3338 = vmul.f32 %v3322, %v3220
        %v3339 = vmul.f32 %v3323, %v3271
        %v3340 = vmul.f32 %v3324, %v3273
        %v3341 = vmul.f32 %v3325, %v3222
        %v3342 = vmul.f32 %v3326, %v3224
        %v3343 = vmul.f32 %v3327, %v3275
        %v3344 = vmul.f32 %v3328, %v3277
        %v3345 = vmul.f32 %v3329, %v3228
        %v3346 = vmul.f32 %v3330, %v3230
        %v3347 = vmul.f32 %v3331, %v3281
        %v3348 = vmul.f32 %v3332, %v3283
        %v3349 = vmul.f32 %v3333, %v3232
        %v3350 = vmul.f32 %v3334, %v3234
        %v3351 = vmul.f32 %v3335, %v3285
        %v3352 = vmul.f32 %v3336, %v3287
        %v3353 = vadd.f32 %v3218, %v3337
        %v3354 = vadd.f32 %v3220, %v3338
        %v3355 = vadd.f32 %v3271, %v3339
        %v3356 = vadd.f32 %v3273, %v3340
        %v3357 = vadd.f32 %v3222, %v3341
        %v3358 = vadd.f32 %v3224, %v3342
        %v3359 = vadd.f32 %v3275, %v3343
        %v3360 = vadd.f32 %v3277, %v3344
        %v3361 = vadd.f32 %v3228, %v3345
        %v3362 = vadd.f32 %v3230, %v3346
        %v3363 = vadd.f32 %v3281, %v3347
        %v3364 = vadd.f32 %v3283, %v3348
        %v3365 = vadd.f32 %v3232, %v3349
        %v3366 = vadd.f32 %v3234, %v3350
        %v3367 = vadd.f32 %v3285, %v3351
        %v3368 = vadd.f32 %v3287, %v3352
        %v3369 = vmul.f32 %v3353, 0.7978846
        %v3370 = vmul.f32 %v3354, 0.7978846
        %v3371 = vmul.f32 %v3355, 0.7978846
        %v3372 = vmul.f32 %v3356, 0.7978846
        %v3373 = vmul.f32 %v3357, 0.7978846
        %v3374 = vmul.f32 %v3358, 0.7978846
        %v3375 = vmul.f32 %v3359, 0.7978846
        %v3376 = vmul.f32 %v3360, 0.7978846
        %v3377 = vmul.f32 %v3361, 0.7978846
        %v3378 = vmul.f32 %v3362, 0.7978846
        %v3379 = vmul.f32 %v3363, 0.7978846
        %v3380 = vmul.f32 %v3364, 0.7978846
        %v3381 = vmul.f32 %v3365, 0.7978846
        %v3382 = vmul.f32 %v3366, 0.7978846
        %v3383 = vmul.f32 %v3367, 0.7978846
        %v3384 = vmul.f32 %v3368, 0.7978846
        %v3385 = vtanh.pop %v3369
        %v3386 = vtanh.pop %v3370
        %v3387 = vtanh.pop %v3371
        %v3388 = vtanh.pop %v3372
        %v3389 = vtanh.pop %v3373
        %v3390 = vtanh.pop %v3374
        %v3391 = vtanh.pop %v3375
        %v3392 = vtanh.pop %v3376
        %v3393 = vtanh.pop %v3377
        %v3394 = vtanh.pop %v3378
        %v3395 = vtanh.pop %v3379
        %v3396 = vtanh.pop %v3380
        %v3397 = vtanh.pop %v3381
        %v3398 = vtanh.pop %v3382
        %v3399 = vtanh.pop %v3383
        %v3400 = vtanh.pop %v3384
        %v3401 = vadd.f32 %v3385, 1.0
        %v3402 = vadd.f32 %v3386, 1.0
        %v3403 = vadd.f32 %v3387, 1.0
        %v3404 = vadd.f32 %v3388, 1.0
        %v3405 = vadd.f32 %v3389, 1.0
        %v3406 = vadd.f32 %v3390, 1.0
        %v3407 = vadd.f32 %v3391, 1.0
        %v3408 = vadd.f32 %v3392, 1.0
        %v3409 = vadd.f32 %v3393, 1.0
        %v3410 = vadd.f32 %v3394, 1.0
        %v3411 = vadd.f32 %v3395, 1.0
        %v3412 = vadd.f32 %v3396, 1.0
        %v3413 = vadd.f32 %v3397, 1.0
        %v3414 = vadd.f32 %v3398, 1.0
        %v3415 = vadd.f32 %v3399, 1.0
        %v3416 = vadd.f32 %v3400, 1.0
        %v3417 = vmul.f32 %v3289, %v3401
        %v3418 = vmul.f32 %v3290, %v3402
        %v3419 = vmul.f32 %v3291, %v3403
        %v3420 = vmul.f32 %v3292, %v3404
        %v3421 = vmul.f32 %v3293, %v3405
        %v3422 = vmul.f32 %v3294, %v3406
        %v3423 = vmul.f32 %v3295, %v3407
        %v3424 = vmul.f32 %v3296, %v3408
        %v3425 = vmul.f32 %v3297, %v3409
        %v3426 = vmul.f32 %v3298, %v3410
        %v3427 = vmul.f32 %v3299, %v3411
        %v3428 = vmul.f32 %v3300, %v3412
        %v3429 = vmul.f32 %v3301, %v3413
        %v3430 = vmul.f32 %v3302, %v3414
        %v3431 = vmul.f32 %v3303, %v3415
        %v3432 = vmul.f32 %v3304, %v3416
        %v3433 = vpack.c.bf16 %v3421, %v3417
        %v3434 = vpack.c.bf16 %v3422, %v3418
        %v3435 = vpack.c.bf16 %v3423, %v3419
        %v3436 = vpack.c.bf16 %v3424, %v3420
        %v3437 = vpack.c.bf16 %v3429, %v3425
        %v3438 = vpack.c.bf16 %v3430, %v3426
        %v3439 = vpack.c.bf16 %v3431, %v3427
        %v3440 = vpack.c.bf16 %v3432, %v3428
        %v3441 = vld [vmem:[%s951] sm:$0xf]
        %v3442 = vld [vmem:[%s951 + $0x4] sm:$0xf]
        %v3443 = vld [vmem:[%s951 + $0x8] sm:$0xf]
        %v3444 = vld [vmem:[%s951 + $0xc] sm:$0xf]
        %v3445 = vld [vmem:[%s951 + $0x10] sm:$0xf]
        %v3446 = vld [vmem:[%s951 + $0x14] sm:$0xf]
        %v3447 = vld [vmem:[%s951 + $0x18] sm:$0xf]
        %v3448 = vld [vmem:[%s951 + $0x1c] sm:$0xf]
        %v3449 = vld [vmem:[%s951 + $0x20] sm:$0xf]
        %v3450 = vld [vmem:[%s951 + $0x24] sm:$0xf]
        %v3451 = vld [vmem:[%s951 + $0x28] sm:$0xf]
        %v3452 = vld [vmem:[%s951 + $0x2c] sm:$0xf]
        %v3453 = vld [vmem:[%s951 + $0x30] sm:$0xf]
        %v3454 = vld [vmem:[%s951 + $0x34] sm:$0xf]
        %v3455 = vld [vmem:[%s951 + $0x38] sm:$0xf]
        %v3456 = vld [vmem:[%s951 + $0x3c] sm:$0xf]
        %v3457 = vld [vmem:[%s951 + $0x40] sm:$0xf]
        %v3458 = vld [vmem:[%s951 + $0x44] sm:$0xf]
        %v3459 = vld [vmem:[%s951 + $0x48] sm:$0xf]
        %v3460 = vld [vmem:[%s951 + $0x4c] sm:$0xf]
        %v3461 = vld [vmem:[%s951 + $0x50] sm:$0xf]
        %v3462 = vld [vmem:[%s951 + $0x54] sm:$0xf]
        %v3463 = vld [vmem:[%s951 + $0x58] sm:$0xf]
        %v3464 = vld [vmem:[%s951 + $0x5c] sm:$0xf]
        %v3465 = vld [vmem:[%s951 + $0x60] sm:$0xf]
        %v3466 = vld [vmem:[%s951 + $0x64] sm:$0xf]
        %v3467 = vld [vmem:[%s951 + $0x68] sm:$0xf]
        %v3468 = vld [vmem:[%s951 + $0x6c] sm:$0xf]
        %v3469 = vld [vmem:[%s951 + $0x70] sm:$0xf]
        %v3470 = vld [vmem:[%s951 + $0x74] sm:$0xf]
        %v3471 = vld [vmem:[%s951 + $0x78] sm:$0xf]
        %v3472 = vld [vmem:[%s951 + $0x7c] sm:$0xf]
        %v3473 = vld [vmem:[%s951 + $0x80] sm:$0xf]
        %v3474 = vld [vmem:[%s951 + $0x84] sm:$0xf]
        %v3475 = vld [vmem:[%s951 + $0x88] sm:$0xf]
        %v3476 = vld [vmem:[%s951 + $0x8c] sm:$0xf]
        %v3477 = vld [vmem:[%s951 + $0x90] sm:$0xf]
        %v3478 = vld [vmem:[%s951 + $0x94] sm:$0xf]
        %v3479 = vld [vmem:[%s951 + $0x98] sm:$0xf]
        %v3480 = vld [vmem:[%s951 + $0x9c] sm:$0xf]
        %v3481 = vld [vmem:[%s951 + $0xa0] sm:$0xf]
        %v3482 = vld [vmem:[%s951 + $0xa4] sm:$0xf]
        %v3483 = vld [vmem:[%s951 + $0xa8] sm:$0xf]
        %v3484 = vld [vmem:[%s951 + $0xac] sm:$0xf]
        %v3485 = vld [vmem:[%s951 + $0xb0] sm:$0xf]
        %v3486 = vld [vmem:[%s951 + $0xb4] sm:$0xf]
        %v3487 = vld [vmem:[%s951 + $0xb8] sm:$0xf]
        %v3488 = vld [vmem:[%s951 + $0xbc] sm:$0xf]
        %v3489 = vld [vmem:[%s951 + $0xc0] sm:$0xf]
        %v3490 = vld [vmem:[%s951 + $0xc4] sm:$0xf]
        %v3491 = vld [vmem:[%s951 + $0xc8] sm:$0xf]
        %v3492 = vld [vmem:[%s951 + $0xcc] sm:$0xf]
        %v3493 = vld [vmem:[%s951 + $0xd0] sm:$0xf]
        %v3494 = vld [vmem:[%s951 + $0xd4] sm:$0xf]
        %v3495 = vld [vmem:[%s951 + $0xd8] sm:$0xf]
        %v3496 = vld [vmem:[%s951 + $0xdc] sm:$0xf]
        %v3497 = vld [vmem:[%s951 + $0xe0] sm:$0xf]
        %v3498 = vld [vmem:[%s951 + $0xe4] sm:$0xf]
        %v3499 = vld [vmem:[%s951 + $0xe8] sm:$0xf]
        %v3500 = vld [vmem:[%s951 + $0xec] sm:$0xf]
        %v3501 = vld [vmem:[%s951 + $0xf0] sm:$0xf]
        %v3502 = vld [vmem:[%s951 + $0xf4] sm:$0xf]
        %v3503 = vld [vmem:[%s951 + $0xf8] sm:$0xf]
        %v3504 = vld [vmem:[%s951 + $0xfc] sm:$0xf]
        %v3505 = vld [vmem:[%s959] sm:$0x1]
        %v3507 = vlaneseq
        %v3508 = vshrl.u32 %v3507, 7
        %v3509 = vsub.s32 0, %v3508
        %v3510 = vrot.slane %v3505, %v3509
        %v3576 = vunpack.c.l.b16 %v3441
        %v3577 = vunpack.c.l.b16 %v3442
        %v3578 = vunpack.c.l.b16 %v3443
        %v3579 = vunpack.c.l.b16 %v3444
        %v3580 = vunpack.c.l.b16 %v3445
        %v3581 = vunpack.c.l.b16 %v3446
        %v3582 = vunpack.c.l.b16 %v3447
        %v3583 = vunpack.c.l.b16 %v3448
        %v3584 = vunpack.c.l.b16 %v3449
        %v3585 = vunpack.c.l.b16 %v3450
        %v3586 = vunpack.c.l.b16 %v3451
        %v3587 = vunpack.c.l.b16 %v3452
        %v3588 = vunpack.c.l.b16 %v3453
        %v3589 = vunpack.c.l.b16 %v3454
        %v3590 = vunpack.c.l.b16 %v3455
        %v3591 = vunpack.c.l.b16 %v3456
        %v3592 = vunpack.c.l.b16 %v3457
        %v3593 = vunpack.c.l.b16 %v3458
        %v3594 = vunpack.c.l.b16 %v3459
        %v3595 = vunpack.c.l.b16 %v3460
        %v3596 = vunpack.c.l.b16 %v3461
        %v3597 = vunpack.c.l.b16 %v3462
        %v3598 = vunpack.c.l.b16 %v3463
        %v3599 = vunpack.c.l.b16 %v3464
        %v3600 = vunpack.c.l.b16 %v3465
        %v3601 = vunpack.c.l.b16 %v3466
        %v3602 = vunpack.c.l.b16 %v3467
        %v3603 = vunpack.c.l.b16 %v3468
        %v3604 = vunpack.c.l.b16 %v3469
        %v3605 = vunpack.c.l.b16 %v3470
        %v3606 = vunpack.c.l.b16 %v3471
        %v3607 = vunpack.c.l.b16 %v3472
        %v3608 = vunpack.c.l.b16 %v3473
        %v3609 = vunpack.c.l.b16 %v3474
        %v3610 = vunpack.c.l.b16 %v3475
        %v3611 = vunpack.c.l.b16 %v3476
        %v3612 = vunpack.c.l.b16 %v3477
        %v3613 = vunpack.c.l.b16 %v3478
        %v3614 = vunpack.c.l.b16 %v3479
        %v3615 = vunpack.c.l.b16 %v3480
        %v3616 = vunpack.c.l.b16 %v3481
        %v3617 = vunpack.c.l.b16 %v3482
        %v3618 = vunpack.c.l.b16 %v3483
        %v3619 = vunpack.c.l.b16 %v3484
        %v3620 = vunpack.c.l.b16 %v3485
        %v3621 = vunpack.c.l.b16 %v3486
        %v3622 = vunpack.c.l.b16 %v3487
        %v3623 = vunpack.c.l.b16 %v3488
        %v3624 = vunpack.c.l.b16 %v3489
        %v3625 = vunpack.c.l.b16 %v3490
        %v3626 = vunpack.c.l.b16 %v3491
        %v3627 = vunpack.c.l.b16 %v3492
        %v3628 = vunpack.c.l.b16 %v3493
        %v3629 = vunpack.c.l.b16 %v3494
        %v3630 = vunpack.c.l.b16 %v3495
        %v3631 = vunpack.c.l.b16 %v3496
        %v3632 = vunpack.c.l.b16 %v3497
        %v3633 = vunpack.c.l.b16 %v3498
        %v3634 = vunpack.c.l.b16 %v3499
        %v3635 = vunpack.c.l.b16 %v3500
        %v3636 = vunpack.c.l.b16 %v3501
        %v3637 = vunpack.c.l.b16 %v3502
        %v3638 = vunpack.c.l.b16 %v3503
        %v3639 = vunpack.c.l.b16 %v3504
        %v3640 = vpack.c.b16 %v3577, %v3576
        %v3641 = vpack.c.b16 %v3579, %v3578
        %v3642 = vpack.c.b16 %v3581, %v3580
        %v3643 = vpack.c.b16 %v3583, %v3582
        %v3644 = vpack.c.b16 %v3585, %v3584
        %v3645 = vpack.c.b16 %v3587, %v3586
        %v3646 = vpack.c.b16 %v3589, %v3588
        %v3647 = vpack.c.b16 %v3591, %v3590
        %v3648 = vpack.c.b16 %v3593, %v3592
        %v3649 = vpack.c.b16 %v3595, %v3594
        %v3650 = vpack.c.b16 %v3597, %v3596
        %v3651 = vpack.c.b16 %v3599, %v3598
        %v3652 = vpack.c.b16 %v3601, %v3600
        %v3653 = vpack.c.b16 %v3603, %v3602
        %v3654 = vpack.c.b16 %v3605, %v3604
        %v3655 = vpack.c.b16 %v3607, %v3606
        %v3656 = vpack.c.b16 %v3609, %v3608
        %v3657 = vpack.c.b16 %v3611, %v3610
        %v3658 = vpack.c.b16 %v3613, %v3612
        %v3659 = vpack.c.b16 %v3615, %v3614
        %v3660 = vpack.c.b16 %v3617, %v3616
        %v3661 = vpack.c.b16 %v3619, %v3618
        %v3662 = vpack.c.b16 %v3621, %v3620
        %v3663 = vpack.c.b16 %v3623, %v3622
        %v3664 = vpack.c.b16 %v3625, %v3624
        %v3665 = vpack.c.b16 %v3627, %v3626
        %v3666 = vpack.c.b16 %v3629, %v3628
        %v3667 = vpack.c.b16 %v3631, %v3630
        %v3668 = vpack.c.b16 %v3633, %v3632
        %v3669 = vpack.c.b16 %v3635, %v3634
        %v3670 = vpack.c.b16 %v3637, %v3636
        %v3671 = vpack.c.b16 %v3639, %v3638
        %3704 = vmatprep.subr.bf16.mxu0 0
        %3705 = vmatpush1.bf16.msra.mxu0 %v3640
        %3706 = vmatprep.subr.bf16.mxu0 0
        %3707 = vmatpush1.bf16.msra.mxu0 %v3641
        %3708 = vmatprep.subr.bf16.mxu0 0
        %3709 = vmatpush1.bf16.msra.mxu0 %v3642
        %3710 = vmatprep.subr.bf16.mxu0 0
        %3711 = vmatpush1.bf16.msra.mxu0 %v3643
        %3712 = vmatprep.subr.bf16.mxu0 0
        %3713 = vmatpush1.bf16.msra.mxu0 %v3644
        %3714 = vmatprep.subr.bf16.mxu0 0
        %3715 = vmatpush1.bf16.msra.mxu0 %v3645
        %3716 = vmatprep.subr.bf16.mxu0 0
        %3717 = vmatpush1.bf16.msra.mxu0 %v3646
        %3718 = vmatprep.subr.bf16.mxu0 0
        %3719 = vmatpush1.bf16.msra.mxu0 %v3647
        %3720 = vmatprep.subr.bf16.mxu0 0
        %3721 = vmatpush1.bf16.msra.mxu0 %v3648
        %3722 = vmatprep.subr.bf16.mxu0 0
        %3723 = vmatpush1.bf16.msra.mxu0 %v3649
        %3724 = vmatprep.subr.bf16.mxu0 0
        %3725 = vmatpush1.bf16.msra.mxu0 %v3650
        %3726 = vmatprep.subr.bf16.mxu0 0
        %3727 = vmatpush1.bf16.msra.mxu0 %v3651
        %3728 = vmatprep.subr.bf16.mxu0 0
        %3729 = vmatpush1.bf16.msra.mxu0 %v3652
        %3730 = vmatprep.subr.bf16.mxu0 0
        %3731 = vmatpush1.bf16.msra.mxu0 %v3653
        %3732 = vmatprep.subr.bf16.mxu0 0
        %3733 = vmatpush1.bf16.msra.mxu0 %v3654
        %3734 = vmatprep.subr.bf16.mxu0 0
        %3735 = vmatpush1.bf16.msra.mxu0 %v3655
        %3736 = vmatprep.mubr.bf16.mxu0 %v3434
        %3737 = vmatmul.mubr.bf16.gmra.mrb[0].mxu0 %v3433
        %v3738 = vpop.f32.mrb[0].mxu0
        %v3739 = vadd.f32 %v3510, %v3738
        %v3740 = vpop.f32.mrb[0].mxu0
        %v3741 = vpop.f32.mrb[0].mxu0
        %v3742 = vadd.f32 %v3510, %v3741
        %v3743 = vpop.f32.mrb[0].mxu0
        %3744 = vmatprep.mubr.bf16.mxu0 %v3438
        %3745 = vmatmul.mubr.bf16.gmra.mrb[0].mxu0 %v3437
        %v3746 = vpop.f32.mrb[0].mxu0
        %v3747 = vadd.f32 %v3510, %v3746
        %v3748 = vpop.f32.mrb[0].mxu0
        %v3749 = vpop.f32.mrb[0].mxu0
        %v3750 = vadd.f32 %v3510, %v3749
        %v3751 = vpop.f32.mrb[0].mxu0
        %3752 = vdwg.mxu0
        %3753 = vmatprep.subr.bf16.mxu0 0
        %3754 = vmatpush1.bf16.msra.mxu0 %v3656
        %3755 = vmatprep.subr.bf16.mxu0 0
        %3756 = vmatpush1.bf16.msra.mxu0 %v3657
        %3757 = vmatprep.subr.bf16.mxu0 0
        %3758 = vmatpush1.bf16.msra.mxu0 %v3658
        %3759 = vmatprep.subr.bf16.mxu0 0
        %3760 = vmatpush1.bf16.msra.mxu0 %v3659
        %3761 = vmatprep.subr.bf16.mxu0 0
        %3762 = vmatpush1.bf16.msra.mxu0 %v3660
        %3763 = vmatprep.subr.bf16.mxu0 0
        %3764 = vmatpush1.bf16.msra.mxu0 %v3661
        %3765 = vmatprep.subr.bf16.mxu0 0
        %3766 = vmatpush1.bf16.msra.mxu0 %v3662
        %3767 = vmatprep.subr.bf16.mxu0 0
        %3768 = vmatpush1.bf16.msra.mxu0 %v3663
        %3769 = vmatprep.subr.bf16.mxu0 0
        %3770 = vmatpush1.bf16.msra.mxu0 %v3664
        %3771 = vmatprep.subr.bf16.mxu0 0
        %3772 = vmatpush1.bf16.msra.mxu0 %v3665
        %3773 = vmatprep.subr.bf16.mxu0 0
        %3774 = vmatpush1.bf16.msra.mxu0 %v3666
        %3775 = vmatprep.subr.bf16.mxu0 0
        %3776 = vmatpush1.bf16.msra.mxu0 %v3667
        %3777 = vmatprep.subr.bf16.mxu0 0
        %3778 = vmatpush1.bf16.msra.mxu0 %v3668
        %3779 = vmatprep.subr.bf16.mxu0 0
        %3780 = vmatpush1.bf16.msra.mxu0 %v3669
        %3781 = vmatprep.subr.bf16.mxu0 0
        %3782 = vmatpush1.bf16.msra.mxu0 %v3670
        %3783 = vmatprep.subr.bf16.mxu0 0
        %3784 = vmatpush1.bf16.msra.mxu0 %v3671
        %3785 = vmatprep.mubr.bf16.mxu0 %v3436
        %3786 = vmatmul.mubr.bf16.gmra.mrb[0].mxu0 %v3435
        %v3787 = vpop.f32.mrb[0].mxu0
        %v3788 = vadd.f32 %v3739, %v3787
        %v3789 = vpop.f32.mrb[0].mxu0
        %v3790 = vpop.f32.mrb[0].mxu0
        %v3791 = vadd.f32 %v3742, %v3790
        %v3792 = vpop.f32.mrb[0].mxu0
        %3793 = vmatprep.mubr.bf16.mxu0 %v3440
        %3794 = vmatmul.mubr.bf16.gmra.mrb[0].mxu0 %v3439
        %v3795 = vpop.f32.mrb[0].mxu0
        %v3796 = vadd.f32 %v3747, %v3795
        %v3797 = vpop.f32.mrb[0].mxu0
        %v3798 = vpop.f32.mrb[0].mxu0
        %v3799 = vadd.f32 %v3750, %v3798
        %v3800 = vpop.f32.mrb[0].mxu0
        %3801 = vdwg.mxu0
        %v3802 = vadd.f32 %v2897, %v3788
        %v3803 = vadd.f32 %v2898, %v3791
        %v3804 = vadd.f32 %v2899, %v3796
        %v3805 = vadd.f32 %v2900, %v3799
        %3806 = vst [vmem:[#allocation2] sm:$0xff] %v3802
        %3807 = vst [vmem:[#allocation2 + $0x8] sm:$0xff] %v3803
        %3808 = vst [vmem:[#allocation2 + $0x10] sm:$0xff] %v3804
        %3809 = vst [vmem:[#allocation2 + $0x18] sm:$0xff] %v3805
        %p3810 = scmp.eq.s32.totalorder %s56, 1
        // Predicated region
        $region165: #{transformer_for_icd_forward.1} parent=99 // pred_check
          %p3811 = pneg %p3810
        $region166: #{transformer_for_icd_forward.1} parent=99 // pred_check_branch
          %3813 = sbr.rel (%p3811) target = $region168
        $region167: #{transformer_for_icd_forward.1} parent=99 // pred_region
          %v3814 = vld [vmem:[#allocation21] sm:$0x1]
          %v3815 = vld [vmem:[#allocation23] sm:$0x1]
          %3816 = vadd.xlane.f32.xlu0 %v3802
          %v3817 = vpop.xlane.xlu0 %3816
          %3818 = vadd.xlane.f32.xlu0 %v3803
          %v3819 = vpop.xlane.xlu0 %3818
          %3820 = vadd.xlane.f32.xlu0 %v3804
          %v3821 = vpop.xlane.xlu0 %3820
          %3822 = vadd.xlane.f32.xlu0 %v3805
          %v3823 = vpop.xlane.xlu0 %3822
          %v3824 = vmul.f32 %v3817, %v1276
          %v3825 = vmul.f32 %v3819, %v1276
          %v3826 = vmul.f32 %v3821, %v1276
          %v3827 = vmul.f32 %v3823, %v1276
          %v3828 = vsub.f32 %v3802, %v3824
          %v3829 = vsub.f32 %v3803, %v3825
          %v3830 = vsub.f32 %v3804, %v3826
          %v3831 = vsub.f32 %v3805, %v3827
          %v3832 = vmul.f32 %v3828, %v3828
          %v3833 = vmul.f32 %v3829, %v3829
          %v3834 = vmul.f32 %v3830, %v3830
          %v3835 = vmul.f32 %v3831, %v3831
          %3836 = vadd.xlane.f32.xlu0 %v3832
          %v3837 = vpop.xlane.xlu0 %3836
          %3838 = vadd.xlane.f32.xlu0 %v3833
          %v3839 = vpop.xlane.xlu0 %3838
          %3840 = vadd.xlane.f32.xlu0 %v3834
          %v3841 = vpop.xlane.xlu0 %3840
          %3842 = vadd.xlane.f32.xlu0 %v3835
          %v3843 = vpop.xlane.xlu0 %3842
          %v3844 = vmul.f32 %v3837, %v1276
          %v3845 = vmul.f32 %v3839, %v1276
          %v3846 = vmul.f32 %v3841, %v1276
          %v3847 = vmul.f32 %v3843, %v1276
          %v3848 = vadd.f32 %v3844, 1e-05
          %v3849 = vadd.f32 %v3845, 1e-05
          %v3850 = vadd.f32 %v3846, 1e-05
          %v3851 = vadd.f32 %v3847, 1e-05
          %v3852 = vrsqrt.pop %v3848
          %v3853 = vrsqrt.pop %v3849
          %v3854 = vrsqrt.pop %v3850
          %v3855 = vrsqrt.pop %v3851
          %v3856 = vmul.f32 %v3828, %v3852
          %v3857 = vmul.f32 %v3829, %v3853
          %v3858 = vmul.f32 %v3830, %v3854
          %v3859 = vmul.f32 %v3831, %v3855
          %v3861 = vlaneseq
          %v3862 = vshrl.u32 %v3861, 7
          %v3863 = vsub.s32 0, %v3862
          %v3864 = vrot.slane %v3814, %v3863
          %v3866 = vmul.f32 %v3856, %v3864
          %v3867 = vmul.f32 %v3857, %v3864
          %v3868 = vmul.f32 %v3858, %v3864
          %v3869 = vmul.f32 %v3859, %v3864
          %v3871 = vlaneseq
          %v3872 = vshrl.u32 %v3871, 7
          %v3873 = vsub.s32 0, %v3872
          %v3874 = vrot.slane %v3815, %v3873
          %v3876 = vadd.f32 %v3866, %v3874
          %v3877 = vadd.f32 %v3867, %v3874
          %v3878 = vadd.f32 %v3868, %v3874
          %v3879 = vadd.f32 %v3869, %v3874
          %v3880 = vpack.c.bf16 %v3877, %v3876
          %v3881 = vpack.c.bf16 %v3879, %v3878
          %v3882 = vld [vmem:[#allocation24] sm:$0xf]
          %v3883 = vld [vmem:[#allocation24 + $0x4] sm:$0xf]
          %v3884 = vld [vmem:[#allocation24 + $0x8] sm:$0xf]
          %v3885 = vld [vmem:[#allocation24 + $0xc] sm:$0xf]
          %v3886 = vld [vmem:[#allocation24 + $0x10] sm:$0xf]
          %v3887 = vld [vmem:[#allocation24 + $0x14] sm:$0xf]
          %v3888 = vld [vmem:[#allocation24 + $0x18] sm:$0xf]
          %v3889 = vld [vmem:[#allocation24 + $0x1c] sm:$0xf]
          %v3890 = vld [vmem:[#allocation24 + $0x20] sm:$0xf]
          %v3891 = vld [vmem:[#allocation24 + $0x24] sm:$0xf]
          %v3892 = vld [vmem:[#allocation24 + $0x28] sm:$0xf]
          %v3893 = vld [vmem:[#allocation24 + $0x2c] sm:$0xf]
          %v3894 = vld [vmem:[#allocation24 + $0x30] sm:$0xf]
          %v3895 = vld [vmem:[#allocation24 + $0x34] sm:$0xf]
          %v3896 = vld [vmem:[#allocation24 + $0x38] sm:$0xf]
          %v3897 = vld [vmem:[#allocation24 + $0x3c] sm:$0xf]
          %v3898 = vld [vmem:[#allocation26] sm:$0x1]
          %v3900 = vlaneseq
          %v3901 = vshrl.u32 %v3900, 7
          %v3902 = vsub.s32 0, %v3901
          %v3903 = vrot.slane %v3898, %v3902
          %v3921 = vunpack.c.l.b16 %v3882
          %v3922 = vunpack.c.l.b16 %v3883
          %v3923 = vunpack.c.l.b16 %v3884
          %v3924 = vunpack.c.l.b16 %v3885
          %v3925 = vunpack.c.l.b16 %v3886
          %v3926 = vunpack.c.l.b16 %v3887
          %v3927 = vunpack.c.l.b16 %v3888
          %v3928 = vunpack.c.l.b16 %v3889
          %v3929 = vunpack.c.l.b16 %v3890
          %v3930 = vunpack.c.l.b16 %v3891
          %v3931 = vunpack.c.l.b16 %v3892
          %v3932 = vunpack.c.l.b16 %v3893
          %v3933 = vunpack.c.l.b16 %v3894
          %v3934 = vunpack.c.l.b16 %v3895
          %v3935 = vunpack.c.l.b16 %v3896
          %v3936 = vunpack.c.l.b16 %v3897
          %v3937 = vpack.c.b16 %v3922, %v3921
          %v3938 = vpack.c.b16 %v3924, %v3923
          %v3939 = vpack.c.b16 %v3926, %v3925
          %v3940 = vpack.c.b16 %v3928, %v3927
          %v3941 = vpack.c.b16 %v3930, %v3929
          %v3942 = vpack.c.b16 %v3932, %v3931
          %v3943 = vpack.c.b16 %v3934, %v3933
          %v3944 = vpack.c.b16 %v3936, %v3935
          %3953 = vmatprep.subr.bf16.mxu0 0
          %3954 = vmatpush1.bf16.msra.mxu0 %v3937
          %3955 = vmatprep.subr.bf16.mxu0 0
          %3956 = vmatpush1.bf16.msra.mxu0 %v3938
          %3957 = vmatprep.subr.bf16.mxu0 0
          %3958 = vmatpush1.bf16.msra.mxu0 %v3939
          %3959 = vmatprep.subr.bf16.mxu0 0
          %3960 = vmatpush1.bf16.msra.mxu0 %v3940
          %3961 = vmatprep.subr.bf16.mxu0 0
          %3962 = vmatpush1.bf16.msra.mxu0 %v3941
          %3963 = vmatprep.subr.bf16.mxu0 0
          %3964 = vmatpush1.bf16.msra.mxu0 %v3942
          %3965 = vmatprep.subr.bf16.mxu0 0
          %3966 = vmatpush1.bf16.msra.mxu0 %v3943
          %3967 = vmatprep.subr.bf16.mxu0 0
          %3968 = vmatpush1.bf16.msra.mxu0 %v3944
          %3969 = vmatprep.subr.bf16.mxu0 0
          %3970 = vmatpush1.bf16.msra.mxu0 0
          %3971 = vmatprep.subr.bf16.mxu0 0
          %3972 = vmatpush1.bf16.msra.mxu0 0
          %3973 = vmatprep.subr.bf16.mxu0 0
          %3974 = vmatpush1.bf16.msra.mxu0 0
          %3975 = vmatprep.subr.bf16.mxu0 0
          %3976 = vmatpush1.bf16.msra.mxu0 0
          %3977 = vmatprep.subr.bf16.mxu0 0
          %3978 = vmatpush1.bf16.msra.mxu0 0
          %3979 = vmatprep.subr.bf16.mxu0 0
          %3980 = vmatpush1.bf16.msra.mxu0 0
          %3981 = vmatprep.subr.bf16.mxu0 0
          %3982 = vmatpush1.bf16.msra.mxu0 0
          %3983 = vmatprep.subr.bf16.mxu0 0
          %3984 = vmatpush1.bf16.msra.mxu0 0
          %3985 = vmatprep.mubr.bf16.mxu0 0
          %3986 = vmatmul.mubr.bf16.gmra.mrb[0].mxu0 %v3880
          %v3987 = vpop.f32.mrb[0].mxu0
          %v3988 = vadd.f32 %v3903, %v3987
          %v3989 = vpop.f32.mrb[0].mxu0
          %v3990 = vpop.f32.mrb[0].mxu0
          %v3991 = vadd.f32 %v3903, %v3990
          %v3992 = vpop.f32.mrb[0].mxu0
          %3993 = vmatprep.mubr.bf16.mxu0 0
          %3994 = vmatmul.mubr.bf16.gmra.mrb[0].mxu0 %v3881
          %v3995 = vpop.f32.mrb[0].mxu0
          %v3996 = vadd.f32 %v3903, %v3995
          %v3997 = vpop.f32.mrb[0].mxu0
          %v3998 = vpop.f32.mrb[0].mxu0
          %v3999 = vadd.f32 %v3903, %v3998
          %v4000 = vpop.f32.mrb[0].mxu0
          %4001 = vdwg.mxu0
          %4002 = vst [vmem:[%s1105] sm:$0xff] %v3988
          %4003 = vst [vmem:[%s1105 + $0x8] sm:$0xff] %v3991
          %4004 = vst [vmem:[%s1105 + $0x10] sm:$0xff] %v3996
          %4005 = vst [vmem:[%s1105 + $0x18] sm:$0xff] %v3999
        $region168: #{transformer_for_icd_forward.1} parent=99 // pred_fallthru
          _
        %s4006 = smul.u32 2, %s55
        %p4007 = scmp.lt.s32.totalorder %s4006, 1
        %s4008 = scalar_select %p4007, %s4006, 1
        %s4009 = smul.addr %s4008, 2
        %s4010 = smul.addr %s4009, 8
        %s4011 = scalar_lea.vmem %s20, %s4010
        // Predicated region
        $region169: #{transformer_for_icd_forward.1} parent=99 // pred_check
          %p4012 = pneg %p566
        $region170: #{transformer_for_icd_forward.1} parent=99 // pred_check_branch
          %4014 = sbr.rel (%p4012) target = $region172
        $region171: #{transformer_for_icd_forward.1} parent=99 // pred_region
          %s4015 = smul.u32 2, %s55
        $region172: #{transformer_for_icd_forward.1} parent=99 // pred_fallthru
          _
        // Predicated region
        $region173: #{transformer_for_icd_forward.1} parent=99 // pred_check
          %p4016 = pneg %p566
        $region174: #{transformer_for_icd_forward.1} parent=99 // pred_check_branch
          %4018 = sbr.rel (%p4016) target = $region176
        $region175: #{transformer_for_icd_forward.1} parent=99 // pred_region
          %s4019 = smul.u32 2, %s55
          %p4020 = scmp.lt.s32.totalorder %s4019, 1
          %s4021 = scalar_select %p4020, %s4019, 1
          %s4022 = smul.addr %s4021, 2
          %s4023 = smul.addr %s4022, 8
          %s4024 = scalar_lea.vmem %s20, %s4023
        $region176: #{transformer_for_icd_forward.1} parent=99 // pred_fallthru
          _
      $region100: #{transformer_for_icd_forward.1} parent=5 // pred_fallthru
        _
      %p4025 = scmp.le.s32.totalorder 2, %s46
      // Predicated region
      $region177: #{transformer_for_icd_forward.1} parent=5 // pred_check
        %p4026 = pneg %p4025
      $region178: #{transformer_for_icd_forward.1} parent=5 // pred_check_branch
        %4028 = sbr.rel (%p4026) target = $region180
      $region179: #{transformer_for_icd_forward.1} parent=5 // pred_region
        %s4029 = ssub.s32 %s46, 2
      $region180: #{transformer_for_icd_forward.1} parent=5 // pred_fallthru
        _
    $region6: #{transformer_for_icd_forward.1} parent=1 // loop_footer
      %s50 = sadd.s32 1, %s46
    $region7: #{transformer_for_icd_forward.1} parent=1 // loop_footer_branch
      %45 = sbr.rel target = $region3
    $region8: #{transformer_for_icd_forward.1} parent=1 // loop_exit
      _
    %4030 = vsyncpa [#allocation5], 1
    %s4031 = scalar_lea.sflag [#allocation5], 1
    %4032 = vsyncpa %s4031, 1
    %4033 = vsyncpa [#allocation7], 1
    %s4034 = scalar_lea.sflag [#allocation7], 1
    %4035 = vsyncpa %s4034, 1
    %4036 = vsyncpa [#allocation10], 1
    %s4037 = scalar_lea.sflag [#allocation10], 1
    %4038 = vsyncpa %s4037, 1
    %4039 = vsyncpa [#allocation13], 1
    %s4040 = scalar_lea.sflag [#allocation13], 1
    %4041 = vsyncpa %s4040, 1
    %4042 = vsyncpa [#allocation16], 1
    %s4043 = scalar_lea.sflag [#allocation16], 1
    %4044 = vsyncpa %s4043, 1
    %4045 = vsyncpa [#allocation19], 1
    %s4046 = scalar_lea.sflag [#allocation19], 1
    %4047 = vsyncpa %s4046, 1
    %4048 = vsyncpa [#allocation22], 1
    %4049 = vsyncpa [#allocation25], 1

</llo_original>
